<compile_context>
chip_gen: v7x
topology: tpu7x:2x2x1
jax: 0.10.0
libtpu: 0.0.40
codegen_flags: <defaults>
</compile_context>

<pallas_src>
import functools
import numpy as np
import jax
import jax.numpy as jnp
from jax import lax
from jax.experimental import pallas as pl
from jax.experimental.pallas import tpu as pltpu

LEAKY_SLOPE = 0.01  # PyTorch nn.LeakyReLU default negative_slope


def _round_up(x, m):
    return (x + m - 1) // m * m


# ------------------ fused single-K-step matmul + bias + (optional) LeakyReLU ------------------

def _matmul_kernel(a_ref, b_ref, bias_ref, o_ref, *, leaky):
    # Single K step: f32 accumulate on the MXU, f32 epilogue, cast on store.
    acc = jnp.dot(a_ref[...], b_ref[...], preferred_element_type=jnp.float32)
    out = acc + bias_ref[...]                      # (TM,1) or (1,TN) broadcast, f32
    if leaky:
        out = jnp.where(out > 0, out, LEAKY_SLOPE * out)
    o_ref[...] = out.astype(o_ref.dtype)


def matmul_bias_act(a, b, bias, *, leaky, bias_on_rows, out_dtype=jnp.bfloat16):
    """out (M,N) = a (M,K) @ b (K,N) + bias [+ LeakyReLU].

    bf16 MXU inputs, f32 accumulation/epilogue, `out_dtype` store.  Single K step: the
    reduction axis is always exact (never ragged/padded) — M/N tails use ragged blocks whose
    out-of-bounds outputs Pallas drops (garbage in padded rows/cols never reaches valid ones).
    """
    M, K = a.shape
    Kb, N = b.shape
    assert K == Kb
    # Guard the single-K-step assumption (this net: K in {64, 128, 256, 1280}).
    assert K <= 4096, "single-K-step matmul: K too large for one VMEM tile"

    TM = min(256, _round_up(M, 16))                # 16-multiple for bf16 sublane packing
    TN = min(1024, _round_up(N, 128))

    a = a.astype(jnp.bfloat16)                     # no-op when already bf16
    b = b.astype(jnp.bfloat16)
    bias = bias.astype(jnp.float32)
    if bias_on_rows:                               # conv: bias per output channel (rows)
        bias2 = bias.reshape(M, 1)
        bias_spec = pl.BlockSpec((TM, 1), lambda i, j: (i, 0))
    else:                                          # linear: bias per output feature (cols)
        bias2 = bias.reshape(1, N)
        bias_spec = pl.BlockSpec((1, TN), lambda i, j: (0, j))

    grid = (pl.cdiv(M, TM), pl.cdiv(N, TN))
    out_bytes = int(np.dtype(out_dtype).itemsize)
    cost = pl.CostEstimate(
        flops=2 * M * N * K,
        transcendentals=0,
        bytes_accessed=int(a.size) * 2 + int(b.size) * 2 + M * N * out_bytes + int(bias2.size) * 4,
    )
    return pl.pallas_call(
        functools.partial(_matmul_kernel, leaky=leaky),
        out_shape=jax.ShapeDtypeStruct((M, N), out_dtype),
        grid=grid,
        in_specs=[
            pl.BlockSpec((TM, K), lambda i, j: (i, 0)),
            pl.BlockSpec((K, TN), lambda i, j: (0, j)),
            bias_spec,
        ],
        out_specs=pl.BlockSpec((TM, TN), lambda i, j: (i, j)),
        compiler_params=pltpu.CompilerParams(
            dimension_semantics=("parallel", "parallel")),
        cost_estimate=cost,
    )(a, b, bias2)


# -------------------------------- fused 2x2 max-pool -----------------------------------------

def _pool_kernel(x_ref, s_ref, o_ref, *, hw):
    # x: (TR, H*W) bf16 rows of flattened spatial maps; s: 0/1 gather matrix (H*W, 4*hw).
    # The MXU matmul gathers the four 2x2 taps into four contiguous hw-wide chunks (each
    # output element is exactly one input element * 1.0 -> exact), then max-of-4.
    t = jnp.dot(x_ref[...], s_ref[...], preferred_element_type=jnp.float32)   # (TR, 4*hw)
    m = jnp.maximum(jnp.maximum(t[:, 0 * hw:1 * hw], t[:, 1 * hw:2 * hw]),
                    jnp.maximum(t[:, 2 * hw:3 * hw], t[:, 3 * hw:4 * hw]))
    o_ref[...] = m.astype(o_ref.dtype)


def maxpool2x2_cf(act):
    """2x2 max pool, floor mode (nn.MaxPool2d(2)), on channels-major (C, N, H, W), bf16.

    Operates on a free (C*N, H*W) lane-dense view; the floor-mode crop of odd H/W is encoded
    in the gather matrix (cropped rows/cols are simply never selected), so there is no
    wrapper-side crop copy and only one pallas_call per pool.
    """
    C, N, H, W = act.shape
    Ho, Wo = H // 2, W // 2
    hw = Ho * Wo
    R = C * N
    x2 = act.reshape(R, H * W)                       # free reshape (no data movement)

    # Build the 0/1 gather matrix: column (di*2+dj)*hw + ho*Wo + wo selects input
    # position (2ho+di, 2wo+dj).  Built at trace time -> jit constant.
    s = np.zeros((H * W, 4 * hw), np.float32)
    ho = np.arange(Ho)[:, None]
    wo = np.arange(Wo)[None, :]
    flat_dst = np.arange(hw)
    for di in range(2):
        for dj in range(2):
            src = ((2 * ho + di) * W + (2 * wo + dj)).reshape(-1)
            dst = (di * 2 + dj) * hw + flat_dst
            s[src, dst] = 1.0
    s = jnp.asarray(s, jnp.bfloat16)

    TR = min(512, _round_up(R, 16))
    out = pl.pallas_call(
        functools.partial(_pool_kernel, hw=hw),
        out_shape=jax.ShapeDtypeStruct((R, hw), act.dtype),
        grid=(pl.cdiv(R, TR),),
        in_specs=[pl.BlockSpec((TR, H * W), lambda i: (i, 0)),
                  pl.BlockSpec((H * W, 4 * hw), lambda i: (0, 0))],
        out_specs=pl.BlockSpec((TR, hw), lambda i: (i, 0)),
        compiler_params=pltpu.CompilerParams(dimension_semantics=("parallel",)),
    )(x2, s)
    return out.reshape(C, N, Ho, Wo)


# ----------------------- conv via im2col + transposed Pallas matmul --------------------------

def conv2d_cf(act, w, b, stride, *, leaky):
    """VALID conv on channels-major activations.

    act: (C, N, H, W) bf16, w: (O, C, kh, kw), b: (O,) -> (O, N, Ho, Wo) bf16.
    out_T (O, N*Ho*Wo) = w_mat (O, K) @ patches_T (K, N*Ho*Wo): the big spatial dim lives in
    the lane axis; the output is already the next layer's channels-major layout.
    """
    C, N, H, W = act.shape
    O, Cw, kh, kw = w.shape
    assert Cw == C
    Ho = (H - kh) // stride + 1
    Wo = (W - kw) // stride + 1
    # TODO(synk): fuse this im2col into the matmul kernel (strided in-VMEM slicing / MXU
    #             gather) so the patch matrix is never materialized in HBM.
    cols = []
    for i in range(kh):
        for j in range(kw):
            cols.append(act[:, :, i:i + stride * (Ho - 1) + 1:stride,
                                  j:j + stride * (Wo - 1) + 1:stride])
    patches = jnp.stack(cols, axis=1)                       # (C, kh*kw, N, Ho, Wo) bf16
    patches = patches.reshape(C * kh * kw, N * Ho * Wo)     # K ordered (c, i, j), c major
    wmat = w.reshape(O, C * kh * kw)                        # same K ordering
    out = matmul_bias_act(wmat, patches, b, leaky=leaky, bias_on_rows=True,
                          out_dtype=jnp.bfloat16)           # (O, N*Ho*Wo) bf16
    return out.reshape(O, N, Ho, Wo)


# ------------------------------------ module forward -----------------------------------------

def cnn_backbone_forward(x, params):
    if x.ndim == 3:
        x = x[None]
    assert x.ndim == 4
    # Single entry transpose to channels-major (C, N, H, W) + bf16 cast (one fused XLA op);
    # every conv/pool stays in that layout and dtype.
    act = jnp.transpose(x, (1, 0, 2, 3)).astype(jnp.bfloat16)
    act = conv2d_cf(act, params["conv1_w"], params["conv1_b"], 2, leaky=True)   # conv_1+relu_1
    act = conv2d_cf(act, params["conv2_w"], params["conv2_b"], 2, leaky=False)  # conv_2
    act = maxpool2x2_cf(act)                                                    # maxpool1
    act = conv2d_cf(act, params["conv3_w"], params["conv3_b"], 1, leaky=False)  # conv_3
    act = maxpool2x2_cf(act)                                                    # maxpool2
    C, N, Hp, Wp = act.shape
    flat = jnp.transpose(act, (1, 0, 2, 3)).reshape(N, C * Hp * Wp)             # flatten (tiny)
    # TODO(synk): at small batch, conv3+pool2+flatten+linear could be one pallas_call.
    return matmul_bias_act(flat, params["lin_w_t"], params["lin_b"],
                           leaky=True, bias_on_rows=False,
                           out_dtype=jnp.float32)                               # line_1+relu_2


# ------------------------------ deterministic parameter init ---------------------------------

def _conv_out(h, w, k, s):
    return (h - k) // s + 1, (w - k) // s + 1


def init_params(key, input_dim=(4, 84, 96), output_dim=256):
    c, H, W = input_dim
    keys = jax.random.split(key, 8)

    def kaiming_conv(k, o, i, kh, kw, slope=LEAKY_SLOPE):
        fan_out = o * kh * kw
        gain = np.sqrt(2.0 / (1.0 + slope ** 2))
        return (gain / np.sqrt(fan_out)) * jax.random.normal(k, (o, i, kh, kw), jnp.float32)

    def bias_init(k, n, fan_in):
        bound = 1.0 / np.sqrt(fan_in)
        return jax.random.uniform(k, (n,), jnp.float32, -bound, bound)

    conv1_w = kaiming_conv(keys[0], 32, c, 4, 4)
    conv1_b = bias_init(keys[1], 32, c * 16)
    conv2_w = kaiming_conv(keys[2], 64, 32, 2, 2)
    conv2_b = bias_init(keys[3], 64, 32 * 4)
    conv3_w = kaiming_conv(keys[4], 64, 64, 2, 2)
    conv3_b = bias_init(keys[5], 64, 64 * 4)

    # Trace shapes the same way build_net() does with a zeros "state".
    h, w = _conv_out(H, W, 4, 2)   # conv1
    h, w = _conv_out(h, w, 2, 2)   # conv2
    h, w = h // 2, w // 2          # maxpool1
    h, w = _conv_out(h, w, 2, 1)   # conv3
    h, w = h // 2, w // 2          # maxpool2
    line_in = 64 * h * w

    gain = np.sqrt(2.0)            # kaiming fan_out, nonlinearity='relu'
    # Stored pre-transposed (line_in, output_dim) so the forward never transposes the weight.
    lin_w_t = (gain / np.sqrt(output_dim)) * jax.random.normal(
        keys[6], (line_in, output_dim), jnp.float32)
    lin_b = bias_init(keys[7], output_dim, line_in)

    return dict(conv1_w=conv1_w, conv1_b=conv1_b,
                conv2_w=conv2_w, conv2_b=conv2_b,
                conv3_w=conv3_w, conv3_b=conv3_b,
                lin_w_t=lin_w_t, lin_b=lin_b)


# -------------------------------- pure-JAX reference (f32) -----------------------------------

def _ref_forward(x, params):
    def conv(x, w, b, stride):
        y = lax.conv_general_dilated(x, w, (stride, stride), 'VALID',
                                     dimension_numbers=('NCHW', 'OIHW', 'NCHW'),
                                     precision=lax.Precision.HIGHEST)
        return y + b[None, :, None, None]

    def pool(x):
        return lax.reduce_window(x, -jnp.inf, lax.max, (1, 1, 2, 2), (1, 1, 2, 2), 'VALID')

    lrelu = lambda t: jnp.where(t > 0, t, LEAKY_SLOPE * t)
    h = lrelu(conv(x, params["conv1_w"], params["conv1_b"], 2))
    h = conv(h, params["conv2_w"], params["conv2_b"], 2)
    h = pool(h)
    h = conv(h, params["conv3_w"], params["conv3_b"], 1)
    h = pool(h)
    h = h.reshape(h.shape[0], -1)
    h = lrelu(jnp.dot(h, params["lin_w_t"], precision=lax.Precision.HIGHEST) + params["lin_b"])
    return h


if __name__ == "__main__":
    # Small shapes with the same channel/kernel structure; every stage stays valid:
    # (4,52,56) -> conv1 25x27 -> conv2 12x13 -> pool 6x6 -> conv3 5x5 -> pool 2x2 -> 256.
    input_dim = (4, 52, 56)
    batch = 2
    output_dim = 256

    root = jax.random.PRNGKey(0)
    kp, kx = jax.random.split(root)
    params = init_params(kp, input_dim, output_dim)
    x = jax.random.normal(kx, (batch,) + input_dim, jnp.float32)

    fwd = jax.jit(cnn_backbone_forward)
    out = jax.block_until_ready(fwd(x, params))
    assert out.shape == (batch, output_dim), out.shape

    ref = _ref_forward(x, params)
    # Kernel deliberately keeps activations in bf16 (f32 accumulation); tolerance covers that.
    np.testing.assert_allclose(np.asarray(out), np.asarray(ref), rtol=5e-2, atol=5e-2)

    print("KERNEL_OK")
</pallas_src>

<mosaic_0001>
module attributes {stable_mosaic.version = 11 : i64} {
  func.func @_matmul_kernel(%arg0: i32, %arg1: i32, %arg2: memref<32x64xbf16, #tpu.memory_space<vmem>>, %arg3: memref<64x1024xbf16, #tpu.memory_space<vmem>>, %arg4: memref<32x1xf32, #tpu.memory_space<vmem>>, %arg5: memref<32x1024xbf16, #tpu.memory_space<vmem>>) attributes {dimension_semantics = [#tpu.dimension_semantics<parallel>, #tpu.dimension_semantics<parallel>], iteration_bounds = array<i64: 1, 2>, scalar_prefetch = 0 : i64, scratch_operands = 0 : i64, tpu.core_type = #tpu.core_type<tc>, window_params = [{transform_indices = @transform_0, window_bounds = array<i64: 32, 64>}, {transform_indices = @transform_1, window_bounds = array<i64: 64, 1024>}, {transform_indices = @transform_2, window_bounds = array<i64: 32, 1>}, {transform_indices = @transform_3, window_bounds = array<i64: 32, 1024>}]} {
    %c0 = arith.constant 0 : index
    %c0_0 = arith.constant 0 : index
    %0 = vector.load %arg2[%c0, %c0_0] : memref<32x64xbf16, #tpu.memory_space<vmem>>, vector<32x64xbf16>
    %c0_1 = arith.constant 0 : index
    %c0_2 = arith.constant 0 : index
    %1 = vector.load %arg3[%c0_1, %c0_2] : memref<64x1024xbf16, #tpu.memory_space<vmem>>, vector<64x1024xbf16>
    %cst = arith.constant dense<0.000000e+00> : vector<32x1024xf32>
    %2 = tpu.matmul %0, %1, %cst {dimension_numbers = #tpu.dot_dimension_numbers<[1], [0], [0], [1], [0, 0, 1, 1], [], []>} : vector<32x64xbf16>, vector<64x1024xbf16>, vector<32x1024xf32> -> vector<32x1024xf32>
    %c0_3 = arith.constant 0 : index
    %c0_4 = arith.constant 0 : index
    %3 = vector.load %arg4[%c0_3, %c0_4] : memref<32x1xf32, #tpu.memory_space<vmem>>, vector<32x1xf32>
    %4 = vector.broadcast %3 : vector<32x1xf32> to vector<32x1024xf32>
    %5 = arith.addf %2, %4 : vector<32x1024xf32>
    %cst_5 = arith.constant 0.000000e+00 : f32
    %6 = vector.broadcast %cst_5 : f32 to vector<32x1024xf32>
    %7 = arith.cmpf ogt, %5, %6 : vector<32x1024xf32>
    %cst_6 = arith.constant 0.00999999977 : f32
    %8 = vector.broadcast %cst_6 : f32 to vector<32x1024xf32>
    %9 = arith.mulf %8, %5 : vector<32x1024xf32>
    %10 = arith.select %7, %5, %9 : vector<32x1024xi1>, vector<32x1024xf32>
    %11 = arith.truncf %10 : vector<32x1024xf32> to vector<32x1024xbf16>
    %c0_7 = arith.constant 0 : index
    %c0_8 = arith.constant 0 : index
    %12 = vector.load %arg5[%c0_7, %c0_8] : memref<32x1024xbf16, #tpu.memory_space<vmem>>, vector<32x1024xbf16>
    tpu.vector_store %arg5[%c0_7, %c0_8], %11 {strides = array<i32>} : memref<32x1024xbf16, #tpu.memory_space<vmem>>, vector<32x1024xbf16>,
    return
  }
  func.func @transform_0(%arg0: i32, %arg1: i32) -> (i32, i32) {
    %c0_i32 = arith.constant 0 : i32
    %c0_i32_0 = arith.constant 0 : i32
    return %arg0, %c0_i32 : i32, i32
  }
  func.func @transform_1(%arg0: i32, %arg1: i32) -> (i32, i32) {
    %c0_i32 = arith.constant 0 : i32
    %c0_i32_0 = arith.constant 0 : i32
    return %c0_i32, %arg1 : i32, i32
  }
  func.func @transform_2(%arg0: i32, %arg1: i32) -> (i32, i32) {
    %c0_i32 = arith.constant 0 : i32
    %c0_i32_0 = arith.constant 0 : i32
    return %arg0, %c0_i32 : i32, i32
  }
  func.func @transform_3(%arg0: i32, %arg1: i32) -> (i32, i32) {
    %c0_i32 = arith.constant 0 : i32
    return %arg0, %arg1 : i32, i32
  }
}

module attributes {stable_mosaic.version = 11 : i64} {
  func.func @_matmul_kernel(%arg0: i32, %arg1: i32, %arg2: memref<64x128xbf16, #tpu.memory_space<vmem>>, %arg3: memref<128x384xbf16, #tpu.memory_space<vmem>>, %arg4: memref<64x1xf32, #tpu.memory_space<vmem>>, %arg5: memref<64x384xbf16, #tpu.memory_space<vmem>>) attributes {dimension_semantics = [#tpu.dimension_semantics<parallel>, #tpu.dimension_semantics<parallel>], iteration_bounds = array<i64: 1, 1>, scalar_prefetch = 0 : i64, scratch_operands = 0 : i64, tpu.core_type = #tpu.core_type<tc>, window_params = [{transform_indices = @transform_0, window_bounds = array<i64: 64, 128>}, {transform_indices = @transform_1, window_bounds = array<i64: 128, 384>}, {transform_indices = @transform_2, window_bounds = array<i64: 64, 1>}, {transform_indices = @transform_3, window_bounds = array<i64: 64, 384>}]} {
    %c0 = arith.constant 0 : index
    %c0_0 = arith.constant 0 : index
    %0 = vector.load %arg2[%c0, %c0_0] : memref<64x128xbf16, #tpu.memory_space<vmem>>, vector<64x128xbf16>
    %c0_1 = arith.constant 0 : index
    %c0_2 = arith.constant 0 : index
    %1 = vector.load %arg3[%c0_1, %c0_2] : memref<128x384xbf16, #tpu.memory_space<vmem>>, vector<128x384xbf16>
    %cst = arith.constant dense<0.000000e+00> : vector<64x384xf32>
    %2 = tpu.matmul %0, %1, %cst {dimension_numbers = #tpu.dot_dimension_numbers<[1], [0], [0], [1], [0, 0, 1, 1], [], []>} : vector<64x128xbf16>, vector<128x384xbf16>, vector<64x384xf32> -> vector<64x384xf32>
    %c0_3 = arith.constant 0 : index
    %c0_4 = arith.constant 0 : index
    %3 = vector.load %arg4[%c0_3, %c0_4] : memref<64x1xf32, #tpu.memory_space<vmem>>, vector<64x1xf32>
    %4 = vector.broadcast %3 : vector<64x1xf32> to vector<64x384xf32>
    %5 = arith.addf %2, %4 : vector<64x384xf32>
    %6 = arith.truncf %5 : vector<64x384xf32> to vector<64x384xbf16>
    %c0_5 = arith.constant 0 : index
    %c0_6 = arith.constant 0 : index
    %7 = vector.load %arg5[%c0_5, %c0_6] : memref<64x384xbf16, #tpu.memory_space<vmem>>, vector<64x384xbf16>
    tpu.vector_store %arg5[%c0_5, %c0_6], %6 {strides = array<i32>} : memref<64x384xbf16, #tpu.memory_space<vmem>>, vector<64x384xbf16>,
    return
  }
  func.func @transform_0(%arg0: i32, %arg1: i32) -> (i32, i32) {
    %c0_i32 = arith.constant 0 : i32
    %c0_i32_0 = arith.constant 0 : i32
    return %arg0, %c0_i32 : i32, i32
  }
  func.func @transform_1(%arg0: i32, %arg1: i32) -> (i32, i32) {
    %c0_i32 = arith.constant 0 : i32
    %c0_i32_0 = arith.constant 0 : i32
    return %c0_i32, %arg1 : i32, i32
  }
  func.func @transform_2(%arg0: i32, %arg1: i32) -> (i32, i32) {
    %c0_i32 = arith.constant 0 : i32
    %c0_i32_0 = arith.constant 0 : i32
    return %arg0, %c0_i32 : i32, i32
  }
  func.func @transform_3(%arg0: i32, %arg1: i32) -> (i32, i32) {
    %c0_i32 = arith.constant 0 : i32
    return %arg0, %arg1 : i32, i32
  }
}

module attributes {stable_mosaic.version = 11 : i64} {
  func.func @_pool_kernel(%arg0: i32, %arg1: memref<128x156xbf16, #tpu.memory_space<vmem>>, %arg2: memref<156x144xbf16, #tpu.memory_space<vmem>>, %arg3: memref<128x36xbf16, #tpu.memory_space<vmem>>) attributes {dimension_semantics = [#tpu.dimension_semantics<parallel>], iteration_bounds = array<i64: 1>, scalar_prefetch = 0 : i64, scratch_operands = 0 : i64, tpu.core_type = #tpu.core_type<tc>, window_params = [{transform_indices = @transform_0, window_bounds = array<i64: 128, 156>}, {pipeline_mode = #tpu.pipeline_mode<synchronous>, transform_indices = @transform_1, window_bounds = array<i64: 156, 144>}, {transform_indices = @transform_2, window_bounds = array<i64: 128, 36>}]} {
    %c0 = arith.constant 0 : index
    %c0_0 = arith.constant 0 : index
    %0 = vector.load %arg1[%c0, %c0_0] : memref<128x156xbf16, #tpu.memory_space<vmem>>, vector<128x156xbf16>
    %c0_1 = arith.constant 0 : index
    %c0_2 = arith.constant 0 : index
    %1 = vector.load %arg2[%c0_1, %c0_2] : memref<156x144xbf16, #tpu.memory_space<vmem>>, vector<156x144xbf16>
    %cst = arith.constant dense<0.000000e+00> : vector<128x144xf32>
    %2 = tpu.matmul %0, %1, %cst {dimension_numbers = #tpu.dot_dimension_numbers<[1], [0], [0], [1], [0, 0, 1, 1], [], []>} : vector<128x156xbf16>, vector<156x144xbf16>, vector<128x144xf32> -> vector<128x144xf32>
    %3 = vector.extract_strided_slice %2 {offsets = [0, 0], sizes = [128, 36], strides = [1, 1]} : vector<128x144xf32> to vector<128x36xf32>
    %4 = vector.extract_strided_slice %2 {offsets = [0, 36], sizes = [128, 36], strides = [1, 1]} : vector<128x144xf32> to vector<128x36xf32>
    %5 = arith.maximumf %3, %4 : vector<128x36xf32>
    %6 = vector.extract_strided_slice %2 {offsets = [0, 72], sizes = [128, 36], strides = [1, 1]} : vector<128x144xf32> to vector<128x36xf32>
    %7 = vector.extract_strided_slice %2 {offsets = [0, 108], sizes = [128, 36], strides = [1, 1]} : vector<128x144xf32> to vector<128x36xf32>
    %8 = arith.maximumf %6, %7 : vector<128x36xf32>
    %9 = arith.maximumf %5, %8 : vector<128x36xf32>
    %10 = arith.truncf %9 : vector<128x36xf32> to vector<128x36xbf16>
    %c0_3 = arith.constant 0 : index
    %c0_4 = arith.constant 0 : index
    %11 = vector.load %arg3[%c0_3, %c0_4] : memref<128x36xbf16, #tpu.memory_space<vmem>>, vector<128x36xbf16>
    tpu.vector_store %arg3[%c0_3, %c0_4], %10 {strides = array<i32>} : memref<128x36xbf16, #tpu.memory_space<vmem>>, vector<128x36xbf16>,
    return
  }
  func.func @transform_0(%arg0: i32) -> (i32, i32) {
    %c0_i32 = arith.constant 0 : i32
    %c0_i32_0 = arith.constant 0 : i32
    return %arg0, %c0_i32 : i32, i32
  }
  func.func @transform_1(%arg0: i32) -> (i32, i32) {
    %c0_i32 = arith.constant 0 : i32
    %c0_i32_0 = arith.constant 0 : i32
    %c0_i32_1 = arith.constant 0 : i32
    return %c0_i32, %c0_i32_0 : i32, i32
  }
  func.func @transform_2(%arg0: i32) -> (i32, i32) {
    %c0_i32 = arith.constant 0 : i32
    %c0_i32_0 = arith.constant 0 : i32
    return %arg0, %c0_i32 : i32, i32
  }
}

module attributes {stable_mosaic.version = 11 : i64} {
  func.func @_matmul_kernel(%arg0: i32, %arg1: i32, %arg2: memref<64x256xbf16, #tpu.memory_space<vmem>>, %arg3: memref<256x128xbf16, #tpu.memory_space<vmem>>, %arg4: memref<64x1xf32, #tpu.memory_space<vmem>>, %arg5: memref<64x128xbf16, #tpu.memory_space<vmem>>) attributes {dimension_semantics = [#tpu.dimension_semantics<parallel>, #tpu.dimension_semantics<parallel>], iteration_bounds = array<i64: 1, 1>, scalar_prefetch = 0 : i64, scratch_operands = 0 : i64, tpu.core_type = #tpu.core_type<tc>, window_params = [{transform_indices = @transform_0, window_bounds = array<i64: 64, 256>}, {transform_indices = @transform_1, window_bounds = array<i64: 256, 128>}, {transform_indices = @transform_2, window_bounds = array<i64: 64, 1>}, {transform_indices = @transform_3, window_bounds = array<i64: 64, 128>}]} {
    %c0 = arith.constant 0 : index
    %c0_0 = arith.constant 0 : index
    %0 = vector.load %arg2[%c0, %c0_0] : memref<64x256xbf16, #tpu.memory_space<vmem>>, vector<64x256xbf16>
    %c0_1 = arith.constant 0 : index
    %c0_2 = arith.constant 0 : index
    %1 = vector.load %arg3[%c0_1, %c0_2] : memref<256x128xbf16, #tpu.memory_space<vmem>>, vector<256x128xbf16>
    %cst = arith.constant dense<0.000000e+00> : vector<64x128xf32>
    %2 = tpu.matmul %0, %1, %cst {dimension_numbers = #tpu.dot_dimension_numbers<[1], [0], [0], [1], [0, 0, 1, 1], [], []>} : vector<64x256xbf16>, vector<256x128xbf16>, vector<64x128xf32> -> vector<64x128xf32>
    %c0_3 = arith.constant 0 : index
    %c0_4 = arith.constant 0 : index
    %3 = vector.load %arg4[%c0_3, %c0_4] : memref<64x1xf32, #tpu.memory_space<vmem>>, vector<64x1xf32>
    %4 = vector.broadcast %3 : vector<64x1xf32> to vector<64x128xf32>
    %5 = arith.addf %2, %4 : vector<64x128xf32>
    %6 = arith.truncf %5 : vector<64x128xf32> to vector<64x128xbf16>
    %c0_5 = arith.constant 0 : index
    %c0_6 = arith.constant 0 : index
    %7 = vector.load %arg5[%c0_5, %c0_6] : memref<64x128xbf16, #tpu.memory_space<vmem>>, vector<64x128xbf16>
    tpu.vector_store %arg5[%c0_5, %c0_6], %6 {strides = array<i32>} : memref<64x128xbf16, #tpu.memory_space<vmem>>, vector<64x128xbf16>,
    return
  }
  func.func @transform_0(%arg0: i32, %arg1: i32) -> (i32, i32) {
    %c0_i32 = arith.constant 0 : i32
    %c0_i32_0 = arith.constant 0 : i32
    return %arg0, %c0_i32 : i32, i32
  }
  func.func @transform_1(%arg0: i32, %arg1: i32) -> (i32, i32) {
    %c0_i32 = arith.constant 0 : i32
    %c0_i32_0 = arith.constant 0 : i32
    return %c0_i32, %arg1 : i32, i32
  }
  func.func @transform_2(%arg0: i32, %arg1: i32) -> (i32, i32) {
    %c0_i32 = arith.constant 0 : i32
    %c0_i32_0 = arith.constant 0 : i32
    return %arg0, %c0_i32 : i32, i32
  }
  func.func @transform_3(%arg0: i32, %arg1: i32) -> (i32, i32) {
    %c0_i32 = arith.constant 0 : i32
    return %arg0, %arg1 : i32, i32
  }
}

module attributes {stable_mosaic.version = 11 : i64} {
  func.func @_pool_kernel(%arg0: i32, %arg1: memref<128x25xbf16, #tpu.memory_space<vmem>>, %arg2: memref<25x16xbf16, #tpu.memory_space<vmem>>, %arg3: memref<128x4xbf16, #tpu.memory_space<vmem>>) attributes {dimension_semantics = [#tpu.dimension_semantics<parallel>], iteration_bounds = array<i64: 1>, scalar_prefetch = 0 : i64, scratch_operands = 0 : i64, tpu.core_type = #tpu.core_type<tc>, window_params = [{transform_indices = @transform_0, window_bounds = array<i64: 128, 25>}, {pipeline_mode = #tpu.pipeline_mode<synchronous>, transform_indices = @transform_1, window_bounds = array<i64: 25, 16>}, {transform_indices = @transform_2, window_bounds = array<i64: 128, 4>}]} {
    %c0 = arith.constant 0 : index
    %c0_0 = arith.constant 0 : index
    %0 = vector.load %arg1[%c0, %c0_0] : memref<128x25xbf16, #tpu.memory_space<vmem>>, vector<128x25xbf16>
    %c0_1 = arith.constant 0 : index
    %c0_2 = arith.constant 0 : index
    %1 = vector.load %arg2[%c0_1, %c0_2] : memref<25x16xbf16, #tpu.memory_space<vmem>>, vector<25x16xbf16>
    %cst = arith.constant dense<0.000000e+00> : vector<128x16xf32>
    %2 = tpu.matmul %0, %1, %cst {dimension_numbers = #tpu.dot_dimension_numbers<[1], [0], [0], [1], [0, 0, 1, 1], [], []>} : vector<128x25xbf16>, vector<25x16xbf16>, vector<128x16xf32> -> vector<128x16xf32>
    %3 = vector.extract_strided_slice %2 {offsets = [0, 0], sizes = [128, 4], strides = [1, 1]} : vector<128x16xf32> to vector<128x4xf32>
    %4 = vector.extract_strided_slice %2 {offsets = [0, 4], sizes = [128, 4], strides = [1, 1]} : vector<128x16xf32> to vector<128x4xf32>
    %5 = arith.maximumf %3, %4 : vector<128x4xf32>
    %6 = vector.extract_strided_slice %2 {offsets = [0, 8], sizes = [128, 4], strides = [1, 1]} : vector<128x16xf32> to vector<128x4xf32>
    %7 = vector.extract_strided_slice %2 {offsets = [0, 12], sizes = [128, 4], strides = [1, 1]} : vector<128x16xf32> to vector<128x4xf32>
    %8 = arith.maximumf %6, %7 : vector<128x4xf32>
    %9 = arith.maximumf %5, %8 : vector<128x4xf32>
    %10 = arith.truncf %9 : vector<128x4xf32> to vector<128x4xbf16>
    %c0_3 = arith.constant 0 : index
    %c0_4 = arith.constant 0 : index
    %11 = vector.load %arg3[%c0_3, %c0_4] : memref<128x4xbf16, #tpu.memory_space<vmem>>, vector<128x4xbf16>
    tpu.vector_store %arg3[%c0_3, %c0_4], %10 {strides = array<i32>} : memref<128x4xbf16, #tpu.memory_space<vmem>>, vector<128x4xbf16>,
    return
  }
  func.func @transform_0(%arg0: i32) -> (i32, i32) {
    %c0_i32 = arith.constant 0 : i32
    %c0_i32_0 = arith.constant 0 : i32
    return %arg0, %c0_i32 : i32, i32
  }
  func.func @transform_1(%arg0: i32) -> (i32, i32) {
    %c0_i32 = arith.constant 0 : i32
    %c0_i32_0 = arith.constant 0 : i32
    %c0_i32_1 = arith.constant 0 : i32
    return %c0_i32, %c0_i32_0 : i32, i32
  }
  func.func @transform_2(%arg0: i32) -> (i32, i32) {
    %c0_i32 = arith.constant 0 : i32
    %c0_i32_0 = arith.constant 0 : i32
    return %arg0, %c0_i32 : i32, i32
  }
}

module attributes {stable_mosaic.version = 11 : i64} {
  func.func @_matmul_kernel(%arg0: i32, %arg1: i32, %arg2: memref<16x256xbf16, #tpu.memory_space<vmem>>, %arg3: memref<256x256xbf16, #tpu.memory_space<vmem>>, %arg4: memref<1x256xf32, #tpu.memory_space<vmem>>, %arg5: memref<16x256xf32, #tpu.memory_space<vmem>>) attributes {dimension_semantics = [#tpu.dimension_semantics<parallel>, #tpu.dimension_semantics<parallel>], iteration_bounds = array<i64: 1, 1>, scalar_prefetch = 0 : i64, scratch_operands = 0 : i64, tpu.core_type = #tpu.core_type<tc>, window_params = [{transform_indices = @transform_0, window_bounds = array<i64: 16, 256>}, {transform_indices = @transform_1, window_bounds = array<i64: 256, 256>}, {transform_indices = @transform_2, window_bounds = array<i64: 1, 256>}, {transform_indices = @transform_3, window_bounds = array<i64: 16, 256>}]} {
    %c0 = arith.constant 0 : index
    %c0_0 = arith.constant 0 : index
    %0 = vector.load %arg2[%c0, %c0_0] : memref<16x256xbf16, #tpu.memory_space<vmem>>, vector<16x256xbf16>
    %c0_1 = arith.constant 0 : index
    %c0_2 = arith.constant 0 : index
    %1 = vector.load %arg3[%c0_1, %c0_2] : memref<256x256xbf16, #tpu.memory_space<vmem>>, vector<256x256xbf16>
    %cst = arith.constant dense<0.000000e+00> : vector<16x256xf32>
    %2 = tpu.matmul %0, %1, %cst {dimension_numbers = #tpu.dot_dimension_numbers<[1], [0], [0], [1], [0, 0, 1, 1], [], []>} : vector<16x256xbf16>, vector<256x256xbf16>, vector<16x256xf32> -> vector<16x256xf32>
    %c0_3 = arith.constant 0 : index
    %c0_4 = arith.constant 0 : index
    %3 = vector.load %arg4[%c0_3, %c0_4] : memref<1x256xf32, #tpu.memory_space<vmem>>, vector<1x256xf32>
    %4 = vector.broadcast %3 : vector<1x256xf32> to vector<16x256xf32>
    %5 = arith.addf %2, %4 : vector<16x256xf32>
    %cst_5 = arith.constant 0.000000e+00 : f32
    %6 = vector.broadcast %cst_5 : f32 to vector<16x256xf32>
    %7 = arith.cmpf ogt, %5, %6 : vector<16x256xf32>
    %cst_6 = arith.constant 0.00999999977 : f32
    %8 = vector.broadcast %cst_6 : f32 to vector<16x256xf32>
    %9 = arith.mulf %8, %5 : vector<16x256xf32>
    %10 = arith.select %7, %5, %9 : vector<16x256xi1>, vector<16x256xf32>
    %c0_7 = arith.constant 0 : index
    %c0_8 = arith.constant 0 : index
    %11 = vector.load %arg5[%c0_7, %c0_8] : memref<16x256xf32, #tpu.memory_space<vmem>>, vector<16x256xf32>
    tpu.vector_store %arg5[%c0_7, %c0_8], %10 {strides = array<i32>} : memref<16x256xf32, #tpu.memory_space<vmem>>, vector<16x256xf32>,
    return
  }
  func.func @transform_0(%arg0: i32, %arg1: i32) -> (i32, i32) {
    %c0_i32 = arith.constant 0 : i32
    %c0_i32_0 = arith.constant 0 : i32
    return %arg0, %c0_i32 : i32, i32
  }
  func.func @transform_1(%arg0: i32, %arg1: i32) -> (i32, i32) {
    %c0_i32 = arith.constant 0 : i32
    %c0_i32_0 = arith.constant 0 : i32
    return %c0_i32, %arg1 : i32, i32
  }
  func.func @transform_2(%arg0: i32, %arg1: i32) -> (i32, i32) {
    %c0_i32 = arith.constant 0 : i32
    %c0_i32_0 = arith.constant 0 : i32
    return %c0_i32, %arg1 : i32, i32
  }
  func.func @transform_3(%arg0: i32, %arg1: i32) -> (i32, i32) {
    %c0_i32 = arith.constant 0 : i32
    return %arg0, %arg1 : i32, i32
  }
}

</mosaic_0001>

<llo_original>
// kernel: cnn_backbone_forward.6
$region0: #{cnn_backbone_forward.6}
  #allocation0 [shape = 'u32[]', space=smem, size = 0x4, offset = 0x4, fixed_abs, tag = 'smem constant byte address 0x4 - core index']
  #allocation1 [shape = 'u32[144,128]{1,0:T(1,128)}', space=vmem, size = 0x12000, scoped, tag = 'internal scratch']
  %s0 = inlined_call_operand.vmem [shape: bf16[32,64], index: 0, kind: input, shape index: {}]
  %s1 = inlined_call_operand.vmem [shape: bf16[64,1350], index: 1, kind: input, shape index: {}]
  %s2 = inlined_call_operand.vmem [shape: f32[32,1], index: 2, kind: input, shape index: {}]
  %s3 = inlined_call_operand.vmem [shape: bf16[32,1350], index: 3, kind: output, shape index: {}]
  %s4 = sld [smem:[#allocation0]]
  $region173: #{cnn_backbone_forward.6} parent=0
    _
  %s6 = ssub.s32 1, %s4
  %s7 = scalar_select 0, %s6, %s4
  $region1: #{cnn_backbone_forward.6} parent=0
    #allocation2 [shape = 'u8[262144]{0}', space=vmem, size = 0x40000, scoped, tag = 'input window, operand 1']
    #allocation3 [shape = 'u8[131072]{0}', space=vmem, size = 0x20000, scoped, tag = 'output window, operand 0']
    loop: start=0, step=1, limit=4
    $region2: #{cnn_backbone_forward.6} parent=1 // loop_pre_header
      _
    $region3: #{cnn_backbone_forward.6} parent=1 // loop_header
      %s9 = sphi 0, %s13
      %p10 = scmp.ge.s32.totalorder %s9, 4
      %s16 = sphi 0, %s28
      %s17 = sphi 0, %s24
      %s18 = sphi 0, %s16
      %s19 = sphi 0, %s17
      %s20 = sphi 0, %s18
      %s21 = sphi 0, %s19
      %s31 = sphi 0, %s33
      %s34 = sphi 0, %s31
      %s35 = sphi 0, %s34
      %s51 = sphi 0, %s35
      %s57 = sphi 0, %s59
      %s60 = sphi 0, %s57
      %s61 = sphi 0, %s60
      %s77 = sphi 0, %s61
      %s83 = sphi 0, %s85
      %s86 = sphi 0, %s83
      %s87 = sphi 0, %s86
      %s103 = sphi 0, %s87
      %s111 = sphi 0, %s113
      %s114 = sphi 0, %s111
      %s115 = sphi 0, %s114
      %s131 = sphi 0, %s115
    $region4: #{cnn_backbone_forward.6} parent=1 // loop_header_branch
      %12 = sbr.rel (%p10) target = $region8
    $region5: #{cnn_backbone_forward.6} parent=1 // loop_body
      %s14 = ssub.s32 %s9, 1
      %s15 = ssub.s32 %s9, 2
      %s22 = sadd.s32 1, %s17
      %p23 = scmp.ge.s32.totalorder %s22, 2
      %s24 = scalar_select %p23, 0, %s22
      %s25 = sadd.s32 1, %s16
      %s26 = scalar_select %p23, %s25, %s16
      %p27 = scmp.ge.s32.totalorder %s26, 1
      %s28 = scalar_select %p27, 0, %s26
      %s29 = ssub.s32 %s16, %s28
      %p30 = scmp.eq.s32.totalorder %s29, 0
      %s32 = sadd.s32 %s31, 1
      %s33 = scalar_select %p30, %s31, %s32
      %p36 = pneg %p30
      %p37 = scmp.eq.s32.totalorder %s9, 1
      %p38 = por %p36, %p37
      %p39 = scmp.ne.s32.totalorder %s31, %s34
      %p40 = scmp.eq.s32.totalorder %s9, 0
      %p41 = por %p39, %p40
      %p42 = scmp.ne.s32.totalorder %s31, %s34
      %p43 = scmp.eq.s32.totalorder %s14, 1
      %p44 = por %p42, %p43
      %p45 = scmp.ne.s32.totalorder %s34, %s35
      %p46 = scmp.eq.s32.totalorder %s14, 0
      %p47 = por %p45, %p46
      %p48 = scmp.ne.s32.totalorder %s34, %s35
      %p49 = scmp.eq.s32.totalorder %s15, 1
      %p50 = por %p48, %p49
      %p52 = scmp.ne.s32.totalorder %s35, %s51
      %p53 = scmp.eq.s32.totalorder %s15, 0
      %p54 = por %p52, %p53
      %s55 = ssub.s32 %s17, %s24
      %p56 = scmp.eq.s32.totalorder %s55, 0
      %s58 = sadd.s32 %s57, 1
      %s59 = scalar_select %p56, %s57, %s58
      %p62 = pneg %p56
      %p63 = scmp.eq.s32.totalorder %s9, 1
      %p64 = por %p62, %p63
      %p65 = scmp.ne.s32.totalorder %s57, %s60
      %p66 = scmp.eq.s32.totalorder %s9, 0
      %p67 = por %p65, %p66
      %p68 = scmp.ne.s32.totalorder %s57, %s60
      %p69 = scmp.eq.s32.totalorder %s14, 1
      %p70 = por %p68, %p69
      %p71 = scmp.ne.s32.totalorder %s60, %s61
      %p72 = scmp.eq.s32.totalorder %s14, 0
      %p73 = por %p71, %p72
      %p74 = scmp.ne.s32.totalorder %s60, %s61
      %p75 = scmp.eq.s32.totalorder %s15, 1
      %p76 = por %p74, %p75
      %p78 = scmp.ne.s32.totalorder %s61, %s77
      %p79 = scmp.eq.s32.totalorder %s15, 0
      %p80 = por %p78, %p79
      %s81 = ssub.s32 %s16, %s28
      %p82 = scmp.eq.s32.totalorder %s81, 0
      %s84 = sadd.s32 %s83, 1
      %s85 = scalar_select %p82, %s83, %s84
      %p88 = pneg %p82
      %p89 = scmp.eq.s32.totalorder %s9, 1
      %p90 = por %p88, %p89
      %p91 = scmp.ne.s32.totalorder %s83, %s86
      %p92 = scmp.eq.s32.totalorder %s9, 0
      %p93 = por %p91, %p92
      %p94 = scmp.ne.s32.totalorder %s83, %s86
      %p95 = scmp.eq.s32.totalorder %s14, 1
      %p96 = por %p94, %p95
      %p97 = scmp.ne.s32.totalorder %s86, %s87
      %p98 = scmp.eq.s32.totalorder %s14, 0
      %p99 = por %p97, %p98
      %p100 = scmp.ne.s32.totalorder %s86, %s87
      %p101 = scmp.eq.s32.totalorder %s15, 1
      %p102 = por %p100, %p101
      %p104 = scmp.ne.s32.totalorder %s87, %s103
      %p105 = scmp.eq.s32.totalorder %s15, 0
      %p106 = por %p104, %p105
      %s107 = ssub.s32 %s16, %s28
      %s108 = ssub.s32 %s17, %s24
      %s109 = sor.u32 %s107, %s108
      %p110 = scmp.eq.s32.totalorder %s109, 0
      %s112 = sadd.s32 %s111, 1
      %s113 = scalar_select %p110, %s111, %s112
      %p116 = pneg %p110
      %p117 = scmp.eq.s32.totalorder %s9, 1
      %p118 = por %p116, %p117
      %p119 = scmp.ne.s32.totalorder %s111, %s114
      %p120 = scmp.eq.s32.totalorder %s9, 0
      %p121 = por %p119, %p120
      %p122 = scmp.ne.s32.totalorder %s111, %s114
      %p123 = scmp.eq.s32.totalorder %s14, 1
      %p124 = por %p122, %p123
      %p125 = scmp.ne.s32.totalorder %s114, %s115
      %p126 = scmp.eq.s32.totalorder %s14, 0
      %p127 = por %p125, %p126
      %p128 = scmp.ne.s32.totalorder %s114, %s115
      %p129 = scmp.eq.s32.totalorder %s15, 1
      %p130 = por %p128, %p129
      %p132 = scmp.ne.s32.totalorder %s115, %s131
      %p133 = scmp.eq.s32.totalorder %s15, 0
      %p134 = por %p132, %p133
      %p135 = scmp.le.s32.totalorder 1, %s9
      %p136 = scmp.lt.s32.totalorder %s9, 3
      %p137 = pnand %p135, %p136
      %p138 = pneg %p137
      // Predicated region
      $region9: #{cnn_backbone_forward.6} parent=5 // pred_check
        _
      $region10: #{cnn_backbone_forward.6} parent=5 // pred_check_branch
        %140 = sbr.rel (%p137) target = $region12
      $region11: #{cnn_backbone_forward.6} parent=5 // pred_region
        %s141 = ssub.s32 %s9, 1
        // Predicated region
        $region13: #{cnn_backbone_forward.6} parent=11 // pred_check
          %p142 = pneg %p47
        $region14: #{cnn_backbone_forward.6} parent=11 // pred_check_branch
          %144 = sbr.rel (%p142) target = $region16
        $region15: #{cnn_backbone_forward.6} parent=11 // pred_region
          %s145 = smul.u32 4, %s18
          %p146 = scmp.lt.s32.totalorder %s145, 3
          %s147 = scalar_select %p146, %s145, 3
          %s148 = smul.addr %s147, 4
          %s149 = scalar_lea.vmem %s0, %s148
          %s150 = smul.u32 4, %s18
        $region16: #{cnn_backbone_forward.6} parent=11 // pred_fallthru
          _
        // Predicated region
        $region17: #{cnn_backbone_forward.6} parent=11 // pred_check
          %p151 = pneg %p99
        $region18: #{cnn_backbone_forward.6} parent=11 // pred_check_branch
          %153 = sbr.rel (%p151) target = $region20
        $region19: #{cnn_backbone_forward.6} parent=11 // pred_region
          %s154 = smul.u32 4, %s18
          %p155 = scmp.lt.s32.totalorder %s154, 3
          %s156 = scalar_select %p155, %s154, 3
          %s157 = smul.addr %s156, 8
          %s158 = scalar_lea.vmem %s2, %s157
          %s159 = smul.u32 4, %s18
        $region20: #{cnn_backbone_forward.6} parent=11 // pred_fallthru
          _
      $region12: #{cnn_backbone_forward.6} parent=5 // pred_fallthru
        _
      %p160 = scmp.lt.s32.totalorder %s9, 2
      // Predicated region
      $region21: #{cnn_backbone_forward.6} parent=5 // pred_check
        %p161 = pneg %p160
      $region22: #{cnn_backbone_forward.6} parent=5 // pred_check_branch
        %163 = sbr.rel (%p161) target = $region24
      $region23: #{cnn_backbone_forward.6} parent=5 // pred_region
        // Predicated region
        $region25: #{cnn_backbone_forward.6} parent=23 // pred_check
          %p164 = pneg %p67
        $region26: #{cnn_backbone_forward.6} parent=23 // pred_check_branch
          %166 = sbr.rel (%p164) target = $region28
        $region27: #{cnn_backbone_forward.6} parent=23 // pred_region
          %s167 = sand.u32 %s57, 1
          %s168 = sand.u32 %s57, 1
          %s169 = smul.addr %s168, 256
          %s170 = scalar_lea.vmem [#allocation2], %s169
          %s171 = smul.u32 8, %s17
          %s172 = ssub.s32 11, %s171
          %p173 = scmp.lt.s32.totalorder %s172, 8
          %s174 = scalar_select %p173, %s172, 8
          %s175 = smul.u32 512, %s174
          %p176 = scmp.ne.s32.totalorder 0, %s175
          %s177 = smul.addr %s171, 4
          %s178 = scalar_lea.vmem %s1, %s177
          %s179 = smul.u32 %s174, 4
          // Predicated region
          $region29: #{cnn_backbone_forward.6} parent=27 // pred_check
            %p180 = pneg %p176
          $region30: #{cnn_backbone_forward.6} parent=27 // pred_check_branch
            %182 = sbr.rel (%p180) target = $region32
          $region31: #{cnn_backbone_forward.6} parent=27 // pred_region
            %p183 = scmp.lt.u32.totalorder %s179, 8
            %p184 = pneg %p183
            // Predicated region
            $region33: #{cnn_backbone_forward.6} parent=31 // pred_check
              _
            $region34: #{cnn_backbone_forward.6} parent=31 // pred_check_branch
              %186 = sbr.rel (%p183) target = $region36
            $region35: #{cnn_backbone_forward.6} parent=31 // pred_region
              %s215 = sand.u32 %s179, 7
              %p216 = scmp.eq.s32.totalorder %s215, 0
              // Predicated region
              $region48: #{cnn_backbone_forward.6} parent=35 // pred_check
                %p217 = pneg %p216
              $region49: #{cnn_backbone_forward.6} parent=35 // pred_check_branch
                %219 = sbr.rel (%p217) target = $region51
              $region50: #{cnn_backbone_forward.6} parent=35 // pred_region
                %s220 = sshrl.u32 %s179, 3
                %s221 = sshrl.u32 %s220, 3
                // While loop
                $region52: #{cnn_backbone_forward.6} parent=50 // loop_pre_header
                  _
                $region53: #{cnn_backbone_forward.6} parent=50 // loop_header
                  %s225 = sphi 0, %s227
                  %p226 = scmp.ge.s32.totalorder %s225, %s221
                  %s230 = sphi 0, %s363
                  %s231 = sphi %s178, %s366
                  %s232 = sphi %s170, %s367
                $region54: #{cnn_backbone_forward.6} parent=50 // loop_header_branch
                  %229 = sbr.rel (%p226) target = $region58
                $region55: #{cnn_backbone_forward.6} parent=50 // loop_body
                  %v233 = vld [vmem:[%s231] sm:$0xff]
                  %234 = vst [vmem:[%s232] sm:$0xff] %v233
                  %v235 = vld [vmem:[%s231 + $0x8] sm:$0xff]
                  %236 = vst [vmem:[%s232 + $0x8] sm:$0xff] %v235
                  %v237 = vld [vmem:[%s231 + $0x10] sm:$0xff]
                  %238 = vst [vmem:[%s232 + $0x10] sm:$0xff] %v237
                  %v239 = vld [vmem:[%s231 + $0x18] sm:$0xff]
                  %240 = vst [vmem:[%s232 + $0x18] sm:$0xff] %v239
                  %v241 = vld [vmem:[%s231 + $0x20] sm:$0xff]
                  %242 = vst [vmem:[%s232 + $0x20] sm:$0xff] %v241
                  %v243 = vld [vmem:[%s231 + $0x28] sm:$0xff]
                  %244 = vst [vmem:[%s232 + $0x28] sm:$0xff] %v243
                  %v245 = vld [vmem:[%s231 + $0x30] sm:$0xff]
                  %246 = vst [vmem:[%s232 + $0x30] sm:$0xff] %v245
                  %v247 = vld [vmem:[%s231 + $0x38] sm:$0xff]
                  %248 = vst [vmem:[%s232 + $0x38] sm:$0xff] %v247
                  %v249 = vld [vmem:[%s231 + $0x2c] sm:$0xff]
                  %250 = vst [vmem:[%s232 + $0x20] sm:$0xff] %v249
                  %v251 = vld [vmem:[%s231 + $0x34] sm:$0xff]
                  %252 = vst [vmem:[%s232 + $0x28] sm:$0xff] %v251
                  %v253 = vld [vmem:[%s231 + $0x3c] sm:$0xff]
                  %254 = vst [vmem:[%s232 + $0x30] sm:$0xff] %v253
                  %v255 = vld [vmem:[%s231 + $0x44] sm:$0xff]
                  %256 = vst [vmem:[%s232 + $0x38] sm:$0xff] %v255
                  %v257 = vld [vmem:[%s231 + $0x4c] sm:$0xff]
                  %258 = vst [vmem:[%s232 + $0x40] sm:$0xff] %v257
                  %v259 = vld [vmem:[%s231 + $0x54] sm:$0xff]
                  %260 = vst [vmem:[%s232 + $0x48] sm:$0xff] %v259
                  %v261 = vld [vmem:[%s231 + $0x5c] sm:$0xff]
                  %262 = vst [vmem:[%s232 + $0x50] sm:$0xff] %v261
                  %v263 = vld [vmem:[%s231 + $0x64] sm:$0xff]
                  %264 = vst [vmem:[%s232 + $0x58] sm:$0xff] %v263
                  %v265 = vld [vmem:[%s231 + $0x58] sm:$0xff]
                  %266 = vst [vmem:[%s232 + $0x40] sm:$0xff] %v265
                  %v267 = vld [vmem:[%s231 + $0x60] sm:$0xff]
                  %268 = vst [vmem:[%s232 + $0x48] sm:$0xff] %v267
                  %v269 = vld [vmem:[%s231 + $0x68] sm:$0xff]
                  %270 = vst [vmem:[%s232 + $0x50] sm:$0xff] %v269
                  %v271 = vld [vmem:[%s231 + $0x70] sm:$0xff]
                  %272 = vst [vmem:[%s232 + $0x58] sm:$0xff] %v271
                  %v273 = vld [vmem:[%s231 + $0x78] sm:$0xff]
                  %274 = vst [vmem:[%s232 + $0x60] sm:$0xff] %v273
                  %v275 = vld [vmem:[%s231 + $0x80] sm:$0xff]
                  %276 = vst [vmem:[%s232 + $0x68] sm:$0xff] %v275
                  %v277 = vld [vmem:[%s231 + $0x88] sm:$0xff]
                  %278 = vst [vmem:[%s232 + $0x70] sm:$0xff] %v277
                  %v279 = vld [vmem:[%s231 + $0x90] sm:$0xff]
                  %280 = vst [vmem:[%s232 + $0x78] sm:$0xff] %v279
                  %v281 = vld [vmem:[%s231 + $0x84] sm:$0xff]
                  %282 = vst [vmem:[%s232 + $0x60] sm:$0xff] %v281
                  %v283 = vld [vmem:[%s231 + $0x8c] sm:$0xff]
                  %284 = vst [vmem:[%s232 + $0x68] sm:$0xff] %v283
                  %v285 = vld [vmem:[%s231 + $0x94] sm:$0xff]
                  %286 = vst [vmem:[%s232 + $0x70] sm:$0xff] %v285
                  %v287 = vld [vmem:[%s231 + $0x9c] sm:$0xff]
                  %288 = vst [vmem:[%s232 + $0x78] sm:$0xff] %v287
                  %v289 = vld [vmem:[%s231 + $0xa4] sm:$0xff]
                  %290 = vst [vmem:[%s232 + $0x80] sm:$0xff] %v289
                  %v291 = vld [vmem:[%s231 + $0xac] sm:$0xff]
                  %292 = vst [vmem:[%s232 + $0x88] sm:$0xff] %v291
                  %v293 = vld [vmem:[%s231 + $0xb4] sm:$0xff]
                  %294 = vst [vmem:[%s232 + $0x90] sm:$0xff] %v293
                  %v295 = vld [vmem:[%s231 + $0xbc] sm:$0xff]
                  %296 = vst [vmem:[%s232 + $0x98] sm:$0xff] %v295
                  %v297 = vld [vmem:[%s231 + $0xb0] sm:$0xff]
                  %298 = vst [vmem:[%s232 + $0x80] sm:$0xff] %v297
                  %v299 = vld [vmem:[%s231 + $0xb8] sm:$0xff]
                  %300 = vst [vmem:[%s232 + $0x88] sm:$0xff] %v299
                  %v301 = vld [vmem:[%s231 + $0xc0] sm:$0xff]
                  %302 = vst [vmem:[%s232 + $0x90] sm:$0xff] %v301
                  %v303 = vld [vmem:[%s231 + $0xc8] sm:$0xff]
                  %304 = vst [vmem:[%s232 + $0x98] sm:$0xff] %v303
                  %v305 = vld [vmem:[%s231 + $0xd0] sm:$0xff]
                  %306 = vst [vmem:[%s232 + $0xa0] sm:$0xff] %v305
                  %v307 = vld [vmem:[%s231 + $0xd8] sm:$0xff]
                  %308 = vst [vmem:[%s232 + $0xa8] sm:$0xff] %v307
                  %v309 = vld [vmem:[%s231 + $0xe0] sm:$0xff]
                  %310 = vst [vmem:[%s232 + $0xb0] sm:$0xff] %v309
                  %v311 = vld [vmem:[%s231 + $0xe8] sm:$0xff]
                  %312 = vst [vmem:[%s232 + $0xb8] sm:$0xff] %v311
                  %v313 = vld [vmem:[%s231 + $0xdc] sm:$0xff]
                  %314 = vst [vmem:[%s232 + $0xa0] sm:$0xff] %v313
                  %v315 = vld [vmem:[%s231 + $0xe4] sm:$0xff]
                  %316 = vst [vmem:[%s232 + $0xa8] sm:$0xff] %v315
                  %v317 = vld [vmem:[%s231 + $0xec] sm:$0xff]
                  %318 = vst [vmem:[%s232 + $0xb0] sm:$0xff] %v317
                  %v319 = vld [vmem:[%s231 + $0xf4] sm:$0xff]
                  %320 = vst [vmem:[%s232 + $0xb8] sm:$0xff] %v319
                  %v321 = vld [vmem:[%s231 + $0xfc] sm:$0xff]
                  %322 = vst [vmem:[%s232 + $0xc0] sm:$0xff] %v321
                  %v323 = vld [vmem:[%s231 + $0x104] sm:$0xff]
                  %324 = vst [vmem:[%s232 + $0xc8] sm:$0xff] %v323
                  %v325 = vld [vmem:[%s231 + $0x10c] sm:$0xff]
                  %326 = vst [vmem:[%s232 + $0xd0] sm:$0xff] %v325
                  %v327 = vld [vmem:[%s231 + $0x114] sm:$0xff]
                  %328 = vst [vmem:[%s232 + $0xd8] sm:$0xff] %v327
                  %v329 = vld [vmem:[%s231 + $0x108] sm:$0xff]
                  %330 = vst [vmem:[%s232 + $0xc0] sm:$0xff] %v329
                  %v331 = vld [vmem:[%s231 + $0x110] sm:$0xff]
                  %332 = vst [vmem:[%s232 + $0xc8] sm:$0xff] %v331
                  %v333 = vld [vmem:[%s231 + $0x118] sm:$0xff]
                  %334 = vst [vmem:[%s232 + $0xd0] sm:$0xff] %v333
                  %v335 = vld [vmem:[%s231 + $0x120] sm:$0xff]
                  %336 = vst [vmem:[%s232 + $0xd8] sm:$0xff] %v335
                  %v337 = vld [vmem:[%s231 + $0x128] sm:$0xff]
                  %338 = vst [vmem:[%s232 + $0xe0] sm:$0xff] %v337
                  %v339 = vld [vmem:[%s231 + $0x130] sm:$0xff]
                  %340 = vst [vmem:[%s232 + $0xe8] sm:$0xff] %v339
                  %v341 = vld [vmem:[%s231 + $0x138] sm:$0xff]
                  %342 = vst [vmem:[%s232 + $0xf0] sm:$0xff] %v341
                  %v343 = vld [vmem:[%s231 + $0x140] sm:$0xff]
                  %344 = vst [vmem:[%s232 + $0xf8] sm:$0xff] %v343
                  %v345 = vld [vmem:[%s231 + $0x134] sm:$0xff]
                  %346 = vst [vmem:[%s232 + $0xe0] sm:$0xff] %v345
                  %v347 = vld [vmem:[%s231 + $0x13c] sm:$0xff]
                  %348 = vst [vmem:[%s232 + $0xe8] sm:$0xff] %v347
                  %v349 = vld [vmem:[%s231 + $0x144] sm:$0xff]
                  %350 = vst [vmem:[%s232 + $0xf0] sm:$0xff] %v349
                  %v351 = vld [vmem:[%s231 + $0x14c] sm:$0xff]
                  %352 = vst [vmem:[%s232 + $0xf8] sm:$0xff] %v351
                  %v353 = vld [vmem:[%s231 + $0x154] sm:$0xff]
                  %354 = vst [vmem:[%s232 + $0x100] sm:$0xff] %v353
                  %v355 = vld [vmem:[%s231 + $0x15c] sm:$0xff]
                  %356 = vst [vmem:[%s232 + $0x108] sm:$0xff] %v355
                  %v357 = vld [vmem:[%s231 + $0x164] sm:$0xff]
                  %358 = vst [vmem:[%s232 + $0x110] sm:$0xff] %v357
                  %v359 = vld [vmem:[%s231 + $0x16c] sm:$0xff]
                  %360 = vst [vmem:[%s232 + $0x118] sm:$0xff] %v359
                  %s361 = sadd.s32 1, %s230
                  %p362 = scmp.ge.s32.totalorder %s361, %s221
                  %s363 = scalar_select %p362, 0, %s361
                  %s364 = smul.u32 %s363, 64
                  %s365 = smul.u32 %s363, 64
                  %s366 = scalar_lea.vmem %s178, %s364
                  %s367 = scalar_lea.vmem %s170, %s365 [#allocation2]
                $region56: #{cnn_backbone_forward.6} parent=50 // loop_footer
                  %s227 = sadd.s32 %s225, 1
                $region57: #{cnn_backbone_forward.6} parent=50 // loop_footer_branch
                  %224 = sbr.rel target = $region53
                $region58: #{cnn_backbone_forward.6} parent=50 // loop_exit
                  _
                %s368 = sshrl.u32 %s220, 3
                %s369 = sand.u32 %s220, 7
                %s370 = smul.u32 %s368, 8
                %s371 = smul.u32 128, %s370
                %s372 = sshra.s32 %s371, 4
                %s373 = scalar_lea.vmem %s178, %s372
                %s374 = smul.u32 128, %s370
                %s375 = sshra.s32 %s374, 4
                %s376 = scalar_lea.vmem %s170, %s375 [#allocation2]
                // While loop
                $region59: #{cnn_backbone_forward.6} parent=50 // loop_pre_header
                  _
                $region60: #{cnn_backbone_forward.6} parent=50 // loop_header
                  %s380 = sphi 0, %s382
                  %p381 = scmp.ge.s32.totalorder %s380, %s369
                  %s385 = sphi 0, %s406
                  %s386 = sphi %s373, %s409
                  %s387 = sphi %s376, %s410
                $region61: #{cnn_backbone_forward.6} parent=50 // loop_header_branch
                  %384 = sbr.rel (%p381) target = $region65
                $region62: #{cnn_backbone_forward.6} parent=50 // loop_body
                  %v388 = vld [vmem:[%s386] sm:$0xff]
                  %389 = vst [vmem:[%s387] sm:$0xff] %v388
                  %v390 = vld [vmem:[%s386 + $0x2c] sm:$0xff]
                  %391 = vst [vmem:[%s387 + $0x20] sm:$0xff] %v390
                  %v392 = vld [vmem:[%s386 + $0x58] sm:$0xff]
                  %393 = vst [vmem:[%s387 + $0x40] sm:$0xff] %v392
                  %v394 = vld [vmem:[%s386 + $0x84] sm:$0xff]
                  %395 = vst [vmem:[%s387 + $0x60] sm:$0xff] %v394
                  %v396 = vld [vmem:[%s386 + $0xb0] sm:$0xff]
                  %397 = vst [vmem:[%s387 + $0x80] sm:$0xff] %v396
                  %v398 = vld [vmem:[%s386 + $0xdc] sm:$0xff]
                  %399 = vst [vmem:[%s387 + $0xa0] sm:$0xff] %v398
                  %v400 = vld [vmem:[%s386 + $0x108] sm:$0xff]
                  %401 = vst [vmem:[%s387 + $0xc0] sm:$0xff] %v400
                  %v402 = vld [vmem:[%s386 + $0x134] sm:$0xff]
                  %403 = vst [vmem:[%s387 + $0xe0] sm:$0xff] %v402
                  %s404 = sadd.s32 1, %s385
                  %p405 = scmp.ge.s32.totalorder %s404, %s369
                  %s406 = scalar_select %p405, 0, %s404
                  %s407 = smul.u32 %s406, 8
                  %s408 = smul.u32 %s406, 8
                  %s409 = scalar_lea.vmem %s373, %s407
                  %s410 = scalar_lea.vmem %s376, %s408 [#allocation2]
                $region63: #{cnn_backbone_forward.6} parent=50 // loop_footer
                  %s382 = sadd.s32 %s380, 1
                $region64: #{cnn_backbone_forward.6} parent=50 // loop_footer_branch
                  %379 = sbr.rel target = $region60
                $region65: #{cnn_backbone_forward.6} parent=50 // loop_exit
                  _
              $region51: #{cnn_backbone_forward.6} parent=35 // pred_fallthru
                _
              %p411 = pneg %p216
              // Predicated region
              $region66: #{cnn_backbone_forward.6} parent=35 // pred_check
                _
              $region67: #{cnn_backbone_forward.6} parent=35 // pred_check_branch
                %413 = sbr.rel (%p216) target = $region69
              $region68: #{cnn_backbone_forward.6} parent=35 // pred_region
                %s414 = sand.u32 %s179, 7
                %s415 = ssub.s32 %s179, %s414
                %s416 = scalar_lea.vmem %s178, %s415
                %s417 = ssub.s32 %s179, %s414
                %s418 = scalar_lea.vmem %s170, %s417 [#allocation2]
                %s419 = sshrl.u32 %s179, 3
                %s420 = sshrl.u32 %s419, 3
                // While loop
                $region70: #{cnn_backbone_forward.6} parent=68 // loop_pre_header
                  _
                $region71: #{cnn_backbone_forward.6} parent=68 // loop_header
                  %s424 = sphi 0, %s426
                  %p425 = scmp.ge.s32.totalorder %s424, %s420
                  %s429 = sphi 0, %s562
                  %s430 = sphi %s178, %s565
                  %s431 = sphi %s170, %s566
                $region72: #{cnn_backbone_forward.6} parent=68 // loop_header_branch
                  %428 = sbr.rel (%p425) target = $region76
                $region73: #{cnn_backbone_forward.6} parent=68 // loop_body
                  %v432 = vld [vmem:[%s430] sm:$0xff]
                  %433 = vst [vmem:[%s431] sm:$0xff] %v432
                  %v434 = vld [vmem:[%s430 + $0x8] sm:$0xff]
                  %435 = vst [vmem:[%s431 + $0x8] sm:$0xff] %v434
                  %v436 = vld [vmem:[%s430 + $0x10] sm:$0xff]
                  %437 = vst [vmem:[%s431 + $0x10] sm:$0xff] %v436
                  %v438 = vld [vmem:[%s430 + $0x18] sm:$0xff]
                  %439 = vst [vmem:[%s431 + $0x18] sm:$0xff] %v438
                  %v440 = vld [vmem:[%s430 + $0x20] sm:$0xff]
                  %441 = vst [vmem:[%s431 + $0x20] sm:$0xff] %v440
                  %v442 = vld [vmem:[%s430 + $0x28] sm:$0xff]
                  %443 = vst [vmem:[%s431 + $0x28] sm:$0xff] %v442
                  %v444 = vld [vmem:[%s430 + $0x30] sm:$0xff]
                  %445 = vst [vmem:[%s431 + $0x30] sm:$0xff] %v444
                  %v446 = vld [vmem:[%s430 + $0x38] sm:$0xff]
                  %447 = vst [vmem:[%s431 + $0x38] sm:$0xff] %v446
                  %v448 = vld [vmem:[%s430 + $0x2c] sm:$0xff]
                  %449 = vst [vmem:[%s431 + $0x20] sm:$0xff] %v448
                  %v450 = vld [vmem:[%s430 + $0x34] sm:$0xff]
                  %451 = vst [vmem:[%s431 + $0x28] sm:$0xff] %v450
                  %v452 = vld [vmem:[%s430 + $0x3c] sm:$0xff]
                  %453 = vst [vmem:[%s431 + $0x30] sm:$0xff] %v452
                  %v454 = vld [vmem:[%s430 + $0x44] sm:$0xff]
                  %455 = vst [vmem:[%s431 + $0x38] sm:$0xff] %v454
                  %v456 = vld [vmem:[%s430 + $0x4c] sm:$0xff]
                  %457 = vst [vmem:[%s431 + $0x40] sm:$0xff] %v456
                  %v458 = vld [vmem:[%s430 + $0x54] sm:$0xff]
                  %459 = vst [vmem:[%s431 + $0x48] sm:$0xff] %v458
                  %v460 = vld [vmem:[%s430 + $0x5c] sm:$0xff]
                  %461 = vst [vmem:[%s431 + $0x50] sm:$0xff] %v460
                  %v462 = vld [vmem:[%s430 + $0x64] sm:$0xff]
                  %463 = vst [vmem:[%s431 + $0x58] sm:$0xff] %v462
                  %v464 = vld [vmem:[%s430 + $0x58] sm:$0xff]
                  %465 = vst [vmem:[%s431 + $0x40] sm:$0xff] %v464
                  %v466 = vld [vmem:[%s430 + $0x60] sm:$0xff]
                  %467 = vst [vmem:[%s431 + $0x48] sm:$0xff] %v466
                  %v468 = vld [vmem:[%s430 + $0x68] sm:$0xff]
                  %469 = vst [vmem:[%s431 + $0x50] sm:$0xff] %v468
                  %v470 = vld [vmem:[%s430 + $0x70] sm:$0xff]
                  %471 = vst [vmem:[%s431 + $0x58] sm:$0xff] %v470
                  %v472 = vld [vmem:[%s430 + $0x78] sm:$0xff]
                  %473 = vst [vmem:[%s431 + $0x60] sm:$0xff] %v472
                  %v474 = vld [vmem:[%s430 + $0x80] sm:$0xff]
                  %475 = vst [vmem:[%s431 + $0x68] sm:$0xff] %v474
                  %v476 = vld [vmem:[%s430 + $0x88] sm:$0xff]
                  %477 = vst [vmem:[%s431 + $0x70] sm:$0xff] %v476
                  %v478 = vld [vmem:[%s430 + $0x90] sm:$0xff]
                  %479 = vst [vmem:[%s431 + $0x78] sm:$0xff] %v478
                  %v480 = vld [vmem:[%s430 + $0x84] sm:$0xff]
                  %481 = vst [vmem:[%s431 + $0x60] sm:$0xff] %v480
                  %v482 = vld [vmem:[%s430 + $0x8c] sm:$0xff]
                  %483 = vst [vmem:[%s431 + $0x68] sm:$0xff] %v482
                  %v484 = vld [vmem:[%s430 + $0x94] sm:$0xff]
                  %485 = vst [vmem:[%s431 + $0x70] sm:$0xff] %v484
                  %v486 = vld [vmem:[%s430 + $0x9c] sm:$0xff]
                  %487 = vst [vmem:[%s431 + $0x78] sm:$0xff] %v486
                  %v488 = vld [vmem:[%s430 + $0xa4] sm:$0xff]
                  %489 = vst [vmem:[%s431 + $0x80] sm:$0xff] %v488
                  %v490 = vld [vmem:[%s430 + $0xac] sm:$0xff]
                  %491 = vst [vmem:[%s431 + $0x88] sm:$0xff] %v490
                  %v492 = vld [vmem:[%s430 + $0xb4] sm:$0xff]
                  %493 = vst [vmem:[%s431 + $0x90] sm:$0xff] %v492
                  %v494 = vld [vmem:[%s430 + $0xbc] sm:$0xff]
                  %495 = vst [vmem:[%s431 + $0x98] sm:$0xff] %v494
                  %v496 = vld [vmem:[%s430 + $0xb0] sm:$0xff]
                  %497 = vst [vmem:[%s431 + $0x80] sm:$0xff] %v496
                  %v498 = vld [vmem:[%s430 + $0xb8] sm:$0xff]
                  %499 = vst [vmem:[%s431 + $0x88] sm:$0xff] %v498
                  %v500 = vld [vmem:[%s430 + $0xc0] sm:$0xff]
                  %501 = vst [vmem:[%s431 + $0x90] sm:$0xff] %v500
                  %v502 = vld [vmem:[%s430 + $0xc8] sm:$0xff]
                  %503 = vst [vmem:[%s431 + $0x98] sm:$0xff] %v502
                  %v504 = vld [vmem:[%s430 + $0xd0] sm:$0xff]
                  %505 = vst [vmem:[%s431 + $0xa0] sm:$0xff] %v504
                  %v506 = vld [vmem:[%s430 + $0xd8] sm:$0xff]
                  %507 = vst [vmem:[%s431 + $0xa8] sm:$0xff] %v506
                  %v508 = vld [vmem:[%s430 + $0xe0] sm:$0xff]
                  %509 = vst [vmem:[%s431 + $0xb0] sm:$0xff] %v508
                  %v510 = vld [vmem:[%s430 + $0xe8] sm:$0xff]
                  %511 = vst [vmem:[%s431 + $0xb8] sm:$0xff] %v510
                  %v512 = vld [vmem:[%s430 + $0xdc] sm:$0xff]
                  %513 = vst [vmem:[%s431 + $0xa0] sm:$0xff] %v512
                  %v514 = vld [vmem:[%s430 + $0xe4] sm:$0xff]
                  %515 = vst [vmem:[%s431 + $0xa8] sm:$0xff] %v514
                  %v516 = vld [vmem:[%s430 + $0xec] sm:$0xff]
                  %517 = vst [vmem:[%s431 + $0xb0] sm:$0xff] %v516
                  %v518 = vld [vmem:[%s430 + $0xf4] sm:$0xff]
                  %519 = vst [vmem:[%s431 + $0xb8] sm:$0xff] %v518
                  %v520 = vld [vmem:[%s430 + $0xfc] sm:$0xff]
                  %521 = vst [vmem:[%s431 + $0xc0] sm:$0xff] %v520
                  %v522 = vld [vmem:[%s430 + $0x104] sm:$0xff]
                  %523 = vst [vmem:[%s431 + $0xc8] sm:$0xff] %v522
                  %v524 = vld [vmem:[%s430 + $0x10c] sm:$0xff]
                  %525 = vst [vmem:[%s431 + $0xd0] sm:$0xff] %v524
                  %v526 = vld [vmem:[%s430 + $0x114] sm:$0xff]
                  %527 = vst [vmem:[%s431 + $0xd8] sm:$0xff] %v526
                  %v528 = vld [vmem:[%s430 + $0x108] sm:$0xff]
                  %529 = vst [vmem:[%s431 + $0xc0] sm:$0xff] %v528
                  %v530 = vld [vmem:[%s430 + $0x110] sm:$0xff]
                  %531 = vst [vmem:[%s431 + $0xc8] sm:$0xff] %v530
                  %v532 = vld [vmem:[%s430 + $0x118] sm:$0xff]
                  %533 = vst [vmem:[%s431 + $0xd0] sm:$0xff] %v532
                  %v534 = vld [vmem:[%s430 + $0x120] sm:$0xff]
                  %535 = vst [vmem:[%s431 + $0xd8] sm:$0xff] %v534
                  %v536 = vld [vmem:[%s430 + $0x128] sm:$0xff]
                  %537 = vst [vmem:[%s431 + $0xe0] sm:$0xff] %v536
                  %v538 = vld [vmem:[%s430 + $0x130] sm:$0xff]
                  %539 = vst [vmem:[%s431 + $0xe8] sm:$0xff] %v538
                  %v540 = vld [vmem:[%s430 + $0x138] sm:$0xff]
                  %541 = vst [vmem:[%s431 + $0xf0] sm:$0xff] %v540
                  %v542 = vld [vmem:[%s430 + $0x140] sm:$0xff]
                  %543 = vst [vmem:[%s431 + $0xf8] sm:$0xff] %v542
                  %v544 = vld [vmem:[%s430 + $0x134] sm:$0xff]
                  %545 = vst [vmem:[%s431 + $0xe0] sm:$0xff] %v544
                  %v546 = vld [vmem:[%s430 + $0x13c] sm:$0xff]
                  %547 = vst [vmem:[%s431 + $0xe8] sm:$0xff] %v546
                  %v548 = vld [vmem:[%s430 + $0x144] sm:$0xff]
                  %549 = vst [vmem:[%s431 + $0xf0] sm:$0xff] %v548
                  %v550 = vld [vmem:[%s430 + $0x14c] sm:$0xff]
                  %551 = vst [vmem:[%s431 + $0xf8] sm:$0xff] %v550
                  %v552 = vld [vmem:[%s430 + $0x154] sm:$0xff]
                  %553 = vst [vmem:[%s431 + $0x100] sm:$0xff] %v552
                  %v554 = vld [vmem:[%s430 + $0x15c] sm:$0xff]
                  %555 = vst [vmem:[%s431 + $0x108] sm:$0xff] %v554
                  %v556 = vld [vmem:[%s430 + $0x164] sm:$0xff]
                  %557 = vst [vmem:[%s431 + $0x110] sm:$0xff] %v556
                  %v558 = vld [vmem:[%s430 + $0x16c] sm:$0xff]
                  %559 = vst [vmem:[%s431 + $0x118] sm:$0xff] %v558
                  %s560 = sadd.s32 1, %s429
                  %p561 = scmp.ge.s32.totalorder %s560, %s420
                  %s562 = scalar_select %p561, 0, %s560
                  %s563 = smul.u32 %s562, 64
                  %s564 = smul.u32 %s562, 64
                  %s565 = scalar_lea.vmem %s178, %s563
                  %s566 = scalar_lea.vmem %s170, %s564 [#allocation2]
                $region74: #{cnn_backbone_forward.6} parent=68 // loop_footer
                  %s426 = sadd.s32 %s424, 1
                $region75: #{cnn_backbone_forward.6} parent=68 // loop_footer_branch
                  %423 = sbr.rel target = $region71
                $region76: #{cnn_backbone_forward.6} parent=68 // loop_exit
                  _
                %s567 = sshrl.u32 %s419, 3
                %s568 = sand.u32 %s419, 7
                %s569 = smul.u32 %s567, 8
                %s570 = smul.u32 128, %s569
                %s571 = sshra.s32 %s570, 4
                %s572 = scalar_lea.vmem %s178, %s571
                %s573 = smul.u32 128, %s569
                %s574 = sshra.s32 %s573, 4
                %s575 = scalar_lea.vmem %s170, %s574 [#allocation2]
                // While loop
                $region77: #{cnn_backbone_forward.6} parent=68 // loop_pre_header
                  _
                $region78: #{cnn_backbone_forward.6} parent=68 // loop_header
                  %s579 = sphi 0, %s581
                  %p580 = scmp.ge.s32.totalorder %s579, %s568
                  %s584 = sphi 0, %s605
                  %s585 = sphi %s572, %s608
                  %s586 = sphi %s575, %s609
                $region79: #{cnn_backbone_forward.6} parent=68 // loop_header_branch
                  %583 = sbr.rel (%p580) target = $region83
                $region80: #{cnn_backbone_forward.6} parent=68 // loop_body
                  %v587 = vld [vmem:[%s585] sm:$0xff]
                  %588 = vst [vmem:[%s586] sm:$0xff] %v587
                  %v589 = vld [vmem:[%s585 + $0x2c] sm:$0xff]
                  %590 = vst [vmem:[%s586 + $0x20] sm:$0xff] %v589
                  %v591 = vld [vmem:[%s585 + $0x58] sm:$0xff]
                  %592 = vst [vmem:[%s586 + $0x40] sm:$0xff] %v591
                  %v593 = vld [vmem:[%s585 + $0x84] sm:$0xff]
                  %594 = vst [vmem:[%s586 + $0x60] sm:$0xff] %v593
                  %v595 = vld [vmem:[%s585 + $0xb0] sm:$0xff]
                  %596 = vst [vmem:[%s586 + $0x80] sm:$0xff] %v595
                  %v597 = vld [vmem:[%s585 + $0xdc] sm:$0xff]
                  %598 = vst [vmem:[%s586 + $0xa0] sm:$0xff] %v597
                  %v599 = vld [vmem:[%s585 + $0x108] sm:$0xff]
                  %600 = vst [vmem:[%s586 + $0xc0] sm:$0xff] %v599
                  %v601 = vld [vmem:[%s585 + $0x134] sm:$0xff]
                  %602 = vst [vmem:[%s586 + $0xe0] sm:$0xff] %v601
                  %s603 = sadd.s32 1, %s584
                  %p604 = scmp.ge.s32.totalorder %s603, %s568
                  %s605 = scalar_select %p604, 0, %s603
                  %s606 = smul.u32 %s605, 8
                  %s607 = smul.u32 %s605, 8
                  %s608 = scalar_lea.vmem %s572, %s606
                  %s609 = scalar_lea.vmem %s575, %s607 [#allocation2]
                $region81: #{cnn_backbone_forward.6} parent=68 // loop_footer
                  %s581 = sadd.s32 %s579, 1
                $region82: #{cnn_backbone_forward.6} parent=68 // loop_footer_branch
                  %578 = sbr.rel target = $region78
                $region83: #{cnn_backbone_forward.6} parent=68 // loop_exit
                  _
                %s610 = sshllo.u32 0, %s414
                loop: start=0, step=1, limit=1
                $region84: #{cnn_backbone_forward.6} parent=68 // loop_pre_header
                  _
                $region85: #{cnn_backbone_forward.6} parent=68 // loop_header
                  %s612 = sphi 0, %s616
                  %p613 = scmp.ge.s32.totalorder %s612, 1
                  %s617 = sphi %s416, %s416
                  %s618 = sphi %s418, %s418
                $region86: #{cnn_backbone_forward.6} parent=68 // loop_header_branch
                  %615 = sbr.rel (%p613) target = $region90
                $region87: #{cnn_backbone_forward.6} parent=68 // loop_body
                  %v619 = vld [vmem:[%s617] sm:%s610]
                  %620 = vst [vmem:[%s618] sm:%s610] %v619
                  %v621 = vld [vmem:[%s617 + $0x2c] sm:%s610]
                  %622 = vst [vmem:[%s618 + $0x20] sm:%s610] %v621
                  %v623 = vld [vmem:[%s617 + $0x58] sm:%s610]
                  %624 = vst [vmem:[%s618 + $0x40] sm:%s610] %v623
                  %v625 = vld [vmem:[%s617 + $0x84] sm:%s610]
                  %626 = vst [vmem:[%s618 + $0x60] sm:%s610] %v625
                  %v627 = vld [vmem:[%s617 + $0xb0] sm:%s610]
                  %628 = vst [vmem:[%s618 + $0x80] sm:%s610] %v627
                  %v629 = vld [vmem:[%s617 + $0xdc] sm:%s610]
                  %630 = vst [vmem:[%s618 + $0xa0] sm:%s610] %v629
                  %v631 = vld [vmem:[%s617 + $0x108] sm:%s610]
                  %632 = vst [vmem:[%s618 + $0xc0] sm:%s610] %v631
                  %v633 = vld [vmem:[%s617 + $0x134] sm:%s610]
                  %634 = vst [vmem:[%s618 + $0xe0] sm:%s610] %v633
                $region88: #{cnn_backbone_forward.6} parent=68 // loop_footer
                  %s616 = sadd.s32 1, %s612
                $region89: #{cnn_backbone_forward.6} parent=68 // loop_footer_branch
                  %611 = sbr.rel target = $region85
                $region90: #{cnn_backbone_forward.6} parent=68 // loop_exit
                  _
              $region69: #{cnn_backbone_forward.6} parent=35 // pred_fallthru
                _
            $region36: #{cnn_backbone_forward.6} parent=31 // pred_fallthru
              _
            // Predicated region
            $region37: #{cnn_backbone_forward.6} parent=31 // pred_check
              %p187 = pneg %p183
            $region38: #{cnn_backbone_forward.6} parent=31 // pred_check_branch
              %189 = sbr.rel (%p187) target = $region40
            $region39: #{cnn_backbone_forward.6} parent=31 // pred_region
              %s190 = sshllo.u32 0, %s179
              loop: start=0, step=1, limit=1
              $region41: #{cnn_backbone_forward.6} parent=39 // loop_pre_header
                _
              $region42: #{cnn_backbone_forward.6} parent=39 // loop_header
                %s192 = sphi 0, %s196
                %p193 = scmp.ge.s32.totalorder %s192, 1
                %s197 = sphi %s178, %s178
                %s198 = sphi %s170, %s170
              $region43: #{cnn_backbone_forward.6} parent=39 // loop_header_branch
                %195 = sbr.rel (%p193) target = $region47
              $region44: #{cnn_backbone_forward.6} parent=39 // loop_body
                %v199 = vld [vmem:[%s197] sm:%s190]
                %200 = vst [vmem:[%s198] sm:%s190] %v199
                %v201 = vld [vmem:[%s197 + $0x2c] sm:%s190]
                %202 = vst [vmem:[%s198 + $0x20] sm:%s190] %v201
                %v203 = vld [vmem:[%s197 + $0x58] sm:%s190]
                %204 = vst [vmem:[%s198 + $0x40] sm:%s190] %v203
                %v205 = vld [vmem:[%s197 + $0x84] sm:%s190]
                %206 = vst [vmem:[%s198 + $0x60] sm:%s190] %v205
                %v207 = vld [vmem:[%s197 + $0xb0] sm:%s190]
                %208 = vst [vmem:[%s198 + $0x80] sm:%s190] %v207
                %v209 = vld [vmem:[%s197 + $0xdc] sm:%s190]
                %210 = vst [vmem:[%s198 + $0xa0] sm:%s190] %v209
                %v211 = vld [vmem:[%s197 + $0x108] sm:%s190]
                %212 = vst [vmem:[%s198 + $0xc0] sm:%s190] %v211
                %v213 = vld [vmem:[%s197 + $0x134] sm:%s190]
                %214 = vst [vmem:[%s198 + $0xe0] sm:%s190] %v213
              $region45: #{cnn_backbone_forward.6} parent=39 // loop_footer
                %s196 = sadd.s32 1, %s192
              $region46: #{cnn_backbone_forward.6} parent=39 // loop_footer_branch
                %191 = sbr.rel target = $region42
              $region47: #{cnn_backbone_forward.6} parent=39 // loop_exit
                _
            $region40: #{cnn_backbone_forward.6} parent=31 // pred_fallthru
              _
          $region32: #{cnn_backbone_forward.6} parent=27 // pred_fallthru
            _
          %635 = vnop
        $region28: #{cnn_backbone_forward.6} parent=23 // pred_fallthru
          _
      $region24: #{cnn_backbone_forward.6} parent=5 // pred_fallthru
        _
      %p636 = scmp.le.s32.totalorder 1, %s9
      %p637 = scmp.lt.s32.totalorder %s9, 3
      %p638 = pnand %p636, %p637
      %p639 = pneg %p638
      // Predicated region
      $region91: #{cnn_backbone_forward.6} parent=5 // pred_check
        _
      $region92: #{cnn_backbone_forward.6} parent=5 // pred_check_branch
        %641 = sbr.rel (%p638) target = $region94
      $region93: #{cnn_backbone_forward.6} parent=5 // pred_region
        %s642 = ssub.s32 %s9, 1
        %s643 = sand.u32 %s60, 1
        %s644 = sand.u32 %s60, 1
        %s645 = smul.addr %s644, 256
        %s646 = scalar_lea.vmem [#allocation2], %s645
        // Predicated region
        $region95: #{cnn_backbone_forward.6} parent=93 // pred_check
          %p647 = pneg %p73
        $region96: #{cnn_backbone_forward.6} parent=93 // pred_check_branch
          %649 = sbr.rel (%p647) target = $region98
        $region97: #{cnn_backbone_forward.6} parent=93 // pred_region
          _
        $region98: #{cnn_backbone_forward.6} parent=93 // pred_fallthru
          _
        %s650 = smul.u32 4, %s18
        %p651 = scmp.lt.s32.totalorder %s650, 3
        %s652 = scalar_select %p651, %s650, 3
        %s653 = smul.addr %s652, 4
        %s654 = scalar_lea.vmem %s0, %s653
        %p655 = pneg %p47
        %p656 = pneg %p44
        %s657 = sand.u32 %s60, 1
        %s658 = sand.u32 %s60, 1
        %s659 = smul.addr %s658, 256
        %s660 = scalar_lea.vmem [#allocation2], %s659
        %p661 = pneg %p73
        %p662 = pneg %p70
        %s663 = smul.u32 4, %s18
        %p664 = scmp.lt.s32.totalorder %s663, 3
        %s665 = scalar_select %p664, %s663, 3
        %s666 = smul.addr %s665, 8
        %s667 = scalar_lea.vmem %s2, %s666
        %p668 = pneg %p99
        %p669 = pneg %p96
        %p670 = pneg %p127
        %p671 = pneg %p124
        %s672 = sand.u32 %s114, 1
        %s673 = sand.u32 %s114, 1
        %s674 = smul.addr %s673, 128
        %s675 = scalar_lea.vmem [#allocation3], %s674
        %s676 = smul.u32 4, %s18
        %p677 = scmp.lt.s32.totalorder %s676, 3
        %s678 = scalar_select %p677, %s676, 3
        %s679 = smul.addr %s678, 4
        %s680 = scalar_lea.vmem %s0, %s679
        %s681 = smul.u32 4, %s18
        %s682 = smul.u32 8, %s19
        %s683 = ssub.s32 11, %s682
        %p684 = scmp.lt.s32.totalorder %s683, 8
        %s685 = scalar_select %p684, %s683, 8
        %s686 = smul.u32 512, %s685
        %s687 = smul.u32 4, %s18
        %p688 = scmp.lt.s32.totalorder %s687, 3
        %s689 = scalar_select %p688, %s687, 3
        %s690 = smul.addr %s689, 8
        %s691 = scalar_lea.vmem %s2, %s690
        %s692 = smul.u32 4, %s18
        %s693 = smul.u32 4, %s18
        %s694 = smul.u32 8, %s19
        %s695 = ssub.s32 11, %s694
        %p696 = scmp.lt.s32.totalorder %s695, 8
        %s697 = scalar_select %p696, %s695, 8
        %s698 = smul.u32 256, %s697
        %v700 = vld [vmem:[%s680] sm:$0xf]
        %v701 = vld [vmem:[%s680 + $0x4] sm:$0xf]
        %v702 = vld [vmem:[%s680 + $0x8] sm:$0xf]
        %v703 = vld [vmem:[%s680 + $0xc] sm:$0xf]
        %v704 = vld [vmem:[%s646] sm:$0xff]
        %v705 = vld [vmem:[%s646 + $0x8] sm:$0xff]
        %v706 = vld [vmem:[%s646 + $0x10] sm:$0xff]
        %v707 = vld [vmem:[%s646 + $0x18] sm:$0xff]
        %v708 = vld [vmem:[%s646 + $0x20] sm:$0xff]
        %v709 = vld [vmem:[%s646 + $0x28] sm:$0xff]
        %v710 = vld [vmem:[%s646 + $0x30] sm:$0xff]
        %v711 = vld [vmem:[%s646 + $0x38] sm:$0xff]
        %v712 = vld [vmem:[%s646 + $0x40] sm:$0xff]
        %v713 = vld [vmem:[%s646 + $0x48] sm:$0xff]
        %v714 = vld [vmem:[%s646 + $0x50] sm:$0xff]
        %v715 = vld [vmem:[%s646 + $0x58] sm:$0xff]
        %v716 = vld [vmem:[%s646 + $0x60] sm:$0xff]
        %v717 = vld [vmem:[%s646 + $0x68] sm:$0xff]
        %v718 = vld [vmem:[%s646 + $0x70] sm:$0xff]
        %v719 = vld [vmem:[%s646 + $0x78] sm:$0xff]
        %v720 = vld [vmem:[%s646 + $0x80] sm:$0xff]
        %v721 = vld [vmem:[%s646 + $0x88] sm:$0xff]
        %v722 = vld [vmem:[%s646 + $0x90] sm:$0xff]
        %v723 = vld [vmem:[%s646 + $0x98] sm:$0xff]
        %v724 = vld [vmem:[%s646 + $0xa0] sm:$0xff]
        %v725 = vld [vmem:[%s646 + $0xa8] sm:$0xff]
        %v726 = vld [vmem:[%s646 + $0xb0] sm:$0xff]
        %v727 = vld [vmem:[%s646 + $0xb8] sm:$0xff]
        %v728 = vld [vmem:[%s646 + $0xc0] sm:$0xff]
        %v729 = vld [vmem:[%s646 + $0xc8] sm:$0xff]
        %v730 = vld [vmem:[%s646 + $0xd0] sm:$0xff]
        %v731 = vld [vmem:[%s646 + $0xd8] sm:$0xff]
        %v732 = vld [vmem:[%s646 + $0xe0] sm:$0xff]
        %v733 = vld [vmem:[%s646 + $0xe8] sm:$0xff]
        %v734 = vld [vmem:[%s646 + $0xf0] sm:$0xff]
        %v735 = vld [vmem:[%s646 + $0xf8] sm:$0xff]
        %v736 = vld [vmem:[%s691] sm:$0xff]
        %v737 = vld [vmem:[%s691 + $0x8] sm:$0xff]
        %v738 = vld [vmem:[%s691 + $0x10] sm:$0xff]
        %v739 = vld [vmem:[%s691 + $0x18] sm:$0xff]
        %741 = vset.pattern.permute.xlu0 0
        %742 = vperm.xlu0 %741, %v736
        %v743 = vpop.permute.xlu0 %742
        %746 = vset.pattern.permute.xlu0 0
        %747 = vperm.xlu0 %746, %v737
        %v748 = vpop.permute.xlu0 %747
        %751 = vset.pattern.permute.xlu0 0
        %752 = vperm.xlu0 %751, %v738
        %v753 = vpop.permute.xlu0 %752
        %756 = vset.pattern.permute.xlu0 0
        %757 = vperm.xlu0 %756, %v739
        %v758 = vpop.permute.xlu0 %757
        %v764 = vunpack.c.l.b16 %v700
        %v765 = vunpack.c.l.b16 %v701
        %v766 = vunpack.c.l.b16 %v702
        %v767 = vunpack.c.l.b16 %v703
        %v768 = vpack.c.b16 %v765, %v764
        %v769 = vpack.c.b16 %v767, %v766
        %v802 = vunpack.c.l.b16 %v704
        %v803 = vunpack.c.h.b16 %v704
        %v804 = vunpack.c.l.b16 %v705
        %v805 = vunpack.c.h.b16 %v705
        %v806 = vunpack.c.l.b16 %v706
        %v807 = vunpack.c.h.b16 %v706
        %v808 = vunpack.c.l.b16 %v707
        %v809 = vunpack.c.h.b16 %v707
        %v810 = vunpack.c.l.b16 %v708
        %v811 = vunpack.c.h.b16 %v708
        %v812 = vunpack.c.l.b16 %v709
        %v813 = vunpack.c.h.b16 %v709
        %v814 = vunpack.c.l.b16 %v710
        %v815 = vunpack.c.h.b16 %v710
        %v816 = vunpack.c.l.b16 %v711
        %v817 = vunpack.c.h.b16 %v711
        %v818 = vunpack.c.l.b16 %v712
        %v819 = vunpack.c.h.b16 %v712
        %v820 = vunpack.c.l.b16 %v713
        %v821 = vunpack.c.h.b16 %v713
        %v822 = vunpack.c.l.b16 %v714
        %v823 = vunpack.c.h.b16 %v714
        %v824 = vunpack.c.l.b16 %v715
        %v825 = vunpack.c.h.b16 %v715
        %v826 = vunpack.c.l.b16 %v716
        %v827 = vunpack.c.h.b16 %v716
        %v828 = vunpack.c.l.b16 %v717
        %v829 = vunpack.c.h.b16 %v717
        %v830 = vunpack.c.l.b16 %v718
        %v831 = vunpack.c.h.b16 %v718
        %v832 = vunpack.c.l.b16 %v719
        %v833 = vunpack.c.h.b16 %v719
        %v834 = vunpack.c.l.b16 %v720
        %v835 = vunpack.c.h.b16 %v720
        %v836 = vunpack.c.l.b16 %v721
        %v837 = vunpack.c.h.b16 %v721
        %v838 = vunpack.c.l.b16 %v722
        %v839 = vunpack.c.h.b16 %v722
        %v840 = vunpack.c.l.b16 %v723
        %v841 = vunpack.c.h.b16 %v723
        %v842 = vunpack.c.l.b16 %v724
        %v843 = vunpack.c.h.b16 %v724
        %v844 = vunpack.c.l.b16 %v725
        %v845 = vunpack.c.h.b16 %v725
        %v846 = vunpack.c.l.b16 %v726
        %v847 = vunpack.c.h.b16 %v726
        %v848 = vunpack.c.l.b16 %v727
        %v849 = vunpack.c.h.b16 %v727
        %v850 = vunpack.c.l.b16 %v728
        %v851 = vunpack.c.h.b16 %v728
        %v852 = vunpack.c.l.b16 %v729
        %v853 = vunpack.c.h.b16 %v729
        %v854 = vunpack.c.l.b16 %v730
        %v855 = vunpack.c.h.b16 %v730
        %v856 = vunpack.c.l.b16 %v731
        %v857 = vunpack.c.h.b16 %v731
        %v858 = vunpack.c.l.b16 %v732
        %v859 = vunpack.c.h.b16 %v732
        %v860 = vunpack.c.l.b16 %v733
        %v861 = vunpack.c.h.b16 %v733
        %v862 = vunpack.c.l.b16 %v734
        %v863 = vunpack.c.h.b16 %v734
        %v864 = vunpack.c.l.b16 %v735
        %v865 = vunpack.c.h.b16 %v735
        %v866 = vpack.c.b16 %v810, %v802
        %v867 = vpack.c.b16 %v811, %v803
        %v868 = vpack.c.b16 %v812, %v804
        %v869 = vpack.c.b16 %v813, %v805
        %v870 = vpack.c.b16 %v814, %v806
        %v871 = vpack.c.b16 %v815, %v807
        %v872 = vpack.c.b16 %v816, %v808
        %v873 = vpack.c.b16 %v817, %v809
        %v874 = vpack.c.b16 %v826, %v818
        %v875 = vpack.c.b16 %v827, %v819
        %v876 = vpack.c.b16 %v828, %v820
        %v877 = vpack.c.b16 %v829, %v821
        %v878 = vpack.c.b16 %v830, %v822
        %v879 = vpack.c.b16 %v831, %v823
        %v880 = vpack.c.b16 %v832, %v824
        %v881 = vpack.c.b16 %v833, %v825
        %v882 = vpack.c.b16 %v842, %v834
        %v883 = vpack.c.b16 %v843, %v835
        %v884 = vpack.c.b16 %v844, %v836
        %v885 = vpack.c.b16 %v845, %v837
        %v886 = vpack.c.b16 %v846, %v838
        %v887 = vpack.c.b16 %v847, %v839
        %v888 = vpack.c.b16 %v848, %v840
        %v889 = vpack.c.b16 %v849, %v841
        %v890 = vpack.c.b16 %v858, %v850
        %v891 = vpack.c.b16 %v859, %v851
        %v892 = vpack.c.b16 %v860, %v852
        %v893 = vpack.c.b16 %v861, %v853
        %v894 = vpack.c.b16 %v862, %v854
        %v895 = vpack.c.b16 %v863, %v855
        %v896 = vpack.c.b16 %v864, %v856
        %v897 = vpack.c.b16 %v865, %v857
        %vm930 = vcmask 523264
        %v932 = vsel %vm930, %v768, 0
        %v935 = vsel %vm930, %v769, 0
        %937 = vmatprep.subr.bf16.mxu0 %v867
        %938 = vmatpush1.bf16.msra.mxu0 %v866
        %939 = vmatprep.subr.bf16.mxu0 %v875
        %940 = vmatpush1.bf16.msra.mxu0 %v874
        %941 = vmatprep.subr.bf16.mxu0 %v883
        %942 = vmatpush1.bf16.msra.mxu0 %v882
        %943 = vmatprep.subr.bf16.mxu0 %v891
        %944 = vmatpush1.bf16.msra.mxu0 %v890
        %945 = vmatprep.subr.bf16.mxu0 0
        %946 = vmatpush1.bf16.msra.mxu0 0
        %947 = vmatprep.subr.bf16.mxu0 0
        %948 = vmatpush1.bf16.msra.mxu0 0
        %949 = vmatprep.subr.bf16.mxu0 0
        %950 = vmatpush1.bf16.msra.mxu0 0
        %951 = vmatprep.subr.bf16.mxu0 0
        %952 = vmatpush1.bf16.msra.mxu0 0
        %953 = vmatprep.subr.bf16.mxu0 0
        %954 = vmatpush1.bf16.msra.mxu0 0
        %955 = vmatprep.subr.bf16.mxu0 0
        %956 = vmatpush1.bf16.msra.mxu0 0
        %957 = vmatprep.subr.bf16.mxu0 0
        %958 = vmatpush1.bf16.msra.mxu0 0
        %959 = vmatprep.subr.bf16.mxu0 0
        %960 = vmatpush1.bf16.msra.mxu0 0
        %961 = vmatprep.subr.bf16.mxu0 0
        %962 = vmatpush1.bf16.msra.mxu0 0
        %963 = vmatprep.subr.bf16.mxu0 0
        %964 = vmatpush1.bf16.msra.mxu0 0
        %965 = vmatprep.subr.bf16.mxu0 0
        %966 = vmatpush1.bf16.msra.mxu0 0
        %967 = vmatprep.subr.bf16.mxu0 0
        %968 = vmatpush1.bf16.msra.mxu0 0
        %969 = vmatprep.mubr.bf16.mxu0 0
        %970 = vmatmul.mubr.bf16.gmra.mrb[0].mxu0 %v932
        %v971 = vpop.f32.mrb[0].mxu0
        %v972 = vadd.f32 %v743, %v971
        %v973 = vpop.f32.mrb[0].mxu0
        %v974 = vadd.f32 %v743, %v973
        %v975 = vpop.f32.mrb[0].mxu0
        %v976 = vadd.f32 %v748, %v975
        %v977 = vpop.f32.mrb[0].mxu0
        %v978 = vadd.f32 %v748, %v977
        %979 = vmatprep.mubr.bf16.mxu0 0
        %980 = vmatmul.mubr.bf16.gmra.mrb[0].mxu0 %v935
        %v981 = vpop.f32.mrb[0].mxu0
        %v982 = vadd.f32 %v753, %v981
        %v983 = vpop.f32.mrb[0].mxu0
        %v984 = vadd.f32 %v753, %v983
        %v985 = vpop.f32.mrb[0].mxu0
        %v986 = vadd.f32 %v758, %v985
        %v987 = vpop.f32.mrb[0].mxu0
        %v988 = vadd.f32 %v758, %v987
        %989 = vdwg.mxu0
        %990 = vmatprep.subr.bf16.mxu0 %v869
        %991 = vmatpush1.bf16.msra.mxu0 %v868
        %992 = vmatprep.subr.bf16.mxu0 %v877
        %993 = vmatpush1.bf16.msra.mxu0 %v876
        %994 = vmatprep.subr.bf16.mxu0 %v885
        %995 = vmatpush1.bf16.msra.mxu0 %v884
        %996 = vmatprep.subr.bf16.mxu0 %v893
        %997 = vmatpush1.bf16.msra.mxu0 %v892
        %998 = vmatprep.subr.bf16.mxu0 0
        %999 = vmatpush1.bf16.msra.mxu0 0
        %1000 = vmatprep.subr.bf16.mxu0 0
        %1001 = vmatpush1.bf16.msra.mxu0 0
        %1002 = vmatprep.subr.bf16.mxu0 0
        %1003 = vmatpush1.bf16.msra.mxu0 0
        %1004 = vmatprep.subr.bf16.mxu0 0
        %1005 = vmatpush1.bf16.msra.mxu0 0
        %1006 = vmatprep.subr.bf16.mxu0 0
        %1007 = vmatpush1.bf16.msra.mxu0 0
        %1008 = vmatprep.subr.bf16.mxu0 0
        %1009 = vmatpush1.bf16.msra.mxu0 0
        %1010 = vmatprep.subr.bf16.mxu0 0
        %1011 = vmatpush1.bf16.msra.mxu0 0
        %1012 = vmatprep.subr.bf16.mxu0 0
        %1013 = vmatpush1.bf16.msra.mxu0 0
        %1014 = vmatprep.subr.bf16.mxu0 0
        %1015 = vmatpush1.bf16.msra.mxu0 0
        %1016 = vmatprep.subr.bf16.mxu0 0
        %1017 = vmatpush1.bf16.msra.mxu0 0
        %1018 = vmatprep.subr.bf16.mxu0 0
        %1019 = vmatpush1.bf16.msra.mxu0 0
        %1020 = vmatprep.subr.bf16.mxu0 0
        %1021 = vmatpush1.bf16.msra.mxu0 0
        %1022 = vmatprep.mubr.bf16.mxu0 0
        %1023 = vmatmul.mubr.bf16.gmra.mrb[0].mxu0 %v932
        %v1024 = vpop.f32.mrb[0].mxu0
        %v1025 = vadd.f32 %v743, %v1024
        %v1026 = vpop.f32.mrb[0].mxu0
        %v1027 = vadd.f32 %v743, %v1026
        %v1028 = vpop.f32.mrb[0].mxu0
        %v1029 = vadd.f32 %v748, %v1028
        %v1030 = vpop.f32.mrb[0].mxu0
        %v1031 = vadd.f32 %v748, %v1030
        %1032 = vmatprep.mubr.bf16.mxu0 0
        %1033 = vmatmul.mubr.bf16.gmra.mrb[0].mxu0 %v935
        %v1034 = vpop.f32.mrb[0].mxu0
        %v1035 = vadd.f32 %v753, %v1034
        %v1036 = vpop.f32.mrb[0].mxu0
        %v1037 = vadd.f32 %v753, %v1036
        %v1038 = vpop.f32.mrb[0].mxu0
        %v1039 = vadd.f32 %v758, %v1038
        %v1040 = vpop.f32.mrb[0].mxu0
        %v1041 = vadd.f32 %v758, %v1040
        %1042 = vdwg.mxu0
        %1043 = vmatprep.subr.bf16.mxu0 %v871
        %1044 = vmatpush1.bf16.msra.mxu0 %v870
        %1045 = vmatprep.subr.bf16.mxu0 %v879
        %1046 = vmatpush1.bf16.msra.mxu0 %v878
        %1047 = vmatprep.subr.bf16.mxu0 %v887
        %1048 = vmatpush1.bf16.msra.mxu0 %v886
        %1049 = vmatprep.subr.bf16.mxu0 %v895
        %1050 = vmatpush1.bf16.msra.mxu0 %v894
        %1051 = vmatprep.subr.bf16.mxu0 0
        %1052 = vmatpush1.bf16.msra.mxu0 0
        %1053 = vmatprep.subr.bf16.mxu0 0
        %1054 = vmatpush1.bf16.msra.mxu0 0
        %1055 = vmatprep.subr.bf16.mxu0 0
        %1056 = vmatpush1.bf16.msra.mxu0 0
        %1057 = vmatprep.subr.bf16.mxu0 0
        %1058 = vmatpush1.bf16.msra.mxu0 0
        %1059 = vmatprep.subr.bf16.mxu0 0
        %1060 = vmatpush1.bf16.msra.mxu0 0
        %1061 = vmatprep.subr.bf16.mxu0 0
        %1062 = vmatpush1.bf16.msra.mxu0 0
        %1063 = vmatprep.subr.bf16.mxu0 0
        %1064 = vmatpush1.bf16.msra.mxu0 0
        %1065 = vmatprep.subr.bf16.mxu0 0
        %1066 = vmatpush1.bf16.msra.mxu0 0
        %1067 = vmatprep.subr.bf16.mxu0 0
        %1068 = vmatpush1.bf16.msra.mxu0 0
        %1069 = vmatprep.subr.bf16.mxu0 0
        %1070 = vmatpush1.bf16.msra.mxu0 0
        %1071 = vmatprep.subr.bf16.mxu0 0
        %1072 = vmatpush1.bf16.msra.mxu0 0
        %1073 = vmatprep.subr.bf16.mxu0 0
        %1074 = vmatpush1.bf16.msra.mxu0 0
        %1075 = vmatprep.mubr.bf16.mxu0 0
        %1076 = vmatmul.mubr.bf16.gmra.mrb[0].mxu0 %v932
        %v1077 = vpop.f32.mrb[0].mxu0
        %v1078 = vadd.f32 %v743, %v1077
        %v1079 = vpop.f32.mrb[0].mxu0
        %v1080 = vadd.f32 %v743, %v1079
        %v1081 = vpop.f32.mrb[0].mxu0
        %v1082 = vadd.f32 %v748, %v1081
        %v1083 = vpop.f32.mrb[0].mxu0
        %v1084 = vadd.f32 %v748, %v1083
        %1085 = vmatprep.mubr.bf16.mxu0 0
        %1086 = vmatmul.mubr.bf16.gmra.mrb[0].mxu0 %v935
        %v1087 = vpop.f32.mrb[0].mxu0
        %v1088 = vadd.f32 %v753, %v1087
        %v1089 = vpop.f32.mrb[0].mxu0
        %v1090 = vadd.f32 %v753, %v1089
        %v1091 = vpop.f32.mrb[0].mxu0
        %v1092 = vadd.f32 %v758, %v1091
        %v1093 = vpop.f32.mrb[0].mxu0
        %v1094 = vadd.f32 %v758, %v1093
        %1095 = vdwg.mxu0
        %1096 = vmatprep.subr.bf16.mxu0 %v873
        %1097 = vmatpush1.bf16.msra.mxu0 %v872
        %1098 = vmatprep.subr.bf16.mxu0 %v881
        %1099 = vmatpush1.bf16.msra.mxu0 %v880
        %1100 = vmatprep.subr.bf16.mxu0 %v889
        %1101 = vmatpush1.bf16.msra.mxu0 %v888
        %1102 = vmatprep.subr.bf16.mxu0 %v897
        %1103 = vmatpush1.bf16.msra.mxu0 %v896
        %1104 = vmatprep.subr.bf16.mxu0 0
        %1105 = vmatpush1.bf16.msra.mxu0 0
        %1106 = vmatprep.subr.bf16.mxu0 0
        %1107 = vmatpush1.bf16.msra.mxu0 0
        %1108 = vmatprep.subr.bf16.mxu0 0
        %1109 = vmatpush1.bf16.msra.mxu0 0
        %1110 = vmatprep.subr.bf16.mxu0 0
        %1111 = vmatpush1.bf16.msra.mxu0 0
        %1112 = vmatprep.subr.bf16.mxu0 0
        %1113 = vmatpush1.bf16.msra.mxu0 0
        %1114 = vmatprep.subr.bf16.mxu0 0
        %1115 = vmatpush1.bf16.msra.mxu0 0
        %1116 = vmatprep.subr.bf16.mxu0 0
        %1117 = vmatpush1.bf16.msra.mxu0 0
        %1118 = vmatprep.subr.bf16.mxu0 0
        %1119 = vmatpush1.bf16.msra.mxu0 0
        %1120 = vmatprep.subr.bf16.mxu0 0
        %1121 = vmatpush1.bf16.msra.mxu0 0
        %1122 = vmatprep.subr.bf16.mxu0 0
        %1123 = vmatpush1.bf16.msra.mxu0 0
        %1124 = vmatprep.subr.bf16.mxu0 0
        %1125 = vmatpush1.bf16.msra.mxu0 0
        %1126 = vmatprep.subr.bf16.mxu0 0
        %1127 = vmatpush1.bf16.msra.mxu0 0
        %1128 = vmatprep.mubr.bf16.mxu0 0
        %1129 = vmatmul.mubr.bf16.gmra.mrb[0].mxu0 %v932
        %v1130 = vpop.f32.mrb[0].mxu0
        %v1131 = vadd.f32 %v743, %v1130
        %v1132 = vpop.f32.mrb[0].mxu0
        %v1133 = vadd.f32 %v743, %v1132
        %v1134 = vpop.f32.mrb[0].mxu0
        %v1135 = vadd.f32 %v748, %v1134
        %v1136 = vpop.f32.mrb[0].mxu0
        %v1137 = vadd.f32 %v748, %v1136
        %1138 = vmatprep.mubr.bf16.mxu0 0
        %1139 = vmatmul.mubr.bf16.gmra.mrb[0].mxu0 %v935
        %v1140 = vpop.f32.mrb[0].mxu0
        %v1141 = vadd.f32 %v753, %v1140
        %v1142 = vpop.f32.mrb[0].mxu0
        %v1143 = vadd.f32 %v753, %v1142
        %v1144 = vpop.f32.mrb[0].mxu0
        %v1145 = vadd.f32 %v758, %v1144
        %v1146 = vpop.f32.mrb[0].mxu0
        %v1147 = vadd.f32 %v758, %v1146
        %1148 = vdwg.mxu0
        %vm1149 = vcmp.gt.f32.partialorder %v972, 0.0
        %vm1150 = vcmp.gt.f32.partialorder %v974, 0.0
        %vm1151 = vcmp.gt.f32.partialorder %v1025, 0.0
        %vm1152 = vcmp.gt.f32.partialorder %v1027, 0.0
        %vm1153 = vcmp.gt.f32.partialorder %v1078, 0.0
        %vm1154 = vcmp.gt.f32.partialorder %v1080, 0.0
        %vm1155 = vcmp.gt.f32.partialorder %v1131, 0.0
        %vm1156 = vcmp.gt.f32.partialorder %v1133, 0.0
        %vm1157 = vcmp.gt.f32.partialorder %v976, 0.0
        %vm1158 = vcmp.gt.f32.partialorder %v978, 0.0
        %vm1159 = vcmp.gt.f32.partialorder %v1029, 0.0
        %vm1160 = vcmp.gt.f32.partialorder %v1031, 0.0
        %vm1161 = vcmp.gt.f32.partialorder %v1082, 0.0
        %vm1162 = vcmp.gt.f32.partialorder %v1084, 0.0
        %vm1163 = vcmp.gt.f32.partialorder %v1135, 0.0
        %vm1164 = vcmp.gt.f32.partialorder %v1137, 0.0
        %vm1165 = vcmp.gt.f32.partialorder %v982, 0.0
        %vm1166 = vcmp.gt.f32.partialorder %v984, 0.0
        %vm1167 = vcmp.gt.f32.partialorder %v1035, 0.0
        %vm1168 = vcmp.gt.f32.partialorder %v1037, 0.0
        %vm1169 = vcmp.gt.f32.partialorder %v1088, 0.0
        %vm1170 = vcmp.gt.f32.partialorder %v1090, 0.0
        %vm1171 = vcmp.gt.f32.partialorder %v1141, 0.0
        %vm1172 = vcmp.gt.f32.partialorder %v1143, 0.0
        %vm1173 = vcmp.gt.f32.partialorder %v986, 0.0
        %vm1174 = vcmp.gt.f32.partialorder %v988, 0.0
        %vm1175 = vcmp.gt.f32.partialorder %v1039, 0.0
        %vm1176 = vcmp.gt.f32.partialorder %v1041, 0.0
        %vm1177 = vcmp.gt.f32.partialorder %v1092, 0.0
        %vm1178 = vcmp.gt.f32.partialorder %v1094, 0.0
        %vm1179 = vcmp.gt.f32.partialorder %v1145, 0.0
        %vm1180 = vcmp.gt.f32.partialorder %v1147, 0.0
        %v1181 = vmul.f32 %v972, 0.01
        %v1182 = vmul.f32 %v974, 0.01
        %v1183 = vmul.f32 %v1025, 0.01
        %v1184 = vmul.f32 %v1027, 0.01
        %v1185 = vmul.f32 %v1078, 0.01
        %v1186 = vmul.f32 %v1080, 0.01
        %v1187 = vmul.f32 %v1131, 0.01
        %v1188 = vmul.f32 %v1133, 0.01
        %v1189 = vmul.f32 %v976, 0.01
        %v1190 = vmul.f32 %v978, 0.01
        %v1191 = vmul.f32 %v1029, 0.01
        %v1192 = vmul.f32 %v1031, 0.01
        %v1193 = vmul.f32 %v1082, 0.01
        %v1194 = vmul.f32 %v1084, 0.01
        %v1195 = vmul.f32 %v1135, 0.01
        %v1196 = vmul.f32 %v1137, 0.01
        %v1197 = vmul.f32 %v982, 0.01
        %v1198 = vmul.f32 %v984, 0.01
        %v1199 = vmul.f32 %v1035, 0.01
        %v1200 = vmul.f32 %v1037, 0.01
        %v1201 = vmul.f32 %v1088, 0.01
        %v1202 = vmul.f32 %v1090, 0.01
        %v1203 = vmul.f32 %v1141, 0.01
        %v1204 = vmul.f32 %v1143, 0.01
        %v1205 = vmul.f32 %v986, 0.01
        %v1206 = vmul.f32 %v988, 0.01
        %v1207 = vmul.f32 %v1039, 0.01
        %v1208 = vmul.f32 %v1041, 0.01
        %v1209 = vmul.f32 %v1092, 0.01
        %v1210 = vmul.f32 %v1094, 0.01
        %v1211 = vmul.f32 %v1145, 0.01
        %v1212 = vmul.f32 %v1147, 0.01
        %v1213 = vsel %vm1149, %v972, %v1181
        %v1214 = vsel %vm1150, %v974, %v1182
        %v1215 = vsel %vm1151, %v1025, %v1183
        %v1216 = vsel %vm1152, %v1027, %v1184
        %v1217 = vsel %vm1153, %v1078, %v1185
        %v1218 = vsel %vm1154, %v1080, %v1186
        %v1219 = vsel %vm1155, %v1131, %v1187
        %v1220 = vsel %vm1156, %v1133, %v1188
        %v1221 = vsel %vm1157, %v976, %v1189
        %v1222 = vsel %vm1158, %v978, %v1190
        %v1223 = vsel %vm1159, %v1029, %v1191
        %v1224 = vsel %vm1160, %v1031, %v1192
        %v1225 = vsel %vm1161, %v1082, %v1193
        %v1226 = vsel %vm1162, %v1084, %v1194
        %v1227 = vsel %vm1163, %v1135, %v1195
        %v1228 = vsel %vm1164, %v1137, %v1196
        %v1229 = vsel %vm1165, %v982, %v1197
        %v1230 = vsel %vm1166, %v984, %v1198
        %v1231 = vsel %vm1167, %v1035, %v1199
        %v1232 = vsel %vm1168, %v1037, %v1200
        %v1233 = vsel %vm1169, %v1088, %v1201
        %v1234 = vsel %vm1170, %v1090, %v1202
        %v1235 = vsel %vm1171, %v1141, %v1203
        %v1236 = vsel %vm1172, %v1143, %v1204
        %v1237 = vsel %vm1173, %v986, %v1205
        %v1238 = vsel %vm1174, %v988, %v1206
        %v1239 = vsel %vm1175, %v1039, %v1207
        %v1240 = vsel %vm1176, %v1041, %v1208
        %v1241 = vsel %vm1177, %v1092, %v1209
        %v1242 = vsel %vm1178, %v1094, %v1210
        %v1243 = vsel %vm1179, %v1145, %v1211
        %v1244 = vsel %vm1180, %v1147, %v1212
        %v1245 = vpack.c.bf16 %v1221, %v1213
        %v1246 = vpack.c.bf16 %v1222, %v1214
        %v1247 = vpack.c.bf16 %v1223, %v1215
        %v1248 = vpack.c.bf16 %v1224, %v1216
        %v1249 = vpack.c.bf16 %v1225, %v1217
        %v1250 = vpack.c.bf16 %v1226, %v1218
        %v1251 = vpack.c.bf16 %v1227, %v1219
        %v1252 = vpack.c.bf16 %v1228, %v1220
        %v1253 = vpack.c.bf16 %v1237, %v1229
        %v1254 = vpack.c.bf16 %v1238, %v1230
        %v1255 = vpack.c.bf16 %v1239, %v1231
        %v1256 = vpack.c.bf16 %v1240, %v1232
        %v1257 = vpack.c.bf16 %v1241, %v1233
        %v1258 = vpack.c.bf16 %v1242, %v1234
        %v1259 = vpack.c.bf16 %v1243, %v1235
        %v1260 = vpack.c.bf16 %v1244, %v1236
        %v1277 = vunpack.c.l.b16 %v1245
        %v1278 = vunpack.c.l.b16 %v1246
        %v1279 = vunpack.c.l.b16 %v1247
        %v1280 = vunpack.c.l.b16 %v1248
        %v1281 = vunpack.c.l.b16 %v1249
        %v1282 = vunpack.c.l.b16 %v1250
        %v1283 = vunpack.c.l.b16 %v1251
        %v1284 = vunpack.c.l.b16 %v1252
        %v1285 = vunpack.c.h.b16 %v1245
        %v1286 = vunpack.c.h.b16 %v1246
        %v1287 = vunpack.c.h.b16 %v1247
        %v1288 = vunpack.c.h.b16 %v1248
        %v1289 = vunpack.c.h.b16 %v1249
        %v1290 = vunpack.c.h.b16 %v1250
        %v1291 = vunpack.c.h.b16 %v1251
        %v1292 = vunpack.c.h.b16 %v1252
        %v1293 = vunpack.c.l.b16 %v1253
        %v1294 = vunpack.c.l.b16 %v1254
        %v1295 = vunpack.c.l.b16 %v1255
        %v1296 = vunpack.c.l.b16 %v1256
        %v1297 = vunpack.c.l.b16 %v1257
        %v1298 = vunpack.c.l.b16 %v1258
        %v1299 = vunpack.c.l.b16 %v1259
        %v1300 = vunpack.c.l.b16 %v1260
        %v1301 = vunpack.c.h.b16 %v1253
        %v1302 = vunpack.c.h.b16 %v1254
        %v1303 = vunpack.c.h.b16 %v1255
        %v1304 = vunpack.c.h.b16 %v1256
        %v1305 = vunpack.c.h.b16 %v1257
        %v1306 = vunpack.c.h.b16 %v1258
        %v1307 = vunpack.c.h.b16 %v1259
        %v1308 = vunpack.c.h.b16 %v1260
        %v1309 = vpack.c.b16 %v1278, %v1277
        %v1310 = vpack.c.b16 %v1280, %v1279
        %v1311 = vpack.c.b16 %v1282, %v1281
        %v1312 = vpack.c.b16 %v1284, %v1283
        %v1313 = vpack.c.b16 %v1286, %v1285
        %v1314 = vpack.c.b16 %v1288, %v1287
        %v1315 = vpack.c.b16 %v1290, %v1289
        %v1316 = vpack.c.b16 %v1292, %v1291
        %v1317 = vpack.c.b16 %v1294, %v1293
        %v1318 = vpack.c.b16 %v1296, %v1295
        %v1319 = vpack.c.b16 %v1298, %v1297
        %v1320 = vpack.c.b16 %v1300, %v1299
        %v1321 = vpack.c.b16 %v1302, %v1301
        %v1322 = vpack.c.b16 %v1304, %v1303
        %v1323 = vpack.c.b16 %v1306, %v1305
        %v1324 = vpack.c.b16 %v1308, %v1307
        %1341 = vst [vmem:[%s675] sm:$0xff] %v1309
        %1342 = vst [vmem:[%s675 + $0x8] sm:$0xff] %v1310
        %1343 = vst [vmem:[%s675 + $0x10] sm:$0xff] %v1311
        %1344 = vst [vmem:[%s675 + $0x18] sm:$0xff] %v1312
        %1345 = vst [vmem:[%s675 + $0x20] sm:$0xff] %v1313
        %1346 = vst [vmem:[%s675 + $0x28] sm:$0xff] %v1314
        %1347 = vst [vmem:[%s675 + $0x30] sm:$0xff] %v1315
        %1348 = vst [vmem:[%s675 + $0x38] sm:$0xff] %v1316
        %1349 = vst [vmem:[%s675 + $0x40] sm:$0xff] %v1317
        %1350 = vst [vmem:[%s675 + $0x48] sm:$0xff] %v1318
        %1351 = vst [vmem:[%s675 + $0x50] sm:$0xff] %v1319
        %1352 = vst [vmem:[%s675 + $0x58] sm:$0xff] %v1320
        %1353 = vst [vmem:[%s675 + $0x60] sm:$0xff] %v1321
        %1354 = vst [vmem:[%s675 + $0x68] sm:$0xff] %v1322
        %1355 = vst [vmem:[%s675 + $0x70] sm:$0xff] %v1323
        %1356 = vst [vmem:[%s675 + $0x78] sm:$0xff] %v1324
        %s1357 = sand.u32 %s114, 1
        %s1358 = sand.u32 %s114, 1
        %s1359 = smul.addr %s1358, 128
        %s1360 = scalar_lea.vmem [#allocation3], %s1359
        // Predicated region
        $region99: #{cnn_backbone_forward.6} parent=93 // pred_check
          %p1361 = pneg %p124
        $region100: #{cnn_backbone_forward.6} parent=93 // pred_check_branch
          %1363 = sbr.rel (%p1361) target = $region102
        $region101: #{cnn_backbone_forward.6} parent=93 // pred_region
          %s1364 = smul.u32 4, %s18
          %s1365 = smul.u32 8, %s19
          %s1366 = ssub.s32 11, %s1365
          %p1367 = scmp.lt.s32.totalorder %s1366, 8
          %s1368 = scalar_select %p1367, %s1366, 8
          %s1369 = smul.u32 256, %s1368
          %p1370 = scmp.ne.s32.totalorder 0, %s1369
          %s1371 = smul.addr %s1364, 11
          %s1372 = sadd.s32 %s1365, %s1371
          %s1373 = smul.addr %s1372, 4
          %s1374 = scalar_lea.vmem %s3, %s1373
          %s1375 = smul.u32 %s1368, 4
          // Predicated region
          $region103: #{cnn_backbone_forward.6} parent=101 // pred_check
            %p1376 = pneg %p1370
          $region104: #{cnn_backbone_forward.6} parent=101 // pred_check_branch
            %1378 = sbr.rel (%p1376) target = $region106
          $region105: #{cnn_backbone_forward.6} parent=101 // pred_region
            %p1379 = scmp.lt.u32.totalorder %s1375, 8
            %p1380 = pneg %p1379
            // Predicated region
            $region107: #{cnn_backbone_forward.6} parent=105 // pred_check
              _
            $region108: #{cnn_backbone_forward.6} parent=105 // pred_check_branch
              %1382 = sbr.rel (%p1379) target = $region110
            $region109: #{cnn_backbone_forward.6} parent=105 // pred_region
              %s1403 = sand.u32 %s1375, 7
              %p1404 = scmp.eq.s32.totalorder %s1403, 0
              // Predicated region
              $region122: #{cnn_backbone_forward.6} parent=109 // pred_check
                %p1405 = pneg %p1404
              $region123: #{cnn_backbone_forward.6} parent=109 // pred_check_branch
                %1407 = sbr.rel (%p1405) target = $region125
              $region124: #{cnn_backbone_forward.6} parent=109 // pred_region
                %s1408 = sshrl.u32 %s1375, 3
                %s1409 = sshrl.u32 %s1408, 4
                // While loop
                $region126: #{cnn_backbone_forward.6} parent=124 // loop_pre_header
                  _
                $region127: #{cnn_backbone_forward.6} parent=124 // loop_header
                  %s1413 = sphi 0, %s1415
                  %p1414 = scmp.ge.s32.totalorder %s1413, %s1409
                  %s1418 = sphi 0, %s1551
                  %s1419 = sphi %s1360, %s1554
                  %s1420 = sphi %s1374, %s1555
                $region128: #{cnn_backbone_forward.6} parent=124 // loop_header_branch
                  %1417 = sbr.rel (%p1414) target = $region132
                $region129: #{cnn_backbone_forward.6} parent=124 // loop_body
                  %v1421 = vld [vmem:[%s1419] sm:$0xff]
                  %1422 = vst [vmem:[%s1420] sm:$0xff] %v1421
                  %v1423 = vld [vmem:[%s1419 + $0x8] sm:$0xff]
                  %1424 = vst [vmem:[%s1420 + $0x8] sm:$0xff] %v1423
                  %v1425 = vld [vmem:[%s1419 + $0x10] sm:$0xff]
                  %1426 = vst [vmem:[%s1420 + $0x10] sm:$0xff] %v1425
                  %v1427 = vld [vmem:[%s1419 + $0x18] sm:$0xff]
                  %1428 = vst [vmem:[%s1420 + $0x18] sm:$0xff] %v1427
                  %v1429 = vld [vmem:[%s1419 + $0x20] sm:$0xff]
                  %1430 = vst [vmem:[%s1420 + $0x20] sm:$0xff] %v1429
                  %v1431 = vld [vmem:[%s1419 + $0x28] sm:$0xff]
                  %1432 = vst [vmem:[%s1420 + $0x28] sm:$0xff] %v1431
                  %v1433 = vld [vmem:[%s1419 + $0x30] sm:$0xff]
                  %1434 = vst [vmem:[%s1420 + $0x30] sm:$0xff] %v1433
                  %v1435 = vld [vmem:[%s1419 + $0x38] sm:$0xff]
                  %1436 = vst [vmem:[%s1420 + $0x38] sm:$0xff] %v1435
                  %v1437 = vld [vmem:[%s1419 + $0x40] sm:$0xff]
                  %1438 = vst [vmem:[%s1420 + $0x40] sm:$0xff] %v1437
                  %v1439 = vld [vmem:[%s1419 + $0x48] sm:$0xff]
                  %1440 = vst [vmem:[%s1420 + $0x48] sm:$0xff] %v1439
                  %v1441 = vld [vmem:[%s1419 + $0x50] sm:$0xff]
                  %1442 = vst [vmem:[%s1420 + $0x50] sm:$0xff] %v1441
                  %v1443 = vld [vmem:[%s1419 + $0x58] sm:$0xff]
                  %1444 = vst [vmem:[%s1420 + $0x58] sm:$0xff] %v1443
                  %v1445 = vld [vmem:[%s1419 + $0x60] sm:$0xff]
                  %1446 = vst [vmem:[%s1420 + $0x60] sm:$0xff] %v1445
                  %v1447 = vld [vmem:[%s1419 + $0x68] sm:$0xff]
                  %1448 = vst [vmem:[%s1420 + $0x68] sm:$0xff] %v1447
                  %v1449 = vld [vmem:[%s1419 + $0x70] sm:$0xff]
                  %1450 = vst [vmem:[%s1420 + $0x70] sm:$0xff] %v1449
                  %v1451 = vld [vmem:[%s1419 + $0x78] sm:$0xff]
                  %1452 = vst [vmem:[%s1420 + $0x78] sm:$0xff] %v1451
                  %v1453 = vld [vmem:[%s1419 + $0x20] sm:$0xff]
                  %1454 = vst [vmem:[%s1420 + $0x2c] sm:$0xff] %v1453
                  %v1455 = vld [vmem:[%s1419 + $0x28] sm:$0xff]
                  %1456 = vst [vmem:[%s1420 + $0x34] sm:$0xff] %v1455
                  %v1457 = vld [vmem:[%s1419 + $0x30] sm:$0xff]
                  %1458 = vst [vmem:[%s1420 + $0x3c] sm:$0xff] %v1457
                  %v1459 = vld [vmem:[%s1419 + $0x38] sm:$0xff]
                  %1460 = vst [vmem:[%s1420 + $0x44] sm:$0xff] %v1459
                  %v1461 = vld [vmem:[%s1419 + $0x40] sm:$0xff]
                  %1462 = vst [vmem:[%s1420 + $0x4c] sm:$0xff] %v1461
                  %v1463 = vld [vmem:[%s1419 + $0x48] sm:$0xff]
                  %1464 = vst [vmem:[%s1420 + $0x54] sm:$0xff] %v1463
                  %v1465 = vld [vmem:[%s1419 + $0x50] sm:$0xff]
                  %1466 = vst [vmem:[%s1420 + $0x5c] sm:$0xff] %v1465
                  %v1467 = vld [vmem:[%s1419 + $0x58] sm:$0xff]
                  %1468 = vst [vmem:[%s1420 + $0x64] sm:$0xff] %v1467
                  %v1469 = vld [vmem:[%s1419 + $0x60] sm:$0xff]
                  %1470 = vst [vmem:[%s1420 + $0x6c] sm:$0xff] %v1469
                  %v1471 = vld [vmem:[%s1419 + $0x68] sm:$0xff]
                  %1472 = vst [vmem:[%s1420 + $0x74] sm:$0xff] %v1471
                  %v1473 = vld [vmem:[%s1419 + $0x70] sm:$0xff]
                  %1474 = vst [vmem:[%s1420 + $0x7c] sm:$0xff] %v1473
                  %v1475 = vld [vmem:[%s1419 + $0x78] sm:$0xff]
                  %1476 = vst [vmem:[%s1420 + $0x84] sm:$0xff] %v1475
                  %v1477 = vld [vmem:[%s1419 + $0x80] sm:$0xff]
                  %1478 = vst [vmem:[%s1420 + $0x8c] sm:$0xff] %v1477
                  %v1479 = vld [vmem:[%s1419 + $0x88] sm:$0xff]
                  %1480 = vst [vmem:[%s1420 + $0x94] sm:$0xff] %v1479
                  %v1481 = vld [vmem:[%s1419 + $0x90] sm:$0xff]
                  %1482 = vst [vmem:[%s1420 + $0x9c] sm:$0xff] %v1481
                  %v1483 = vld [vmem:[%s1419 + $0x98] sm:$0xff]
                  %1484 = vst [vmem:[%s1420 + $0xa4] sm:$0xff] %v1483
                  %v1485 = vld [vmem:[%s1419 + $0x40] sm:$0xff]
                  %1486 = vst [vmem:[%s1420 + $0x58] sm:$0xff] %v1485
                  %v1487 = vld [vmem:[%s1419 + $0x48] sm:$0xff]
                  %1488 = vst [vmem:[%s1420 + $0x60] sm:$0xff] %v1487
                  %v1489 = vld [vmem:[%s1419 + $0x50] sm:$0xff]
                  %1490 = vst [vmem:[%s1420 + $0x68] sm:$0xff] %v1489
                  %v1491 = vld [vmem:[%s1419 + $0x58] sm:$0xff]
                  %1492 = vst [vmem:[%s1420 + $0x70] sm:$0xff] %v1491
                  %v1493 = vld [vmem:[%s1419 + $0x60] sm:$0xff]
                  %1494 = vst [vmem:[%s1420 + $0x78] sm:$0xff] %v1493
                  %v1495 = vld [vmem:[%s1419 + $0x68] sm:$0xff]
                  %1496 = vst [vmem:[%s1420 + $0x80] sm:$0xff] %v1495
                  %v1497 = vld [vmem:[%s1419 + $0x70] sm:$0xff]
                  %1498 = vst [vmem:[%s1420 + $0x88] sm:$0xff] %v1497
                  %v1499 = vld [vmem:[%s1419 + $0x78] sm:$0xff]
                  %1500 = vst [vmem:[%s1420 + $0x90] sm:$0xff] %v1499
                  %v1501 = vld [vmem:[%s1419 + $0x80] sm:$0xff]
                  %1502 = vst [vmem:[%s1420 + $0x98] sm:$0xff] %v1501
                  %v1503 = vld [vmem:[%s1419 + $0x88] sm:$0xff]
                  %1504 = vst [vmem:[%s1420 + $0xa0] sm:$0xff] %v1503
                  %v1505 = vld [vmem:[%s1419 + $0x90] sm:$0xff]
                  %1506 = vst [vmem:[%s1420 + $0xa8] sm:$0xff] %v1505
                  %v1507 = vld [vmem:[%s1419 + $0x98] sm:$0xff]
                  %1508 = vst [vmem:[%s1420 + $0xb0] sm:$0xff] %v1507
                  %v1509 = vld [vmem:[%s1419 + $0xa0] sm:$0xff]
                  %1510 = vst [vmem:[%s1420 + $0xb8] sm:$0xff] %v1509
                  %v1511 = vld [vmem:[%s1419 + $0xa8] sm:$0xff]
                  %1512 = vst [vmem:[%s1420 + $0xc0] sm:$0xff] %v1511
                  %v1513 = vld [vmem:[%s1419 + $0xb0] sm:$0xff]
                  %1514 = vst [vmem:[%s1420 + $0xc8] sm:$0xff] %v1513
                  %v1515 = vld [vmem:[%s1419 + $0xb8] sm:$0xff]
                  %1516 = vst [vmem:[%s1420 + $0xd0] sm:$0xff] %v1515
                  %v1517 = vld [vmem:[%s1419 + $0x60] sm:$0xff]
                  %1518 = vst [vmem:[%s1420 + $0x84] sm:$0xff] %v1517
                  %v1519 = vld [vmem:[%s1419 + $0x68] sm:$0xff]
                  %1520 = vst [vmem:[%s1420 + $0x8c] sm:$0xff] %v1519
                  %v1521 = vld [vmem:[%s1419 + $0x70] sm:$0xff]
                  %1522 = vst [vmem:[%s1420 + $0x94] sm:$0xff] %v1521
                  %v1523 = vld [vmem:[%s1419 + $0x78] sm:$0xff]
                  %1524 = vst [vmem:[%s1420 + $0x9c] sm:$0xff] %v1523
                  %v1525 = vld [vmem:[%s1419 + $0x80] sm:$0xff]
                  %1526 = vst [vmem:[%s1420 + $0xa4] sm:$0xff] %v1525
                  %v1527 = vld [vmem:[%s1419 + $0x88] sm:$0xff]
                  %1528 = vst [vmem:[%s1420 + $0xac] sm:$0xff] %v1527
                  %v1529 = vld [vmem:[%s1419 + $0x90] sm:$0xff]
                  %1530 = vst [vmem:[%s1420 + $0xb4] sm:$0xff] %v1529
                  %v1531 = vld [vmem:[%s1419 + $0x98] sm:$0xff]
                  %1532 = vst [vmem:[%s1420 + $0xbc] sm:$0xff] %v1531
                  %v1533 = vld [vmem:[%s1419 + $0xa0] sm:$0xff]
                  %1534 = vst [vmem:[%s1420 + $0xc4] sm:$0xff] %v1533
                  %v1535 = vld [vmem:[%s1419 + $0xa8] sm:$0xff]
                  %1536 = vst [vmem:[%s1420 + $0xcc] sm:$0xff] %v1535
                  %v1537 = vld [vmem:[%s1419 + $0xb0] sm:$0xff]
                  %1538 = vst [vmem:[%s1420 + $0xd4] sm:$0xff] %v1537
                  %v1539 = vld [vmem:[%s1419 + $0xb8] sm:$0xff]
                  %1540 = vst [vmem:[%s1420 + $0xdc] sm:$0xff] %v1539
                  %v1541 = vld [vmem:[%s1419 + $0xc0] sm:$0xff]
                  %1542 = vst [vmem:[%s1420 + $0xe4] sm:$0xff] %v1541
                  %v1543 = vld [vmem:[%s1419 + $0xc8] sm:$0xff]
                  %1544 = vst [vmem:[%s1420 + $0xec] sm:$0xff] %v1543
                  %v1545 = vld [vmem:[%s1419 + $0xd0] sm:$0xff]
                  %1546 = vst [vmem:[%s1420 + $0xf4] sm:$0xff] %v1545
                  %v1547 = vld [vmem:[%s1419 + $0xd8] sm:$0xff]
                  %1548 = vst [vmem:[%s1420 + $0xfc] sm:$0xff] %v1547
                  %s1549 = sadd.s32 1, %s1418
                  %p1550 = scmp.ge.s32.totalorder %s1549, %s1409
                  %s1551 = scalar_select %p1550, 0, %s1549
                  %s1552 = smul.u32 %s1551, 128
                  %s1553 = smul.u32 %s1551, 128
                  %s1554 = scalar_lea.vmem %s1360, %s1552 [#allocation3]
                  %s1555 = scalar_lea.vmem %s1374, %s1553
                $region130: #{cnn_backbone_forward.6} parent=124 // loop_footer
                  %s1415 = sadd.s32 %s1413, 1
                $region131: #{cnn_backbone_forward.6} parent=124 // loop_footer_branch
                  %1412 = sbr.rel target = $region127
                $region132: #{cnn_backbone_forward.6} parent=124 // loop_exit
                  _
                %s1556 = sshrl.u32 %s1408, 4
                %s1557 = sand.u32 %s1408, 15
                %s1558 = smul.u32 %s1556, 16
                %s1559 = smul.u32 128, %s1558
                %s1560 = sshra.s32 %s1559, 4
                %s1561 = scalar_lea.vmem %s1360, %s1560 [#allocation3]
                %s1562 = smul.u32 128, %s1558
                %s1563 = sshra.s32 %s1562, 4
                %s1564 = scalar_lea.vmem %s1374, %s1563
                // While loop
                $region133: #{cnn_backbone_forward.6} parent=124 // loop_pre_header
                  _
                $region134: #{cnn_backbone_forward.6} parent=124 // loop_header
                  %s1568 = sphi 0, %s1570
                  %p1569 = scmp.ge.s32.totalorder %s1568, %s1557
                  %s1573 = sphi 0, %s1586
                  %s1574 = sphi %s1561, %s1589
                  %s1575 = sphi %s1564, %s1590
                $region135: #{cnn_backbone_forward.6} parent=124 // loop_header_branch
                  %1572 = sbr.rel (%p1569) target = $region139
                $region136: #{cnn_backbone_forward.6} parent=124 // loop_body
                  %v1576 = vld [vmem:[%s1574] sm:$0xff]
                  %1577 = vst [vmem:[%s1575] sm:$0xff] %v1576
                  %v1578 = vld [vmem:[%s1574 + $0x20] sm:$0xff]
                  %1579 = vst [vmem:[%s1575 + $0x2c] sm:$0xff] %v1578
                  %v1580 = vld [vmem:[%s1574 + $0x40] sm:$0xff]
                  %1581 = vst [vmem:[%s1575 + $0x58] sm:$0xff] %v1580
                  %v1582 = vld [vmem:[%s1574 + $0x60] sm:$0xff]
                  %1583 = vst [vmem:[%s1575 + $0x84] sm:$0xff] %v1582
                  %s1584 = sadd.s32 1, %s1573
                  %p1585 = scmp.ge.s32.totalorder %s1584, %s1557
                  %s1586 = scalar_select %p1585, 0, %s1584
                  %s1587 = smul.u32 %s1586, 8
                  %s1588 = smul.u32 %s1586, 8
                  %s1589 = scalar_lea.vmem %s1561, %s1587 [#allocation3]
                  %s1590 = scalar_lea.vmem %s1564, %s1588
                $region137: #{cnn_backbone_forward.6} parent=124 // loop_footer
                  %s1570 = sadd.s32 %s1568, 1
                $region138: #{cnn_backbone_forward.6} parent=124 // loop_footer_branch
                  %1567 = sbr.rel target = $region134
                $region139: #{cnn_backbone_forward.6} parent=124 // loop_exit
                  _
              $region125: #{cnn_backbone_forward.6} parent=109 // pred_fallthru
                _
              %p1591 = pneg %p1404
              // Predicated region
              $region140: #{cnn_backbone_forward.6} parent=109 // pred_check
                _
              $region141: #{cnn_backbone_forward.6} parent=109 // pred_check_branch
                %1593 = sbr.rel (%p1404) target = $region143
              $region142: #{cnn_backbone_forward.6} parent=109 // pred_region
                %s1594 = sand.u32 %s1375, 7
                %s1595 = ssub.s32 %s1375, %s1594
                %s1596 = scalar_lea.vmem %s1360, %s1595 [#allocation3]
                %s1597 = ssub.s32 %s1375, %s1594
                %s1598 = scalar_lea.vmem %s1374, %s1597
                %s1599 = sshrl.u32 %s1375, 3
                %s1600 = sshrl.u32 %s1599, 4
                // While loop
                $region144: #{cnn_backbone_forward.6} parent=142 // loop_pre_header
                  _
                $region145: #{cnn_backbone_forward.6} parent=142 // loop_header
                  %s1604 = sphi 0, %s1606
                  %p1605 = scmp.ge.s32.totalorder %s1604, %s1600
                  %s1609 = sphi 0, %s1742
                  %s1610 = sphi %s1360, %s1745
                  %s1611 = sphi %s1374, %s1746
                $region146: #{cnn_backbone_forward.6} parent=142 // loop_header_branch
                  %1608 = sbr.rel (%p1605) target = $region150
                $region147: #{cnn_backbone_forward.6} parent=142 // loop_body
                  %v1612 = vld [vmem:[%s1610] sm:$0xff]
                  %1613 = vst [vmem:[%s1611] sm:$0xff] %v1612
                  %v1614 = vld [vmem:[%s1610 + $0x8] sm:$0xff]
                  %1615 = vst [vmem:[%s1611 + $0x8] sm:$0xff] %v1614
                  %v1616 = vld [vmem:[%s1610 + $0x10] sm:$0xff]
                  %1617 = vst [vmem:[%s1611 + $0x10] sm:$0xff] %v1616
                  %v1618 = vld [vmem:[%s1610 + $0x18] sm:$0xff]
                  %1619 = vst [vmem:[%s1611 + $0x18] sm:$0xff] %v1618
                  %v1620 = vld [vmem:[%s1610 + $0x20] sm:$0xff]
                  %1621 = vst [vmem:[%s1611 + $0x20] sm:$0xff] %v1620
                  %v1622 = vld [vmem:[%s1610 + $0x28] sm:$0xff]
                  %1623 = vst [vmem:[%s1611 + $0x28] sm:$0xff] %v1622
                  %v1624 = vld [vmem:[%s1610 + $0x30] sm:$0xff]
                  %1625 = vst [vmem:[%s1611 + $0x30] sm:$0xff] %v1624
                  %v1626 = vld [vmem:[%s1610 + $0x38] sm:$0xff]
                  %1627 = vst [vmem:[%s1611 + $0x38] sm:$0xff] %v1626
                  %v1628 = vld [vmem:[%s1610 + $0x40] sm:$0xff]
                  %1629 = vst [vmem:[%s1611 + $0x40] sm:$0xff] %v1628
                  %v1630 = vld [vmem:[%s1610 + $0x48] sm:$0xff]
                  %1631 = vst [vmem:[%s1611 + $0x48] sm:$0xff] %v1630
                  %v1632 = vld [vmem:[%s1610 + $0x50] sm:$0xff]
                  %1633 = vst [vmem:[%s1611 + $0x50] sm:$0xff] %v1632
                  %v1634 = vld [vmem:[%s1610 + $0x58] sm:$0xff]
                  %1635 = vst [vmem:[%s1611 + $0x58] sm:$0xff] %v1634
                  %v1636 = vld [vmem:[%s1610 + $0x60] sm:$0xff]
                  %1637 = vst [vmem:[%s1611 + $0x60] sm:$0xff] %v1636
                  %v1638 = vld [vmem:[%s1610 + $0x68] sm:$0xff]
                  %1639 = vst [vmem:[%s1611 + $0x68] sm:$0xff] %v1638
                  %v1640 = vld [vmem:[%s1610 + $0x70] sm:$0xff]
                  %1641 = vst [vmem:[%s1611 + $0x70] sm:$0xff] %v1640
                  %v1642 = vld [vmem:[%s1610 + $0x78] sm:$0xff]
                  %1643 = vst [vmem:[%s1611 + $0x78] sm:$0xff] %v1642
                  %v1644 = vld [vmem:[%s1610 + $0x20] sm:$0xff]
                  %1645 = vst [vmem:[%s1611 + $0x2c] sm:$0xff] %v1644
                  %v1646 = vld [vmem:[%s1610 + $0x28] sm:$0xff]
                  %1647 = vst [vmem:[%s1611 + $0x34] sm:$0xff] %v1646
                  %v1648 = vld [vmem:[%s1610 + $0x30] sm:$0xff]
                  %1649 = vst [vmem:[%s1611 + $0x3c] sm:$0xff] %v1648
                  %v1650 = vld [vmem:[%s1610 + $0x38] sm:$0xff]
                  %1651 = vst [vmem:[%s1611 + $0x44] sm:$0xff] %v1650
                  %v1652 = vld [vmem:[%s1610 + $0x40] sm:$0xff]
                  %1653 = vst [vmem:[%s1611 + $0x4c] sm:$0xff] %v1652
                  %v1654 = vld [vmem:[%s1610 + $0x48] sm:$0xff]
                  %1655 = vst [vmem:[%s1611 + $0x54] sm:$0xff] %v1654
                  %v1656 = vld [vmem:[%s1610 + $0x50] sm:$0xff]
                  %1657 = vst [vmem:[%s1611 + $0x5c] sm:$0xff] %v1656
                  %v1658 = vld [vmem:[%s1610 + $0x58] sm:$0xff]
                  %1659 = vst [vmem:[%s1611 + $0x64] sm:$0xff] %v1658
                  %v1660 = vld [vmem:[%s1610 + $0x60] sm:$0xff]
                  %1661 = vst [vmem:[%s1611 + $0x6c] sm:$0xff] %v1660
                  %v1662 = vld [vmem:[%s1610 + $0x68] sm:$0xff]
                  %1663 = vst [vmem:[%s1611 + $0x74] sm:$0xff] %v1662
                  %v1664 = vld [vmem:[%s1610 + $0x70] sm:$0xff]
                  %1665 = vst [vmem:[%s1611 + $0x7c] sm:$0xff] %v1664
                  %v1666 = vld [vmem:[%s1610 + $0x78] sm:$0xff]
                  %1667 = vst [vmem:[%s1611 + $0x84] sm:$0xff] %v1666
                  %v1668 = vld [vmem:[%s1610 + $0x80] sm:$0xff]
                  %1669 = vst [vmem:[%s1611 + $0x8c] sm:$0xff] %v1668
                  %v1670 = vld [vmem:[%s1610 + $0x88] sm:$0xff]
                  %1671 = vst [vmem:[%s1611 + $0x94] sm:$0xff] %v1670
                  %v1672 = vld [vmem:[%s1610 + $0x90] sm:$0xff]
                  %1673 = vst [vmem:[%s1611 + $0x9c] sm:$0xff] %v1672
                  %v1674 = vld [vmem:[%s1610 + $0x98] sm:$0xff]
                  %1675 = vst [vmem:[%s1611 + $0xa4] sm:$0xff] %v1674
                  %v1676 = vld [vmem:[%s1610 + $0x40] sm:$0xff]
                  %1677 = vst [vmem:[%s1611 + $0x58] sm:$0xff] %v1676
                  %v1678 = vld [vmem:[%s1610 + $0x48] sm:$0xff]
                  %1679 = vst [vmem:[%s1611 + $0x60] sm:$0xff] %v1678
                  %v1680 = vld [vmem:[%s1610 + $0x50] sm:$0xff]
                  %1681 = vst [vmem:[%s1611 + $0x68] sm:$0xff] %v1680
                  %v1682 = vld [vmem:[%s1610 + $0x58] sm:$0xff]
                  %1683 = vst [vmem:[%s1611 + $0x70] sm:$0xff] %v1682
                  %v1684 = vld [vmem:[%s1610 + $0x60] sm:$0xff]
                  %1685 = vst [vmem:[%s1611 + $0x78] sm:$0xff] %v1684
                  %v1686 = vld [vmem:[%s1610 + $0x68] sm:$0xff]
                  %1687 = vst [vmem:[%s1611 + $0x80] sm:$0xff] %v1686
                  %v1688 = vld [vmem:[%s1610 + $0x70] sm:$0xff]
                  %1689 = vst [vmem:[%s1611 + $0x88] sm:$0xff] %v1688
                  %v1690 = vld [vmem:[%s1610 + $0x78] sm:$0xff]
                  %1691 = vst [vmem:[%s1611 + $0x90] sm:$0xff] %v1690
                  %v1692 = vld [vmem:[%s1610 + $0x80] sm:$0xff]
                  %1693 = vst [vmem:[%s1611 + $0x98] sm:$0xff] %v1692
                  %v1694 = vld [vmem:[%s1610 + $0x88] sm:$0xff]
                  %1695 = vst [vmem:[%s1611 + $0xa0] sm:$0xff] %v1694
                  %v1696 = vld [vmem:[%s1610 + $0x90] sm:$0xff]
                  %1697 = vst [vmem:[%s1611 + $0xa8] sm:$0xff] %v1696
                  %v1698 = vld [vmem:[%s1610 + $0x98] sm:$0xff]
                  %1699 = vst [vmem:[%s1611 + $0xb0] sm:$0xff] %v1698
                  %v1700 = vld [vmem:[%s1610 + $0xa0] sm:$0xff]
                  %1701 = vst [vmem:[%s1611 + $0xb8] sm:$0xff] %v1700
                  %v1702 = vld [vmem:[%s1610 + $0xa8] sm:$0xff]
                  %1703 = vst [vmem:[%s1611 + $0xc0] sm:$0xff] %v1702
                  %v1704 = vld [vmem:[%s1610 + $0xb0] sm:$0xff]
                  %1705 = vst [vmem:[%s1611 + $0xc8] sm:$0xff] %v1704
                  %v1706 = vld [vmem:[%s1610 + $0xb8] sm:$0xff]
                  %1707 = vst [vmem:[%s1611 + $0xd0] sm:$0xff] %v1706
                  %v1708 = vld [vmem:[%s1610 + $0x60] sm:$0xff]
                  %1709 = vst [vmem:[%s1611 + $0x84] sm:$0xff] %v1708
                  %v1710 = vld [vmem:[%s1610 + $0x68] sm:$0xff]
                  %1711 = vst [vmem:[%s1611 + $0x8c] sm:$0xff] %v1710
                  %v1712 = vld [vmem:[%s1610 + $0x70] sm:$0xff]
                  %1713 = vst [vmem:[%s1611 + $0x94] sm:$0xff] %v1712
                  %v1714 = vld [vmem:[%s1610 + $0x78] sm:$0xff]
                  %1715 = vst [vmem:[%s1611 + $0x9c] sm:$0xff] %v1714
                  %v1716 = vld [vmem:[%s1610 + $0x80] sm:$0xff]
                  %1717 = vst [vmem:[%s1611 + $0xa4] sm:$0xff] %v1716
                  %v1718 = vld [vmem:[%s1610 + $0x88] sm:$0xff]
                  %1719 = vst [vmem:[%s1611 + $0xac] sm:$0xff] %v1718
                  %v1720 = vld [vmem:[%s1610 + $0x90] sm:$0xff]
                  %1721 = vst [vmem:[%s1611 + $0xb4] sm:$0xff] %v1720
                  %v1722 = vld [vmem:[%s1610 + $0x98] sm:$0xff]
                  %1723 = vst [vmem:[%s1611 + $0xbc] sm:$0xff] %v1722
                  %v1724 = vld [vmem:[%s1610 + $0xa0] sm:$0xff]
                  %1725 = vst [vmem:[%s1611 + $0xc4] sm:$0xff] %v1724
                  %v1726 = vld [vmem:[%s1610 + $0xa8] sm:$0xff]
                  %1727 = vst [vmem:[%s1611 + $0xcc] sm:$0xff] %v1726
                  %v1728 = vld [vmem:[%s1610 + $0xb0] sm:$0xff]
                  %1729 = vst [vmem:[%s1611 + $0xd4] sm:$0xff] %v1728
                  %v1730 = vld [vmem:[%s1610 + $0xb8] sm:$0xff]
                  %1731 = vst [vmem:[%s1611 + $0xdc] sm:$0xff] %v1730
                  %v1732 = vld [vmem:[%s1610 + $0xc0] sm:$0xff]
                  %1733 = vst [vmem:[%s1611 + $0xe4] sm:$0xff] %v1732
                  %v1734 = vld [vmem:[%s1610 + $0xc8] sm:$0xff]
                  %1735 = vst [vmem:[%s1611 + $0xec] sm:$0xff] %v1734
                  %v1736 = vld [vmem:[%s1610 + $0xd0] sm:$0xff]
                  %1737 = vst [vmem:[%s1611 + $0xf4] sm:$0xff] %v1736
                  %v1738 = vld [vmem:[%s1610 + $0xd8] sm:$0xff]
                  %1739 = vst [vmem:[%s1611 + $0xfc] sm:$0xff] %v1738
                  %s1740 = sadd.s32 1, %s1609
                  %p1741 = scmp.ge.s32.totalorder %s1740, %s1600
                  %s1742 = scalar_select %p1741, 0, %s1740
                  %s1743 = smul.u32 %s1742, 128
                  %s1744 = smul.u32 %s1742, 128
                  %s1745 = scalar_lea.vmem %s1360, %s1743 [#allocation3]
                  %s1746 = scalar_lea.vmem %s1374, %s1744
                $region148: #{cnn_backbone_forward.6} parent=142 // loop_footer
                  %s1606 = sadd.s32 %s1604, 1
                $region149: #{cnn_backbone_forward.6} parent=142 // loop_footer_branch
                  %1603 = sbr.rel target = $region145
                $region150: #{cnn_backbone_forward.6} parent=142 // loop_exit
                  _
                %s1747 = sshrl.u32 %s1599, 4
                %s1748 = sand.u32 %s1599, 15
                %s1749 = smul.u32 %s1747, 16
                %s1750 = smul.u32 128, %s1749
                %s1751 = sshra.s32 %s1750, 4
                %s1752 = scalar_lea.vmem %s1360, %s1751 [#allocation3]
                %s1753 = smul.u32 128, %s1749
                %s1754 = sshra.s32 %s1753, 4
                %s1755 = scalar_lea.vmem %s1374, %s1754
                // While loop
                $region151: #{cnn_backbone_forward.6} parent=142 // loop_pre_header
                  _
                $region152: #{cnn_backbone_forward.6} parent=142 // loop_header
                  %s1759 = sphi 0, %s1761
                  %p1760 = scmp.ge.s32.totalorder %s1759, %s1748
                  %s1764 = sphi 0, %s1777
                  %s1765 = sphi %s1752, %s1780
                  %s1766 = sphi %s1755, %s1781
                $region153: #{cnn_backbone_forward.6} parent=142 // loop_header_branch
                  %1763 = sbr.rel (%p1760) target = $region157
                $region154: #{cnn_backbone_forward.6} parent=142 // loop_body
                  %v1767 = vld [vmem:[%s1765] sm:$0xff]
                  %1768 = vst [vmem:[%s1766] sm:$0xff] %v1767
                  %v1769 = vld [vmem:[%s1765 + $0x20] sm:$0xff]
                  %1770 = vst [vmem:[%s1766 + $0x2c] sm:$0xff] %v1769
                  %v1771 = vld [vmem:[%s1765 + $0x40] sm:$0xff]
                  %1772 = vst [vmem:[%s1766 + $0x58] sm:$0xff] %v1771
                  %v1773 = vld [vmem:[%s1765 + $0x60] sm:$0xff]
                  %1774 = vst [vmem:[%s1766 + $0x84] sm:$0xff] %v1773
                  %s1775 = sadd.s32 1, %s1764
                  %p1776 = scmp.ge.s32.totalorder %s1775, %s1748
                  %s1777 = scalar_select %p1776, 0, %s1775
                  %s1778 = smul.u32 %s1777, 8
                  %s1779 = smul.u32 %s1777, 8
                  %s1780 = scalar_lea.vmem %s1752, %s1778 [#allocation3]
                  %s1781 = scalar_lea.vmem %s1755, %s1779
                $region155: #{cnn_backbone_forward.6} parent=142 // loop_footer
                  %s1761 = sadd.s32 %s1759, 1
                $region156: #{cnn_backbone_forward.6} parent=142 // loop_footer_branch
                  %1758 = sbr.rel target = $region152
                $region157: #{cnn_backbone_forward.6} parent=142 // loop_exit
                  _
                %s1782 = sshllo.u32 0, %s1594
                loop: start=0, step=1, limit=1
                $region158: #{cnn_backbone_forward.6} parent=142 // loop_pre_header
                  _
                $region159: #{cnn_backbone_forward.6} parent=142 // loop_header
                  %s1784 = sphi 0, %s1788
                  %p1785 = scmp.ge.s32.totalorder %s1784, 1
                  %s1789 = sphi %s1596, %s1596
                  %s1790 = sphi %s1598, %s1598
                $region160: #{cnn_backbone_forward.6} parent=142 // loop_header_branch
                  %1787 = sbr.rel (%p1785) target = $region164
                $region161: #{cnn_backbone_forward.6} parent=142 // loop_body
                  %v1791 = vld [vmem:[%s1789] sm:%s1782]
                  %1792 = vst [vmem:[%s1790] sm:%s1782] %v1791
                  %v1793 = vld [vmem:[%s1789 + $0x20] sm:%s1782]
                  %1794 = vst [vmem:[%s1790 + $0x2c] sm:%s1782] %v1793
                  %v1795 = vld [vmem:[%s1789 + $0x40] sm:%s1782]
                  %1796 = vst [vmem:[%s1790 + $0x58] sm:%s1782] %v1795
                  %v1797 = vld [vmem:[%s1789 + $0x60] sm:%s1782]
                  %1798 = vst [vmem:[%s1790 + $0x84] sm:%s1782] %v1797
                $region162: #{cnn_backbone_forward.6} parent=142 // loop_footer
                  %s1788 = sadd.s32 1, %s1784
                $region163: #{cnn_backbone_forward.6} parent=142 // loop_footer_branch
                  %1783 = sbr.rel target = $region159
                $region164: #{cnn_backbone_forward.6} parent=142 // loop_exit
                  _
              $region143: #{cnn_backbone_forward.6} parent=109 // pred_fallthru
                _
            $region110: #{cnn_backbone_forward.6} parent=105 // pred_fallthru
              _
            // Predicated region
            $region111: #{cnn_backbone_forward.6} parent=105 // pred_check
              %p1383 = pneg %p1379
            $region112: #{cnn_backbone_forward.6} parent=105 // pred_check_branch
              %1385 = sbr.rel (%p1383) target = $region114
            $region113: #{cnn_backbone_forward.6} parent=105 // pred_region
              %s1386 = sshllo.u32 0, %s1375
              loop: start=0, step=1, limit=1
              $region115: #{cnn_backbone_forward.6} parent=113 // loop_pre_header
                _
              $region116: #{cnn_backbone_forward.6} parent=113 // loop_header
                %s1388 = sphi 0, %s1392
                %p1389 = scmp.ge.s32.totalorder %s1388, 1
                %s1393 = sphi %s1360, %s1360
                %s1394 = sphi %s1374, %s1374
              $region117: #{cnn_backbone_forward.6} parent=113 // loop_header_branch
                %1391 = sbr.rel (%p1389) target = $region121
              $region118: #{cnn_backbone_forward.6} parent=113 // loop_body
                %v1395 = vld [vmem:[%s1393] sm:%s1386]
                %1396 = vst [vmem:[%s1394] sm:%s1386] %v1395
                %v1397 = vld [vmem:[%s1393 + $0x20] sm:%s1386]
                %1398 = vst [vmem:[%s1394 + $0x2c] sm:%s1386] %v1397
                %v1399 = vld [vmem:[%s1393 + $0x40] sm:%s1386]
                %1400 = vst [vmem:[%s1394 + $0x58] sm:%s1386] %v1399
                %v1401 = vld [vmem:[%s1393 + $0x60] sm:%s1386]
                %1402 = vst [vmem:[%s1394 + $0x84] sm:%s1386] %v1401
              $region119: #{cnn_backbone_forward.6} parent=113 // loop_footer
                %s1392 = sadd.s32 1, %s1388
              $region120: #{cnn_backbone_forward.6} parent=113 // loop_footer_branch
                %1387 = sbr.rel target = $region116
              $region121: #{cnn_backbone_forward.6} parent=113 // loop_exit
                _
            $region114: #{cnn_backbone_forward.6} parent=105 // pred_fallthru
              _
          $region106: #{cnn_backbone_forward.6} parent=101 // pred_fallthru
            _
          %1799 = vnop
        $region102: #{cnn_backbone_forward.6} parent=93 // pred_fallthru
          _
      $region94: #{cnn_backbone_forward.6} parent=5 // pred_fallthru
        _
      %p1800 = scmp.le.s32.totalorder 2, %s9
      // Predicated region
      $region165: #{cnn_backbone_forward.6} parent=5 // pred_check
        %p1801 = pneg %p1800
      $region166: #{cnn_backbone_forward.6} parent=5 // pred_check_branch
        %1803 = sbr.rel (%p1801) target = $region168
      $region167: #{cnn_backbone_forward.6} parent=5 // pred_region
        %s1804 = ssub.s32 %s9, 2
        // Predicated region
        $region169: #{cnn_backbone_forward.6} parent=167 // pred_check
          %p1805 = pneg %p130
        $region170: #{cnn_backbone_forward.6} parent=167 // pred_check_branch
          %1807 = sbr.rel (%p1805) target = $region172
        $region171: #{cnn_backbone_forward.6} parent=167 // pred_region
          %s1808 = sand.u32 %s115, 1
          %s1809 = sand.u32 %s115, 1
          %s1810 = smul.addr %s1809, 128
          %s1811 = scalar_lea.vmem [#allocation3], %s1810
        $region172: #{cnn_backbone_forward.6} parent=167 // pred_fallthru
          _
      $region168: #{cnn_backbone_forward.6} parent=5 // pred_fallthru
        _
    $region6: #{cnn_backbone_forward.6} parent=1 // loop_footer
      %s13 = sadd.s32 1, %s9
    $region7: #{cnn_backbone_forward.6} parent=1 // loop_footer_branch
      %8 = sbr.rel target = $region3
    $region8: #{cnn_backbone_forward.6} parent=1 // loop_exit
      _

// kernel: cnn_backbone_forward.7
$region0: #{cnn_backbone_forward.7}
  #allocation0 [shape = 'u32[]', space=smem, size = 0x4, offset = 0x4, fixed_abs, tag = 'smem constant byte address 0x4 - core index']
  #allocation1 [shape = 'u32[144,128]{1,0:T(1,128)}', space=vmem, size = 0x12000, scoped, tag = 'internal scratch']
  %s0 = inlined_call_operand.vmem [shape: bf16[64,128], index: 0, kind: input, shape index: {}]
  %s1 = inlined_call_operand.vmem [shape: bf16[128,312], index: 1, kind: input, shape index: {}]
  %s2 = inlined_call_operand.vmem [shape: f32[64,1], index: 2, kind: input, shape index: {}]
  %s3 = inlined_call_operand.vmem [shape: bf16[64,312], index: 3, kind: output, shape index: {}]
  %s4 = sld [smem:[#allocation0]]
  $region22: #{cnn_backbone_forward.7} parent=0
    _
  %s6 = ssub.s32 1, %s4
  %s7 = scalar_select 0, %s6, %s4
  // Predicated region
  $region2: #{cnn_backbone_forward.7} parent=0 // pred_check
    _
  $region3: #{cnn_backbone_forward.7} parent=0 // pred_check_branch
    %9 = sbr.rel (0) target = $region5
  $region4: #{cnn_backbone_forward.7} parent=0 // pred_region
    _
  $region5: #{cnn_backbone_forward.7} parent=0 // pred_fallthru
    _
  // Predicated region
  $region6: #{cnn_backbone_forward.7} parent=0 // pred_check
    _
  $region7: #{cnn_backbone_forward.7} parent=0 // pred_check_branch
    %11 = sbr.rel (0) target = $region9
  $region8: #{cnn_backbone_forward.7} parent=0 // pred_region
    _
  $region9: #{cnn_backbone_forward.7} parent=0 // pred_fallthru
    _
  // Predicated region
  $region10: #{cnn_backbone_forward.7} parent=0 // pred_check
    _
  $region11: #{cnn_backbone_forward.7} parent=0 // pred_check_branch
    %13 = sbr.rel (0) target = $region13
  $region12: #{cnn_backbone_forward.7} parent=0 // pred_region
    _
  $region13: #{cnn_backbone_forward.7} parent=0 // pred_fallthru
    _
  %v15 = vld [vmem:[%s0] sm:$0xf]
  %v16 = vld [vmem:[%s0 + $0x4] sm:$0xf]
  %v17 = vld [vmem:[%s0 + $0x8] sm:$0xf]
  %v18 = vld [vmem:[%s0 + $0xc] sm:$0xf]
  %v19 = vld [vmem:[%s0 + $0x10] sm:$0xf]
  %v20 = vld [vmem:[%s0 + $0x14] sm:$0xf]
  %v21 = vld [vmem:[%s0 + $0x18] sm:$0xf]
  %v22 = vld [vmem:[%s0 + $0x1c] sm:$0xf]
  %v23 = vld [vmem:[%s1] sm:$0xff]
  %v24 = vld [vmem:[%s1 + $0x8] sm:$0xf]
  %v25 = vld [vmem:[%s1 + $0xc] sm:$0xff]
  %v26 = vld [vmem:[%s1 + $0x14] sm:$0xf]
  %v27 = vld [vmem:[%s1 + $0x18] sm:$0xff]
  %v28 = vld [vmem:[%s1 + $0x20] sm:$0xf]
  %v29 = vld [vmem:[%s1 + $0x24] sm:$0xff]
  %v30 = vld [vmem:[%s1 + $0x2c] sm:$0xf]
  %v31 = vld [vmem:[%s1 + $0x30] sm:$0xff]
  %v32 = vld [vmem:[%s1 + $0x38] sm:$0xf]
  %v33 = vld [vmem:[%s1 + $0x3c] sm:$0xff]
  %v34 = vld [vmem:[%s1 + $0x44] sm:$0xf]
  %v35 = vld [vmem:[%s1 + $0x48] sm:$0xff]
  %v36 = vld [vmem:[%s1 + $0x50] sm:$0xf]
  %v37 = vld [vmem:[%s1 + $0x54] sm:$0xff]
  %v38 = vld [vmem:[%s1 + $0x5c] sm:$0xf]
  %v39 = vld [vmem:[%s1 + $0x60] sm:$0xff]
  %v40 = vld [vmem:[%s1 + $0x68] sm:$0xf]
  %v41 = vld [vmem:[%s1 + $0x6c] sm:$0xff]
  %v42 = vld [vmem:[%s1 + $0x74] sm:$0xf]
  %v43 = vld [vmem:[%s1 + $0x78] sm:$0xff]
  %v44 = vld [vmem:[%s1 + $0x80] sm:$0xf]
  %v45 = vld [vmem:[%s1 + $0x84] sm:$0xff]
  %v46 = vld [vmem:[%s1 + $0x8c] sm:$0xf]
  %v47 = vld [vmem:[%s1 + $0x90] sm:$0xff]
  %v48 = vld [vmem:[%s1 + $0x98] sm:$0xf]
  %v49 = vld [vmem:[%s1 + $0x9c] sm:$0xff]
  %v50 = vld [vmem:[%s1 + $0xa4] sm:$0xf]
  %v51 = vld [vmem:[%s1 + $0xa8] sm:$0xff]
  %v52 = vld [vmem:[%s1 + $0xb0] sm:$0xf]
  %v53 = vld [vmem:[%s1 + $0xb4] sm:$0xff]
  %v54 = vld [vmem:[%s1 + $0xbc] sm:$0xf]
  %v55 = vld [vmem:[%s2] sm:$0xff]
  %v56 = vld [vmem:[%s2 + $0x8] sm:$0xff]
  %v57 = vld [vmem:[%s2 + $0x10] sm:$0xff]
  %v58 = vld [vmem:[%s2 + $0x18] sm:$0xff]
  %v59 = vld [vmem:[%s2 + $0x20] sm:$0xff]
  %v60 = vld [vmem:[%s2 + $0x28] sm:$0xff]
  %v61 = vld [vmem:[%s2 + $0x30] sm:$0xff]
  %v62 = vld [vmem:[%s2 + $0x38] sm:$0xff]
  %64 = vset.pattern.permute.xlu0 0
  %65 = vperm.xlu0 %64, %v55
  %v66 = vpop.permute.xlu0 %65
  %69 = vset.pattern.permute.xlu0 0
  %70 = vperm.xlu0 %69, %v56
  %v71 = vpop.permute.xlu0 %70
  %74 = vset.pattern.permute.xlu0 0
  %75 = vperm.xlu0 %74, %v57
  %v76 = vpop.permute.xlu0 %75
  %79 = vset.pattern.permute.xlu0 0
  %80 = vperm.xlu0 %79, %v58
  %v81 = vpop.permute.xlu0 %80
  %84 = vset.pattern.permute.xlu0 0
  %85 = vperm.xlu0 %84, %v59
  %v86 = vpop.permute.xlu0 %85
  %89 = vset.pattern.permute.xlu0 0
  %90 = vperm.xlu0 %89, %v60
  %v91 = vpop.permute.xlu0 %90
  %94 = vset.pattern.permute.xlu0 0
  %95 = vperm.xlu0 %94, %v61
  %v96 = vpop.permute.xlu0 %95
  %99 = vset.pattern.permute.xlu0 0
  %100 = vperm.xlu0 %99, %v62
  %v101 = vpop.permute.xlu0 %100
  %v111 = vunpack.c.l.b16 %v15
  %v112 = vunpack.c.l.b16 %v16
  %v113 = vunpack.c.l.b16 %v17
  %v114 = vunpack.c.l.b16 %v18
  %v115 = vunpack.c.l.b16 %v19
  %v116 = vunpack.c.l.b16 %v20
  %v117 = vunpack.c.l.b16 %v21
  %v118 = vunpack.c.l.b16 %v22
  %v119 = vpack.c.b16 %v112, %v111
  %v120 = vpack.c.b16 %v114, %v113
  %v121 = vpack.c.b16 %v116, %v115
  %v122 = vpack.c.b16 %v118, %v117
  %v159 = vunpack.c.l.b16 %v23
  %v160 = vunpack.c.h.b16 %v23
  %v161 = vunpack.c.l.b16 %v24
  %v162 = vunpack.c.l.b16 %v25
  %v163 = vunpack.c.h.b16 %v25
  %v164 = vunpack.c.l.b16 %v26
  %v165 = vunpack.c.l.b16 %v27
  %v166 = vunpack.c.h.b16 %v27
  %v167 = vunpack.c.l.b16 %v28
  %v168 = vunpack.c.l.b16 %v29
  %v169 = vunpack.c.h.b16 %v29
  %v170 = vunpack.c.l.b16 %v30
  %v171 = vunpack.c.l.b16 %v31
  %v172 = vunpack.c.h.b16 %v31
  %v173 = vunpack.c.l.b16 %v32
  %v174 = vunpack.c.l.b16 %v33
  %v175 = vunpack.c.h.b16 %v33
  %v176 = vunpack.c.l.b16 %v34
  %v177 = vunpack.c.l.b16 %v35
  %v178 = vunpack.c.h.b16 %v35
  %v179 = vunpack.c.l.b16 %v36
  %v180 = vunpack.c.l.b16 %v37
  %v181 = vunpack.c.h.b16 %v37
  %v182 = vunpack.c.l.b16 %v38
  %v183 = vunpack.c.l.b16 %v39
  %v184 = vunpack.c.h.b16 %v39
  %v185 = vunpack.c.l.b16 %v40
  %v186 = vunpack.c.l.b16 %v41
  %v187 = vunpack.c.h.b16 %v41
  %v188 = vunpack.c.l.b16 %v42
  %v189 = vunpack.c.l.b16 %v43
  %v190 = vunpack.c.h.b16 %v43
  %v191 = vunpack.c.l.b16 %v44
  %v192 = vunpack.c.l.b16 %v45
  %v193 = vunpack.c.h.b16 %v45
  %v194 = vunpack.c.l.b16 %v46
  %v195 = vunpack.c.l.b16 %v47
  %v196 = vunpack.c.h.b16 %v47
  %v197 = vunpack.c.l.b16 %v48
  %v198 = vunpack.c.l.b16 %v49
  %v199 = vunpack.c.h.b16 %v49
  %v200 = vunpack.c.l.b16 %v50
  %v201 = vunpack.c.l.b16 %v51
  %v202 = vunpack.c.h.b16 %v51
  %v203 = vunpack.c.l.b16 %v52
  %v204 = vunpack.c.l.b16 %v53
  %v205 = vunpack.c.h.b16 %v53
  %v206 = vunpack.c.l.b16 %v54
  %v207 = vpack.c.b16 %v162, %v159
  %v208 = vpack.c.b16 %v163, %v160
  %v209 = vpack.c.b16 %v164, %v161
  %v210 = vpack.c.b16 %v168, %v165
  %v211 = vpack.c.b16 %v169, %v166
  %v212 = vpack.c.b16 %v170, %v167
  %v213 = vpack.c.b16 %v174, %v171
  %v214 = vpack.c.b16 %v175, %v172
  %v215 = vpack.c.b16 %v176, %v173
  %v216 = vpack.c.b16 %v180, %v177
  %v217 = vpack.c.b16 %v181, %v178
  %v218 = vpack.c.b16 %v182, %v179
  %v219 = vpack.c.b16 %v186, %v183
  %v220 = vpack.c.b16 %v187, %v184
  %v221 = vpack.c.b16 %v188, %v185
  %v222 = vpack.c.b16 %v192, %v189
  %v223 = vpack.c.b16 %v193, %v190
  %v224 = vpack.c.b16 %v194, %v191
  %v225 = vpack.c.b16 %v198, %v195
  %v226 = vpack.c.b16 %v199, %v196
  %v227 = vpack.c.b16 %v200, %v197
  %v228 = vpack.c.b16 %v204, %v201
  %v229 = vpack.c.b16 %v205, %v202
  %v230 = vpack.c.b16 %v206, %v203
  %255 = vmatprep.subr.bf16.mxu0 %v208
  %256 = vmatpush1.bf16.msra.mxu0 %v207
  %257 = vmatprep.subr.bf16.mxu0 %v211
  %258 = vmatpush1.bf16.msra.mxu0 %v210
  %259 = vmatprep.subr.bf16.mxu0 %v214
  %260 = vmatpush1.bf16.msra.mxu0 %v213
  %261 = vmatprep.subr.bf16.mxu0 %v217
  %262 = vmatpush1.bf16.msra.mxu0 %v216
  %263 = vmatprep.subr.bf16.mxu0 %v220
  %264 = vmatpush1.bf16.msra.mxu0 %v219
  %265 = vmatprep.subr.bf16.mxu0 %v223
  %266 = vmatpush1.bf16.msra.mxu0 %v222
  %267 = vmatprep.subr.bf16.mxu0 %v226
  %268 = vmatpush1.bf16.msra.mxu0 %v225
  %269 = vmatprep.subr.bf16.mxu0 %v229
  %270 = vmatpush1.bf16.msra.mxu0 %v228
  %271 = vmatprep.subr.bf16.mxu0 0
  %272 = vmatpush1.bf16.msra.mxu0 0
  %273 = vmatprep.subr.bf16.mxu0 0
  %274 = vmatpush1.bf16.msra.mxu0 0
  %275 = vmatprep.subr.bf16.mxu0 0
  %276 = vmatpush1.bf16.msra.mxu0 0
  %277 = vmatprep.subr.bf16.mxu0 0
  %278 = vmatpush1.bf16.msra.mxu0 0
  %279 = vmatprep.subr.bf16.mxu0 0
  %280 = vmatpush1.bf16.msra.mxu0 0
  %281 = vmatprep.subr.bf16.mxu0 0
  %282 = vmatpush1.bf16.msra.mxu0 0
  %283 = vmatprep.subr.bf16.mxu0 0
  %284 = vmatpush1.bf16.msra.mxu0 0
  %285 = vmatprep.subr.bf16.mxu0 0
  %286 = vmatpush1.bf16.msra.mxu0 0
  %287 = vmatprep.mubr.bf16.mxu0 0
  %288 = vmatmul.mubr.bf16.gmra.mrb[0].mxu0 %v119
  %v289 = vpop.f32.mrb[0].mxu0
  %v290 = vadd.f32 %v66, %v289
  %v291 = vpop.f32.mrb[0].mxu0
  %v292 = vadd.f32 %v66, %v291
  %v293 = vpop.f32.mrb[0].mxu0
  %v294 = vadd.f32 %v71, %v293
  %v295 = vpop.f32.mrb[0].mxu0
  %v296 = vadd.f32 %v71, %v295
  %297 = vmatprep.mubr.bf16.mxu0 0
  %298 = vmatmul.mubr.bf16.gmra.mrb[0].mxu0 %v120
  %v299 = vpop.f32.mrb[0].mxu0
  %v300 = vadd.f32 %v76, %v299
  %v301 = vpop.f32.mrb[0].mxu0
  %v302 = vadd.f32 %v76, %v301
  %v303 = vpop.f32.mrb[0].mxu0
  %v304 = vadd.f32 %v81, %v303
  %v305 = vpop.f32.mrb[0].mxu0
  %v306 = vadd.f32 %v81, %v305
  %307 = vmatprep.mubr.bf16.mxu0 0
  %308 = vmatmul.mubr.bf16.gmra.mrb[0].mxu0 %v121
  %v309 = vpop.f32.mrb[0].mxu0
  %v310 = vadd.f32 %v86, %v309
  %v311 = vpop.f32.mrb[0].mxu0
  %v312 = vadd.f32 %v86, %v311
  %v313 = vpop.f32.mrb[0].mxu0
  %v314 = vadd.f32 %v91, %v313
  %v315 = vpop.f32.mrb[0].mxu0
  %v316 = vadd.f32 %v91, %v315
  %317 = vmatprep.mubr.bf16.mxu0 0
  %318 = vmatmul.mubr.bf16.gmra.mrb[0].mxu0 %v122
  %v319 = vpop.f32.mrb[0].mxu0
  %v320 = vadd.f32 %v96, %v319
  %v321 = vpop.f32.mrb[0].mxu0
  %v322 = vadd.f32 %v96, %v321
  %v323 = vpop.f32.mrb[0].mxu0
  %v324 = vadd.f32 %v101, %v323
  %v325 = vpop.f32.mrb[0].mxu0
  %v326 = vadd.f32 %v101, %v325
  %327 = vdwg.mxu0
  %328 = vmatprep.subr.bf16.mxu0 0
  %329 = vmatpush1.bf16.msra.mxu0 %v209
  %330 = vmatprep.subr.bf16.mxu0 0
  %331 = vmatpush1.bf16.msra.mxu0 %v212
  %332 = vmatprep.subr.bf16.mxu0 0
  %333 = vmatpush1.bf16.msra.mxu0 %v215
  %334 = vmatprep.subr.bf16.mxu0 0
  %335 = vmatpush1.bf16.msra.mxu0 %v218
  %336 = vmatprep.subr.bf16.mxu0 0
  %337 = vmatpush1.bf16.msra.mxu0 %v221
  %338 = vmatprep.subr.bf16.mxu0 0
  %339 = vmatpush1.bf16.msra.mxu0 %v224
  %340 = vmatprep.subr.bf16.mxu0 0
  %341 = vmatpush1.bf16.msra.mxu0 %v227
  %342 = vmatprep.subr.bf16.mxu0 0
  %343 = vmatpush1.bf16.msra.mxu0 %v230
  %344 = vmatprep.subr.bf16.mxu0 0
  %345 = vmatpush1.bf16.msra.mxu0 0
  %346 = vmatprep.subr.bf16.mxu0 0
  %347 = vmatpush1.bf16.msra.mxu0 0
  %348 = vmatprep.subr.bf16.mxu0 0
  %349 = vmatpush1.bf16.msra.mxu0 0
  %350 = vmatprep.subr.bf16.mxu0 0
  %351 = vmatpush1.bf16.msra.mxu0 0
  %352 = vmatprep.subr.bf16.mxu0 0
  %353 = vmatpush1.bf16.msra.mxu0 0
  %354 = vmatprep.subr.bf16.mxu0 0
  %355 = vmatpush1.bf16.msra.mxu0 0
  %356 = vmatprep.subr.bf16.mxu0 0
  %357 = vmatpush1.bf16.msra.mxu0 0
  %358 = vmatprep.subr.bf16.mxu0 0
  %359 = vmatpush1.bf16.msra.mxu0 0
  %360 = vmatprep.mubr.bf16.mxu0 0
  %361 = vmatmul.mubr.bf16.gmra.mrb[0].mxu0 %v119
  %v362 = vpop.f32.mrb[0].mxu0
  %v363 = vadd.f32 %v66, %v362
  %v364 = vpop.f32.mrb[0].mxu0
  %v365 = vpop.f32.mrb[0].mxu0
  %v366 = vadd.f32 %v71, %v365
  %v367 = vpop.f32.mrb[0].mxu0
  %368 = vmatprep.mubr.bf16.mxu0 0
  %369 = vmatmul.mubr.bf16.gmra.mrb[0].mxu0 %v120
  %v370 = vpop.f32.mrb[0].mxu0
  %v371 = vadd.f32 %v76, %v370
  %v372 = vpop.f32.mrb[0].mxu0
  %v373 = vpop.f32.mrb[0].mxu0
  %v374 = vadd.f32 %v81, %v373
  %v375 = vpop.f32.mrb[0].mxu0
  %376 = vmatprep.mubr.bf16.mxu0 0
  %377 = vmatmul.mubr.bf16.gmra.mrb[0].mxu0 %v121
  %v378 = vpop.f32.mrb[0].mxu0
  %v379 = vadd.f32 %v86, %v378
  %v380 = vpop.f32.mrb[0].mxu0
  %v381 = vpop.f32.mrb[0].mxu0
  %v382 = vadd.f32 %v91, %v381
  %v383 = vpop.f32.mrb[0].mxu0
  %384 = vmatprep.mubr.bf16.mxu0 0
  %385 = vmatmul.mubr.bf16.gmra.mrb[0].mxu0 %v122
  %v386 = vpop.f32.mrb[0].mxu0
  %v387 = vadd.f32 %v96, %v386
  %v388 = vpop.f32.mrb[0].mxu0
  %v389 = vpop.f32.mrb[0].mxu0
  %v390 = vadd.f32 %v101, %v389
  %v391 = vpop.f32.mrb[0].mxu0
  %392 = vdwg.mxu0
  %v393 = vpack.c.bf16 %v294, %v290
  %v394 = vpack.c.bf16 %v296, %v292
  %v395 = vpack.c.bf16 %v366, %v363
  %v396 = vpack.c.bf16 %v304, %v300
  %v397 = vpack.c.bf16 %v306, %v302
  %v398 = vpack.c.bf16 %v374, %v371
  %v399 = vpack.c.bf16 %v314, %v310
  %v400 = vpack.c.bf16 %v316, %v312
  %v401 = vpack.c.bf16 %v382, %v379
  %v402 = vpack.c.bf16 %v324, %v320
  %v403 = vpack.c.bf16 %v326, %v322
  %v404 = vpack.c.bf16 %v390, %v387
  %v417 = vunpack.c.l.b16 %v393
  %v418 = vunpack.c.l.b16 %v394
  %v419 = vunpack.c.l.b16 %v395
  %v420 = vunpack.c.h.b16 %v393
  %v421 = vunpack.c.h.b16 %v394
  %v422 = vunpack.c.h.b16 %v395
  %v423 = vunpack.c.l.b16 %v396
  %v424 = vunpack.c.l.b16 %v397
  %v425 = vunpack.c.l.b16 %v398
  %v426 = vunpack.c.h.b16 %v396
  %v427 = vunpack.c.h.b16 %v397
  %v428 = vunpack.c.h.b16 %v398
  %v429 = vunpack.c.l.b16 %v399
  %v430 = vunpack.c.l.b16 %v400
  %v431 = vunpack.c.l.b16 %v401
  %v432 = vunpack.c.h.b16 %v399
  %v433 = vunpack.c.h.b16 %v400
  %v434 = vunpack.c.h.b16 %v401
  %v435 = vunpack.c.l.b16 %v402
  %v436 = vunpack.c.l.b16 %v403
  %v437 = vunpack.c.l.b16 %v404
  %v438 = vunpack.c.h.b16 %v402
  %v439 = vunpack.c.h.b16 %v403
  %v440 = vunpack.c.h.b16 %v404
  %v441 = vpack.c.b16 %v418, %v417
  %v442 = vpack.c.b16 %v419, %v419
  %v443 = vpack.c.b16 %v421, %v420
  %v444 = vpack.c.b16 %v422, %v422
  %v445 = vpack.c.b16 %v424, %v423
  %v446 = vpack.c.b16 %v425, %v425
  %v447 = vpack.c.b16 %v427, %v426
  %v448 = vpack.c.b16 %v428, %v428
  %v449 = vpack.c.b16 %v430, %v429
  %v450 = vpack.c.b16 %v431, %v431
  %v451 = vpack.c.b16 %v433, %v432
  %v452 = vpack.c.b16 %v434, %v434
  %v453 = vpack.c.b16 %v436, %v435
  %v454 = vpack.c.b16 %v437, %v437
  %v455 = vpack.c.b16 %v439, %v438
  %v456 = vpack.c.b16 %v440, %v440
  %473 = vst [vmem:[%s3] sm:$0xff] %v441
  %474 = vst [vmem:[%s3 + $0x8] sm:$0xf] %v442
  %475 = vst [vmem:[%s3 + $0xc] sm:$0xff] %v443
  %476 = vst [vmem:[%s3 + $0x14] sm:$0xf] %v444
  %477 = vst [vmem:[%s3 + $0x18] sm:$0xff] %v445
  %478 = vst [vmem:[%s3 + $0x20] sm:$0xf] %v446
  %479 = vst [vmem:[%s3 + $0x24] sm:$0xff] %v447
  %480 = vst [vmem:[%s3 + $0x2c] sm:$0xf] %v448
  %481 = vst [vmem:[%s3 + $0x30] sm:$0xff] %v449
  %482 = vst [vmem:[%s3 + $0x38] sm:$0xf] %v450
  %483 = vst [vmem:[%s3 + $0x3c] sm:$0xff] %v451
  %484 = vst [vmem:[%s3 + $0x44] sm:$0xf] %v452
  %485 = vst [vmem:[%s3 + $0x48] sm:$0xff] %v453
  %486 = vst [vmem:[%s3 + $0x50] sm:$0xf] %v454
  %487 = vst [vmem:[%s3 + $0x54] sm:$0xff] %v455
  %488 = vst [vmem:[%s3 + $0x5c] sm:$0xf] %v456
  // Predicated region
  $region14: #{cnn_backbone_forward.7} parent=0 // pred_check
    _
  $region15: #{cnn_backbone_forward.7} parent=0 // pred_check_branch
    %490 = sbr.rel (0) target = $region17
  $region16: #{cnn_backbone_forward.7} parent=0 // pred_region
    _
  $region17: #{cnn_backbone_forward.7} parent=0 // pred_fallthru
    _
  // Predicated region
  $region18: #{cnn_backbone_forward.7} parent=0 // pred_check
    _
  $region19: #{cnn_backbone_forward.7} parent=0 // pred_check_branch
    %492 = sbr.rel (0) target = $region21
  $region20: #{cnn_backbone_forward.7} parent=0 // pred_region
    _
  $region21: #{cnn_backbone_forward.7} parent=0 // pred_fallthru
    _

// kernel: cnn_backbone_forward.8
$region0: #{cnn_backbone_forward.8}
  #allocation0 [shape = 'u32[]', space=smem, size = 0x4, offset = 0x4, fixed_abs, tag = 'smem constant byte address 0x4 - core index']
  #allocation1 [shape = 'u32[144,128]{1,0:T(1,128)}', space=vmem, size = 0x12000, scoped, tag = 'internal scratch']
  %s0 = inlined_call_operand.vmem [shape: bf16[128,156], index: 0, kind: input, shape index: {}]
  %s1 = inlined_call_operand.vmem [shape: bf16[156,144], index: 1, kind: input, shape index: {}]
  %s2 = inlined_call_operand.vmem [shape: bf16[128,36], index: 2, kind: output, shape index: {}]
  %s3 = sld [smem:[#allocation0]]
  $region18: #{cnn_backbone_forward.8} parent=0
    _
  %s5 = ssub.s32 1, %s3
  %s6 = scalar_select 0, %s5, %s3
  // Predicated region
  $region2: #{cnn_backbone_forward.8} parent=0 // pred_check
    _
  $region3: #{cnn_backbone_forward.8} parent=0 // pred_check_branch
    %8 = sbr.rel (0) target = $region5
  $region4: #{cnn_backbone_forward.8} parent=0 // pred_region
    _
  $region5: #{cnn_backbone_forward.8} parent=0 // pred_fallthru
    _
  // Predicated region
  $region6: #{cnn_backbone_forward.8} parent=0 // pred_check
    _
  $region7: #{cnn_backbone_forward.8} parent=0 // pred_check_branch
    %10 = sbr.rel (0) target = $region9
  $region8: #{cnn_backbone_forward.8} parent=0 // pred_region
    _
  $region9: #{cnn_backbone_forward.8} parent=0 // pred_fallthru
    _
  %v12 = vld [vmem:[%s0] sm:$0xff]
  %v13 = vld [vmem:[%s0 + $0x8] sm:$0xff]
  %v14 = vld [vmem:[%s0 + $0x10] sm:$0xff]
  %v15 = vld [vmem:[%s0 + $0x18] sm:$0xff]
  %v16 = vld [vmem:[%s0 + $0x20] sm:$0xff]
  %v17 = vld [vmem:[%s0 + $0x28] sm:$0xff]
  %v18 = vld [vmem:[%s0 + $0x30] sm:$0xff]
  %v19 = vld [vmem:[%s0 + $0x38] sm:$0xff]
  %v20 = vld [vmem:[%s0 + $0x40] sm:$0xff]
  %v21 = vld [vmem:[%s0 + $0x48] sm:$0xff]
  %v22 = vld [vmem:[%s0 + $0x50] sm:$0xff]
  %v23 = vld [vmem:[%s0 + $0x58] sm:$0xff]
  %v24 = vld [vmem:[%s0 + $0x60] sm:$0xff]
  %v25 = vld [vmem:[%s0 + $0x68] sm:$0xff]
  %v26 = vld [vmem:[%s0 + $0x70] sm:$0xff]
  %v27 = vld [vmem:[%s0 + $0x78] sm:$0xff]
  %v28 = vld [vmem:[%s1] sm:$0xff]
  %v29 = vld [vmem:[%s1 + $0x8] sm:$0xff]
  %v30 = vld [vmem:[%s1 + $0x10] sm:$0xff]
  %v31 = vld [vmem:[%s1 + $0x18] sm:$0xff]
  %v32 = vld [vmem:[%s1 + $0x20] sm:$0xff]
  %v33 = vld [vmem:[%s1 + $0x28] sm:$0xff]
  %v34 = vld [vmem:[%s1 + $0x30] sm:$0xff]
  %v35 = vld [vmem:[%s1 + $0x38] sm:$0xff]
  %v36 = vld [vmem:[%s1 + $0x40] sm:$0xff]
  %v37 = vld [vmem:[%s1 + $0x48] sm:$0xff]
  %v38 = vld [vmem:[%s1 + $0x50] sm:$0xff]
  %v39 = vld [vmem:[%s1 + $0x58] sm:$0xff]
  %v40 = vld [vmem:[%s1 + $0x60] sm:$0xff]
  %v41 = vld [vmem:[%s1 + $0x68] sm:$0xff]
  %v42 = vld [vmem:[%s1 + $0x70] sm:$0xff]
  %v43 = vld [vmem:[%s1 + $0x78] sm:$0xff]
  %v44 = vld [vmem:[%s1 + $0x80] sm:$0xff]
  %v45 = vld [vmem:[%s1 + $0x88] sm:$0xff]
  %v46 = vld [vmem:[%s1 + $0x90] sm:$0xff]
  %v47 = vld [vmem:[%s1 + $0x98] sm:$0x33]
  %v64 = vunpack.c.l.b16 %v12
  %v65 = vunpack.c.h.b16 %v12
  %v66 = vunpack.c.l.b16 %v13
  %v67 = vunpack.c.h.b16 %v13
  %v68 = vunpack.c.l.b16 %v14
  %v69 = vunpack.c.h.b16 %v14
  %v70 = vunpack.c.l.b16 %v15
  %v71 = vunpack.c.h.b16 %v15
  %v72 = vunpack.c.l.b16 %v16
  %v73 = vunpack.c.h.b16 %v16
  %v74 = vunpack.c.l.b16 %v17
  %v75 = vunpack.c.h.b16 %v17
  %v76 = vunpack.c.l.b16 %v18
  %v77 = vunpack.c.h.b16 %v18
  %v78 = vunpack.c.l.b16 %v19
  %v79 = vunpack.c.h.b16 %v19
  %v80 = vunpack.c.l.b16 %v20
  %v81 = vunpack.c.h.b16 %v20
  %v82 = vunpack.c.l.b16 %v21
  %v83 = vunpack.c.h.b16 %v21
  %v84 = vunpack.c.l.b16 %v22
  %v85 = vunpack.c.h.b16 %v22
  %v86 = vunpack.c.l.b16 %v23
  %v87 = vunpack.c.h.b16 %v23
  %v88 = vunpack.c.l.b16 %v24
  %v89 = vunpack.c.h.b16 %v24
  %v90 = vunpack.c.l.b16 %v25
  %v91 = vunpack.c.h.b16 %v25
  %v92 = vunpack.c.l.b16 %v26
  %v93 = vunpack.c.h.b16 %v26
  %v94 = vunpack.c.l.b16 %v27
  %v95 = vunpack.c.h.b16 %v27
  %v96 = vpack.c.b16 %v66, %v64
  %v97 = vpack.c.b16 %v67, %v65
  %v98 = vpack.c.b16 %v70, %v68
  %v99 = vpack.c.b16 %v71, %v69
  %v100 = vpack.c.b16 %v74, %v72
  %v101 = vpack.c.b16 %v75, %v73
  %v102 = vpack.c.b16 %v78, %v76
  %v103 = vpack.c.b16 %v79, %v77
  %v104 = vpack.c.b16 %v82, %v80
  %v105 = vpack.c.b16 %v83, %v81
  %v106 = vpack.c.b16 %v86, %v84
  %v107 = vpack.c.b16 %v87, %v85
  %v108 = vpack.c.b16 %v90, %v88
  %v109 = vpack.c.b16 %v91, %v89
  %v110 = vpack.c.b16 %v94, %v92
  %v111 = vpack.c.b16 %v95, %v93
  %v140 = vunpack.c.l.b16 %v28
  %v141 = vunpack.c.h.b16 %v28
  %v142 = vunpack.c.l.b16 %v29
  %v143 = vunpack.c.h.b16 %v29
  %v144 = vunpack.c.l.b16 %v30
  %v145 = vunpack.c.h.b16 %v30
  %v146 = vunpack.c.l.b16 %v31
  %v147 = vunpack.c.h.b16 %v31
  %v148 = vunpack.c.l.b16 %v32
  %v149 = vunpack.c.h.b16 %v32
  %v150 = vunpack.c.l.b16 %v33
  %v151 = vunpack.c.h.b16 %v33
  %v152 = vunpack.c.l.b16 %v34
  %v153 = vunpack.c.h.b16 %v34
  %v154 = vunpack.c.l.b16 %v35
  %v155 = vunpack.c.h.b16 %v35
  %v156 = vunpack.c.l.b16 %v36
  %v157 = vunpack.c.h.b16 %v36
  %v158 = vunpack.c.l.b16 %v37
  %v159 = vunpack.c.h.b16 %v37
  %v160 = vunpack.c.l.b16 %v38
  %v161 = vunpack.c.h.b16 %v38
  %v162 = vunpack.c.l.b16 %v39
  %v163 = vunpack.c.h.b16 %v39
  %v164 = vunpack.c.l.b16 %v40
  %v165 = vunpack.c.h.b16 %v40
  %v166 = vunpack.c.l.b16 %v41
  %v167 = vunpack.c.h.b16 %v41
  %v168 = vunpack.c.l.b16 %v42
  %v169 = vunpack.c.h.b16 %v42
  %v170 = vunpack.c.l.b16 %v43
  %v171 = vunpack.c.h.b16 %v43
  %v172 = vunpack.c.l.b16 %v44
  %v173 = vunpack.c.h.b16 %v44
  %v174 = vunpack.c.l.b16 %v45
  %v175 = vunpack.c.h.b16 %v45
  %v176 = vunpack.c.l.b16 %v46
  %v177 = vunpack.c.h.b16 %v46
  %v178 = vunpack.c.l.b16 %v47
  %v179 = vunpack.c.h.b16 %v47
  %v180 = vpack.c.b16 %v142, %v140
  %v181 = vpack.c.b16 %v143, %v141
  %v182 = vpack.c.b16 %v146, %v144
  %v183 = vpack.c.b16 %v147, %v145
  %v184 = vpack.c.b16 %v150, %v148
  %v185 = vpack.c.b16 %v151, %v149
  %v186 = vpack.c.b16 %v154, %v152
  %v187 = vpack.c.b16 %v155, %v153
  %v188 = vpack.c.b16 %v158, %v156
  %v189 = vpack.c.b16 %v159, %v157
  %v190 = vpack.c.b16 %v162, %v160
  %v191 = vpack.c.b16 %v163, %v161
  %v192 = vpack.c.b16 %v166, %v164
  %v193 = vpack.c.b16 %v167, %v165
  %v194 = vpack.c.b16 %v170, %v168
  %v195 = vpack.c.b16 %v171, %v169
  %v196 = vpack.c.b16 %v174, %v172
  %v197 = vpack.c.b16 %v175, %v173
  %v198 = vpack.c.b16 %v178, %v176
  %v199 = vpack.c.b16 %v179, %v177
  %vm218 = vcmask 228352
  %v220 = vsel %vm218, %v97, 0
  %v223 = vsel %vm218, %v99, 0
  %v226 = vsel %vm218, %v101, 0
  %v229 = vsel %vm218, %v103, 0
  %v232 = vsel %vm218, %v105, 0
  %v235 = vsel %vm218, %v107, 0
  %v238 = vsel %vm218, %v109, 0
  %v241 = vsel %vm218, %v111, 0
  %vm243 = vcmask 1045504
  %v245 = vsel %vm243, %v198, 0
  %v248 = vsel %vm243, %v199, 0
  %250 = vmatprep.subr.bf16.mxu0 %v181
  %251 = vmatpush1.bf16.msra.mxu0 %v180
  %252 = vmatprep.subr.bf16.mxu0 %v183
  %253 = vmatpush1.bf16.msra.mxu0 %v182
  %254 = vmatprep.subr.bf16.mxu0 %v185
  %255 = vmatpush1.bf16.msra.mxu0 %v184
  %256 = vmatprep.subr.bf16.mxu0 %v187
  %257 = vmatpush1.bf16.msra.mxu0 %v186
  %258 = vmatprep.subr.bf16.mxu0 %v189
  %259 = vmatpush1.bf16.msra.mxu0 %v188
  %260 = vmatprep.subr.bf16.mxu0 %v191
  %261 = vmatpush1.bf16.msra.mxu0 %v190
  %262 = vmatprep.subr.bf16.mxu0 %v193
  %263 = vmatpush1.bf16.msra.mxu0 %v192
  %264 = vmatprep.subr.bf16.mxu0 %v195
  %265 = vmatpush1.bf16.msra.mxu0 %v194
  %266 = vmatprep.subr.bf16.mxu0 %v197
  %267 = vmatpush1.bf16.msra.mxu0 %v196
  %268 = vmatprep.subr.bf16.mxu0 %v248
  %269 = vmatpush1.bf16.msra.mxu0 %v245
  %270 = vmatprep.subr.bf16.mxu0 0
  %271 = vmatpush1.bf16.msra.mxu0 0
  %272 = vmatprep.subr.bf16.mxu0 0
  %273 = vmatpush1.bf16.msra.mxu0 0
  %274 = vmatprep.subr.bf16.mxu0 0
  %275 = vmatpush1.bf16.msra.mxu0 0
  %276 = vmatprep.subr.bf16.mxu0 0
  %277 = vmatpush1.bf16.msra.mxu0 0
  %278 = vmatprep.subr.bf16.mxu0 0
  %279 = vmatpush1.bf16.msra.mxu0 0
  %280 = vmatprep.subr.bf16.mxu0 0
  %281 = vmatpush1.bf16.msra.mxu0 0
  %282 = vmatprep.mubr.bf16.mxu0 %v220
  %283 = vmatmul.mubr.bf16.gmra.mrb[0].mxu0 %v96
  %v284 = vpop.f32.mrb[0].mxu0
  %v285 = vadd.f32 0.0, %v284
  %v286 = vpop.f32.mrb[0].mxu0
  %v287 = vadd.f32 0.0, %v286
  %v288 = vpop.f32.mrb[0].mxu0
  %v289 = vadd.f32 0.0, %v288
  %v290 = vpop.f32.mrb[0].mxu0
  %v291 = vadd.f32 0.0, %v290
  %292 = vmatprep.mubr.bf16.mxu0 %v223
  %293 = vmatmul.mubr.bf16.gmra.mrb[0].mxu0 %v98
  %v294 = vpop.f32.mrb[0].mxu0
  %v295 = vadd.f32 0.0, %v294
  %v296 = vpop.f32.mrb[0].mxu0
  %v297 = vadd.f32 0.0, %v296
  %v298 = vpop.f32.mrb[0].mxu0
  %v299 = vadd.f32 0.0, %v298
  %v300 = vpop.f32.mrb[0].mxu0
  %v301 = vadd.f32 0.0, %v300
  %302 = vmatprep.mubr.bf16.mxu0 %v226
  %303 = vmatmul.mubr.bf16.gmra.mrb[0].mxu0 %v100
  %v304 = vpop.f32.mrb[0].mxu0
  %v305 = vadd.f32 0.0, %v304
  %v306 = vpop.f32.mrb[0].mxu0
  %v307 = vadd.f32 0.0, %v306
  %v308 = vpop.f32.mrb[0].mxu0
  %v309 = vadd.f32 0.0, %v308
  %v310 = vpop.f32.mrb[0].mxu0
  %v311 = vadd.f32 0.0, %v310
  %312 = vmatprep.mubr.bf16.mxu0 %v229
  %313 = vmatmul.mubr.bf16.gmra.mrb[0].mxu0 %v102
  %v314 = vpop.f32.mrb[0].mxu0
  %v315 = vadd.f32 0.0, %v314
  %v316 = vpop.f32.mrb[0].mxu0
  %v317 = vadd.f32 0.0, %v316
  %v318 = vpop.f32.mrb[0].mxu0
  %v319 = vadd.f32 0.0, %v318
  %v320 = vpop.f32.mrb[0].mxu0
  %v321 = vadd.f32 0.0, %v320
  %322 = vmatprep.mubr.bf16.mxu0 %v232
  %323 = vmatmul.mubr.bf16.gmra.mrb[0].mxu0 %v104
  %v324 = vpop.f32.mrb[0].mxu0
  %v325 = vadd.f32 0.0, %v324
  %v326 = vpop.f32.mrb[0].mxu0
  %v327 = vadd.f32 0.0, %v326
  %v328 = vpop.f32.mrb[0].mxu0
  %v329 = vadd.f32 0.0, %v328
  %v330 = vpop.f32.mrb[0].mxu0
  %v331 = vadd.f32 0.0, %v330
  %332 = vmatprep.mubr.bf16.mxu0 %v235
  %333 = vmatmul.mubr.bf16.gmra.mrb[0].mxu0 %v106
  %v334 = vpop.f32.mrb[0].mxu0
  %v335 = vadd.f32 0.0, %v334
  %v336 = vpop.f32.mrb[0].mxu0
  %v337 = vadd.f32 0.0, %v336
  %v338 = vpop.f32.mrb[0].mxu0
  %v339 = vadd.f32 0.0, %v338
  %v340 = vpop.f32.mrb[0].mxu0
  %v341 = vadd.f32 0.0, %v340
  %342 = vmatprep.mubr.bf16.mxu0 %v238
  %343 = vmatmul.mubr.bf16.gmra.mrb[0].mxu0 %v108
  %v344 = vpop.f32.mrb[0].mxu0
  %v345 = vadd.f32 0.0, %v344
  %v346 = vpop.f32.mrb[0].mxu0
  %v347 = vadd.f32 0.0, %v346
  %v348 = vpop.f32.mrb[0].mxu0
  %v349 = vadd.f32 0.0, %v348
  %v350 = vpop.f32.mrb[0].mxu0
  %v351 = vadd.f32 0.0, %v350
  %352 = vmatprep.mubr.bf16.mxu0 %v241
  %353 = vmatmul.mubr.bf16.gmra.mrb[0].mxu0 %v110
  %v354 = vpop.f32.mrb[0].mxu0
  %v355 = vadd.f32 0.0, %v354
  %v356 = vpop.f32.mrb[0].mxu0
  %v357 = vadd.f32 0.0, %v356
  %v358 = vpop.f32.mrb[0].mxu0
  %v359 = vadd.f32 0.0, %v358
  %v360 = vpop.f32.mrb[0].mxu0
  %v361 = vadd.f32 0.0, %v360
  %362 = vdwg.mxu0
  %379 = vrot.lane.b32.xlu0 %v285, 92
  %v380 = vpop.permute.xlu0 %379
  %381 = vrot.lane.b32.xlu0 %v289, 92
  %v382 = vpop.permute.xlu0 %381
  %383 = vrot.lane.b32.xlu0 %v295, 92
  %v384 = vpop.permute.xlu0 %383
  %385 = vrot.lane.b32.xlu0 %v299, 92
  %v386 = vpop.permute.xlu0 %385
  %387 = vrot.lane.b32.xlu0 %v305, 92
  %v388 = vpop.permute.xlu0 %387
  %389 = vrot.lane.b32.xlu0 %v309, 92
  %v390 = vpop.permute.xlu0 %389
  %391 = vrot.lane.b32.xlu0 %v315, 92
  %v392 = vpop.permute.xlu0 %391
  %393 = vrot.lane.b32.xlu0 %v319, 92
  %v394 = vpop.permute.xlu0 %393
  %395 = vrot.lane.b32.xlu0 %v325, 92
  %v396 = vpop.permute.xlu0 %395
  %397 = vrot.lane.b32.xlu0 %v329, 92
  %v398 = vpop.permute.xlu0 %397
  %399 = vrot.lane.b32.xlu0 %v335, 92
  %v400 = vpop.permute.xlu0 %399
  %401 = vrot.lane.b32.xlu0 %v339, 92
  %v402 = vpop.permute.xlu0 %401
  %403 = vrot.lane.b32.xlu0 %v345, 92
  %v404 = vpop.permute.xlu0 %403
  %405 = vrot.lane.b32.xlu0 %v349, 92
  %v406 = vpop.permute.xlu0 %405
  %407 = vrot.lane.b32.xlu0 %v355, 92
  %v408 = vpop.permute.xlu0 %407
  %409 = vrot.lane.b32.xlu0 %v359, 92
  %v410 = vpop.permute.xlu0 %409
  %v427 = vmax.f32 %v285, %v380
  %v428 = vmax.f32 %v289, %v382
  %v429 = vmax.f32 %v295, %v384
  %v430 = vmax.f32 %v299, %v386
  %v431 = vmax.f32 %v305, %v388
  %v432 = vmax.f32 %v309, %v390
  %v433 = vmax.f32 %v315, %v392
  %v434 = vmax.f32 %v319, %v394
  %v435 = vmax.f32 %v325, %v396
  %v436 = vmax.f32 %v329, %v398
  %v437 = vmax.f32 %v335, %v400
  %v438 = vmax.f32 %v339, %v402
  %v439 = vmax.f32 %v345, %v404
  %v440 = vmax.f32 %v349, %v406
  %v441 = vmax.f32 %v355, %v408
  %v442 = vmax.f32 %v359, %v410
  %459 = vrot.lane.b32.xlu0 %v287, 92
  %v460 = vpop.permute.xlu0 %459
  %461 = vrot.lane.b32.xlu0 %v291, 92
  %v462 = vpop.permute.xlu0 %461
  %463 = vrot.lane.b32.xlu0 %v297, 92
  %v464 = vpop.permute.xlu0 %463
  %465 = vrot.lane.b32.xlu0 %v301, 92
  %v466 = vpop.permute.xlu0 %465
  %467 = vrot.lane.b32.xlu0 %v307, 92
  %v468 = vpop.permute.xlu0 %467
  %469 = vrot.lane.b32.xlu0 %v311, 92
  %v470 = vpop.permute.xlu0 %469
  %471 = vrot.lane.b32.xlu0 %v317, 92
  %v472 = vpop.permute.xlu0 %471
  %473 = vrot.lane.b32.xlu0 %v321, 92
  %v474 = vpop.permute.xlu0 %473
  %475 = vrot.lane.b32.xlu0 %v327, 92
  %v476 = vpop.permute.xlu0 %475
  %477 = vrot.lane.b32.xlu0 %v331, 92
  %v478 = vpop.permute.xlu0 %477
  %479 = vrot.lane.b32.xlu0 %v337, 92
  %v480 = vpop.permute.xlu0 %479
  %481 = vrot.lane.b32.xlu0 %v341, 92
  %v482 = vpop.permute.xlu0 %481
  %483 = vrot.lane.b32.xlu0 %v347, 92
  %v484 = vpop.permute.xlu0 %483
  %485 = vrot.lane.b32.xlu0 %v351, 92
  %v486 = vpop.permute.xlu0 %485
  %487 = vrot.lane.b32.xlu0 %v357, 92
  %v488 = vpop.permute.xlu0 %487
  %489 = vrot.lane.b32.xlu0 %v361, 92
  %v490 = vpop.permute.xlu0 %489
  %vm491 = vcmask 752640
  %v492 = vsel %vm491, %v380, %v460
  %v493 = vsel %vm491, %v382, %v462
  %v494 = vsel %vm491, %v384, %v464
  %v495 = vsel %vm491, %v386, %v466
  %v496 = vsel %vm491, %v388, %v468
  %v497 = vsel %vm491, %v390, %v470
  %v498 = vsel %vm491, %v392, %v472
  %v499 = vsel %vm491, %v394, %v474
  %v500 = vsel %vm491, %v396, %v476
  %v501 = vsel %vm491, %v398, %v478
  %v502 = vsel %vm491, %v400, %v480
  %v503 = vsel %vm491, %v402, %v482
  %v504 = vsel %vm491, %v404, %v484
  %v505 = vsel %vm491, %v406, %v486
  %v506 = vsel %vm491, %v408, %v488
  %v507 = vsel %vm491, %v410, %v490
  %v524 = vmax.f32 %v285, %v492
  %v525 = vmax.f32 %v289, %v493
  %v526 = vmax.f32 %v295, %v494
  %v527 = vmax.f32 %v299, %v495
  %v528 = vmax.f32 %v305, %v496
  %v529 = vmax.f32 %v309, %v497
  %v530 = vmax.f32 %v315, %v498
  %v531 = vmax.f32 %v319, %v499
  %v532 = vmax.f32 %v325, %v500
  %v533 = vmax.f32 %v329, %v501
  %v534 = vmax.f32 %v335, %v502
  %v535 = vmax.f32 %v339, %v503
  %v536 = vmax.f32 %v345, %v504
  %v537 = vmax.f32 %v349, %v505
  %v538 = vmax.f32 %v355, %v506
  %v539 = vmax.f32 %v359, %v507
  %556 = vrot.lane.b32.xlu0 %v524, 56
  %v557 = vpop.permute.xlu0 %556
  %558 = vrot.lane.b32.xlu0 %v525, 56
  %v559 = vpop.permute.xlu0 %558
  %560 = vrot.lane.b32.xlu0 %v526, 56
  %v561 = vpop.permute.xlu0 %560
  %562 = vrot.lane.b32.xlu0 %v527, 56
  %v563 = vpop.permute.xlu0 %562
  %564 = vrot.lane.b32.xlu0 %v528, 56
  %v565 = vpop.permute.xlu0 %564
  %566 = vrot.lane.b32.xlu0 %v529, 56
  %v567 = vpop.permute.xlu0 %566
  %568 = vrot.lane.b32.xlu0 %v530, 56
  %v569 = vpop.permute.xlu0 %568
  %570 = vrot.lane.b32.xlu0 %v531, 56
  %v571 = vpop.permute.xlu0 %570
  %572 = vrot.lane.b32.xlu0 %v532, 56
  %v573 = vpop.permute.xlu0 %572
  %574 = vrot.lane.b32.xlu0 %v533, 56
  %v575 = vpop.permute.xlu0 %574
  %576 = vrot.lane.b32.xlu0 %v534, 56
  %v577 = vpop.permute.xlu0 %576
  %578 = vrot.lane.b32.xlu0 %v535, 56
  %v579 = vpop.permute.xlu0 %578
  %580 = vrot.lane.b32.xlu0 %v536, 56
  %v581 = vpop.permute.xlu0 %580
  %582 = vrot.lane.b32.xlu0 %v537, 56
  %v583 = vpop.permute.xlu0 %582
  %584 = vrot.lane.b32.xlu0 %v538, 56
  %v585 = vpop.permute.xlu0 %584
  %586 = vrot.lane.b32.xlu0 %v539, 56
  %v587 = vpop.permute.xlu0 %586
  %v604 = vmax.f32 %v427, %v557
  %v605 = vmax.f32 %v428, %v559
  %v606 = vmax.f32 %v429, %v561
  %v607 = vmax.f32 %v430, %v563
  %v608 = vmax.f32 %v431, %v565
  %v609 = vmax.f32 %v432, %v567
  %v610 = vmax.f32 %v433, %v569
  %v611 = vmax.f32 %v434, %v571
  %v612 = vmax.f32 %v435, %v573
  %v613 = vmax.f32 %v436, %v575
  %v614 = vmax.f32 %v437, %v577
  %v615 = vmax.f32 %v438, %v579
  %v616 = vmax.f32 %v439, %v581
  %v617 = vmax.f32 %v440, %v583
  %v618 = vmax.f32 %v441, %v585
  %v619 = vmax.f32 %v442, %v587
  %v620 = vpack.c.bf16 %v605, %v604
  %v621 = vpack.c.bf16 %v607, %v606
  %v622 = vpack.c.bf16 %v609, %v608
  %v623 = vpack.c.bf16 %v611, %v610
  %v624 = vpack.c.bf16 %v613, %v612
  %v625 = vpack.c.bf16 %v615, %v614
  %v626 = vpack.c.bf16 %v617, %v616
  %v627 = vpack.c.bf16 %v619, %v618
  %v636 = vunpack.c.l.b16 %v620
  %v637 = vunpack.c.h.b16 %v620
  %v638 = vunpack.c.l.b16 %v621
  %v639 = vunpack.c.h.b16 %v621
  %v640 = vunpack.c.l.b16 %v622
  %v641 = vunpack.c.h.b16 %v622
  %v642 = vunpack.c.l.b16 %v623
  %v643 = vunpack.c.h.b16 %v623
  %v644 = vunpack.c.l.b16 %v624
  %v645 = vunpack.c.h.b16 %v624
  %v646 = vunpack.c.l.b16 %v625
  %v647 = vunpack.c.h.b16 %v625
  %v648 = vunpack.c.l.b16 %v626
  %v649 = vunpack.c.h.b16 %v626
  %v650 = vunpack.c.l.b16 %v627
  %v651 = vunpack.c.h.b16 %v627
  %v652 = vpack.c.b16 %v636, %v636
  %v653 = vpack.c.b16 %v637, %v637
  %v654 = vpack.c.b16 %v638, %v638
  %v655 = vpack.c.b16 %v639, %v639
  %v656 = vpack.c.b16 %v640, %v640
  %v657 = vpack.c.b16 %v641, %v641
  %v658 = vpack.c.b16 %v642, %v642
  %v659 = vpack.c.b16 %v643, %v643
  %v660 = vpack.c.b16 %v644, %v644
  %v661 = vpack.c.b16 %v645, %v645
  %v662 = vpack.c.b16 %v646, %v646
  %v663 = vpack.c.b16 %v647, %v647
  %v664 = vpack.c.b16 %v648, %v648
  %v665 = vpack.c.b16 %v649, %v649
  %v666 = vpack.c.b16 %v650, %v650
  %v667 = vpack.c.b16 %v651, %v651
  %vm684 = vcmask 289792
  %685 = vst.msk [vmem:[%s2] sm:$0xf] %vm684, %v652
  %686 = vst.msk [vmem:[%s2 + $0x4] sm:$0xf] %vm684, %v653
  %687 = vst.msk [vmem:[%s2 + $0x8] sm:$0xf] %vm684, %v654
  %688 = vst.msk [vmem:[%s2 + $0xc] sm:$0xf] %vm684, %v655
  %689 = vst.msk [vmem:[%s2 + $0x10] sm:$0xf] %vm684, %v656
  %690 = vst.msk [vmem:[%s2 + $0x14] sm:$0xf] %vm684, %v657
  %691 = vst.msk [vmem:[%s2 + $0x18] sm:$0xf] %vm684, %v658
  %692 = vst.msk [vmem:[%s2 + $0x1c] sm:$0xf] %vm684, %v659
  %693 = vst.msk [vmem:[%s2 + $0x20] sm:$0xf] %vm684, %v660
  %694 = vst.msk [vmem:[%s2 + $0x24] sm:$0xf] %vm684, %v661
  %695 = vst.msk [vmem:[%s2 + $0x28] sm:$0xf] %vm684, %v662
  %696 = vst.msk [vmem:[%s2 + $0x2c] sm:$0xf] %vm684, %v663
  %697 = vst.msk [vmem:[%s2 + $0x30] sm:$0xf] %vm684, %v664
  %698 = vst.msk [vmem:[%s2 + $0x34] sm:$0xf] %vm684, %v665
  %699 = vst.msk [vmem:[%s2 + $0x38] sm:$0xf] %vm684, %v666
  %700 = vst.msk [vmem:[%s2 + $0x3c] sm:$0xf] %vm684, %v667
  // Predicated region
  $region10: #{cnn_backbone_forward.8} parent=0 // pred_check
    _
  $region11: #{cnn_backbone_forward.8} parent=0 // pred_check_branch
    %702 = sbr.rel (0) target = $region13
  $region12: #{cnn_backbone_forward.8} parent=0 // pred_region
    _
  $region13: #{cnn_backbone_forward.8} parent=0 // pred_fallthru
    _
  // Predicated region
  $region14: #{cnn_backbone_forward.8} parent=0 // pred_check
    _
  $region15: #{cnn_backbone_forward.8} parent=0 // pred_check_branch
    %704 = sbr.rel (0) target = $region17
  $region16: #{cnn_backbone_forward.8} parent=0 // pred_region
    _
  $region17: #{cnn_backbone_forward.8} parent=0 // pred_fallthru
    _

// kernel: cnn_backbone_forward.9
$region0: #{cnn_backbone_forward.9}
  #allocation0 [shape = 'u32[]', space=smem, size = 0x4, offset = 0x4, fixed_abs, tag = 'smem constant byte address 0x4 - core index']
  #allocation1 [shape = 'u32[144,128]{1,0:T(1,128)}', space=vmem, size = 0x12000, scoped, tag = 'internal scratch']
  %s0 = inlined_call_operand.vmem [shape: bf16[64,256], index: 0, kind: input, shape index: {}]
  %s1 = inlined_call_operand.vmem [shape: bf16[256,50], index: 1, kind: input, shape index: {}]
  %s2 = inlined_call_operand.vmem [shape: f32[64,1], index: 2, kind: input, shape index: {}]
  %s3 = inlined_call_operand.vmem [shape: bf16[64,50], index: 3, kind: output, shape index: {}]
  %s4 = sld [smem:[#allocation0]]
  $region22: #{cnn_backbone_forward.9} parent=0
    _
  %s6 = ssub.s32 1, %s4
  %s7 = scalar_select 0, %s6, %s4
  // Predicated region
  $region2: #{cnn_backbone_forward.9} parent=0 // pred_check
    _
  $region3: #{cnn_backbone_forward.9} parent=0 // pred_check_branch
    %9 = sbr.rel (0) target = $region5
  $region4: #{cnn_backbone_forward.9} parent=0 // pred_region
    _
  $region5: #{cnn_backbone_forward.9} parent=0 // pred_fallthru
    _
  // Predicated region
  $region6: #{cnn_backbone_forward.9} parent=0 // pred_check
    _
  $region7: #{cnn_backbone_forward.9} parent=0 // pred_check_branch
    %11 = sbr.rel (0) target = $region9
  $region8: #{cnn_backbone_forward.9} parent=0 // pred_region
    _
  $region9: #{cnn_backbone_forward.9} parent=0 // pred_fallthru
    _
  // Predicated region
  $region10: #{cnn_backbone_forward.9} parent=0 // pred_check
    _
  $region11: #{cnn_backbone_forward.9} parent=0 // pred_check_branch
    %13 = sbr.rel (0) target = $region13
  $region12: #{cnn_backbone_forward.9} parent=0 // pred_region
    _
  $region13: #{cnn_backbone_forward.9} parent=0 // pred_fallthru
    _
  %v15 = vld [vmem:[%s0] sm:$0xff]
  %v16 = vld [vmem:[%s0 + $0x8] sm:$0xff]
  %v17 = vld [vmem:[%s0 + $0x10] sm:$0xff]
  %v18 = vld [vmem:[%s0 + $0x18] sm:$0xff]
  %v19 = vld [vmem:[%s0 + $0x20] sm:$0xff]
  %v20 = vld [vmem:[%s0 + $0x28] sm:$0xff]
  %v21 = vld [vmem:[%s0 + $0x30] sm:$0xff]
  %v22 = vld [vmem:[%s0 + $0x38] sm:$0xff]
  %v23 = vld [vmem:[%s1] sm:$0xf]
  %v24 = vld [vmem:[%s1 + $0x4] sm:$0xf]
  %v25 = vld [vmem:[%s1 + $0x8] sm:$0xf]
  %v26 = vld [vmem:[%s1 + $0xc] sm:$0xf]
  %v27 = vld [vmem:[%s1 + $0x10] sm:$0xf]
  %v28 = vld [vmem:[%s1 + $0x14] sm:$0xf]
  %v29 = vld [vmem:[%s1 + $0x18] sm:$0xf]
  %v30 = vld [vmem:[%s1 + $0x1c] sm:$0xf]
  %v31 = vld [vmem:[%s1 + $0x20] sm:$0xf]
  %v32 = vld [vmem:[%s1 + $0x24] sm:$0xf]
  %v33 = vld [vmem:[%s1 + $0x28] sm:$0xf]
  %v34 = vld [vmem:[%s1 + $0x2c] sm:$0xf]
  %v35 = vld [vmem:[%s1 + $0x30] sm:$0xf]
  %v36 = vld [vmem:[%s1 + $0x34] sm:$0xf]
  %v37 = vld [vmem:[%s1 + $0x38] sm:$0xf]
  %v38 = vld [vmem:[%s1 + $0x3c] sm:$0xf]
  %v39 = vld [vmem:[%s1 + $0x40] sm:$0xf]
  %v40 = vld [vmem:[%s1 + $0x44] sm:$0xf]
  %v41 = vld [vmem:[%s1 + $0x48] sm:$0xf]
  %v42 = vld [vmem:[%s1 + $0x4c] sm:$0xf]
  %v43 = vld [vmem:[%s1 + $0x50] sm:$0xf]
  %v44 = vld [vmem:[%s1 + $0x54] sm:$0xf]
  %v45 = vld [vmem:[%s1 + $0x58] sm:$0xf]
  %v46 = vld [vmem:[%s1 + $0x5c] sm:$0xf]
  %v47 = vld [vmem:[%s1 + $0x60] sm:$0xf]
  %v48 = vld [vmem:[%s1 + $0x64] sm:$0xf]
  %v49 = vld [vmem:[%s1 + $0x68] sm:$0xf]
  %v50 = vld [vmem:[%s1 + $0x6c] sm:$0xf]
  %v51 = vld [vmem:[%s1 + $0x70] sm:$0xf]
  %v52 = vld [vmem:[%s1 + $0x74] sm:$0xf]
  %v53 = vld [vmem:[%s1 + $0x78] sm:$0xf]
  %v54 = vld [vmem:[%s1 + $0x7c] sm:$0xf]
  %v55 = vld [vmem:[%s2] sm:$0xff]
  %v56 = vld [vmem:[%s2 + $0x8] sm:$0xff]
  %v57 = vld [vmem:[%s2 + $0x10] sm:$0xff]
  %v58 = vld [vmem:[%s2 + $0x18] sm:$0xff]
  %v59 = vld [vmem:[%s2 + $0x20] sm:$0xff]
  %v60 = vld [vmem:[%s2 + $0x28] sm:$0xff]
  %v61 = vld [vmem:[%s2 + $0x30] sm:$0xff]
  %v62 = vld [vmem:[%s2 + $0x38] sm:$0xff]
  %64 = vset.pattern.permute.xlu0 0
  %65 = vperm.xlu0 %64, %v55
  %v66 = vpop.permute.xlu0 %65
  %69 = vset.pattern.permute.xlu0 0
  %70 = vperm.xlu0 %69, %v56
  %v71 = vpop.permute.xlu0 %70
  %74 = vset.pattern.permute.xlu0 0
  %75 = vperm.xlu0 %74, %v57
  %v76 = vpop.permute.xlu0 %75
  %79 = vset.pattern.permute.xlu0 0
  %80 = vperm.xlu0 %79, %v58
  %v81 = vpop.permute.xlu0 %80
  %84 = vset.pattern.permute.xlu0 0
  %85 = vperm.xlu0 %84, %v59
  %v86 = vpop.permute.xlu0 %85
  %89 = vset.pattern.permute.xlu0 0
  %90 = vperm.xlu0 %89, %v60
  %v91 = vpop.permute.xlu0 %90
  %94 = vset.pattern.permute.xlu0 0
  %95 = vperm.xlu0 %94, %v61
  %v96 = vpop.permute.xlu0 %95
  %99 = vset.pattern.permute.xlu0 0
  %100 = vperm.xlu0 %99, %v62
  %v101 = vpop.permute.xlu0 %100
  %v111 = vunpack.c.l.b16 %v15
  %v112 = vunpack.c.h.b16 %v15
  %v113 = vunpack.c.l.b16 %v16
  %v114 = vunpack.c.h.b16 %v16
  %v115 = vunpack.c.l.b16 %v17
  %v116 = vunpack.c.h.b16 %v17
  %v117 = vunpack.c.l.b16 %v18
  %v118 = vunpack.c.h.b16 %v18
  %v119 = vunpack.c.l.b16 %v19
  %v120 = vunpack.c.h.b16 %v19
  %v121 = vunpack.c.l.b16 %v20
  %v122 = vunpack.c.h.b16 %v20
  %v123 = vunpack.c.l.b16 %v21
  %v124 = vunpack.c.h.b16 %v21
  %v125 = vunpack.c.l.b16 %v22
  %v126 = vunpack.c.h.b16 %v22
  %v127 = vpack.c.b16 %v113, %v111
  %v128 = vpack.c.b16 %v114, %v112
  %v129 = vpack.c.b16 %v117, %v115
  %v130 = vpack.c.b16 %v118, %v116
  %v131 = vpack.c.b16 %v121, %v119
  %v132 = vpack.c.b16 %v122, %v120
  %v133 = vpack.c.b16 %v125, %v123
  %v134 = vpack.c.b16 %v126, %v124
  %v175 = vunpack.c.l.b16 %v23
  %v176 = vunpack.c.l.b16 %v24
  %v177 = vunpack.c.l.b16 %v25
  %v178 = vunpack.c.l.b16 %v26
  %v179 = vunpack.c.l.b16 %v27
  %v180 = vunpack.c.l.b16 %v28
  %v181 = vunpack.c.l.b16 %v29
  %v182 = vunpack.c.l.b16 %v30
  %v183 = vunpack.c.l.b16 %v31
  %v184 = vunpack.c.l.b16 %v32
  %v185 = vunpack.c.l.b16 %v33
  %v186 = vunpack.c.l.b16 %v34
  %v187 = vunpack.c.l.b16 %v35
  %v188 = vunpack.c.l.b16 %v36
  %v189 = vunpack.c.l.b16 %v37
  %v190 = vunpack.c.l.b16 %v38
  %v191 = vunpack.c.l.b16 %v39
  %v192 = vunpack.c.l.b16 %v40
  %v193 = vunpack.c.l.b16 %v41
  %v194 = vunpack.c.l.b16 %v42
  %v195 = vunpack.c.l.b16 %v43
  %v196 = vunpack.c.l.b16 %v44
  %v197 = vunpack.c.l.b16 %v45
  %v198 = vunpack.c.l.b16 %v46
  %v199 = vunpack.c.l.b16 %v47
  %v200 = vunpack.c.l.b16 %v48
  %v201 = vunpack.c.l.b16 %v49
  %v202 = vunpack.c.l.b16 %v50
  %v203 = vunpack.c.l.b16 %v51
  %v204 = vunpack.c.l.b16 %v52
  %v205 = vunpack.c.l.b16 %v53
  %v206 = vunpack.c.l.b16 %v54
  %v207 = vpack.c.b16 %v176, %v175
  %v208 = vpack.c.b16 %v178, %v177
  %v209 = vpack.c.b16 %v180, %v179
  %v210 = vpack.c.b16 %v182, %v181
  %v211 = vpack.c.b16 %v184, %v183
  %v212 = vpack.c.b16 %v186, %v185
  %v213 = vpack.c.b16 %v188, %v187
  %v214 = vpack.c.b16 %v190, %v189
  %v215 = vpack.c.b16 %v192, %v191
  %v216 = vpack.c.b16 %v194, %v193
  %v217 = vpack.c.b16 %v196, %v195
  %v218 = vpack.c.b16 %v198, %v197
  %v219 = vpack.c.b16 %v200, %v199
  %v220 = vpack.c.b16 %v202, %v201
  %v221 = vpack.c.b16 %v204, %v203
  %v222 = vpack.c.b16 %v206, %v205
  %239 = vmatprep.subr.bf16.mxu0 0
  %240 = vmatpush1.bf16.msra.mxu0 %v207
  %241 = vmatprep.subr.bf16.mxu0 0
  %242 = vmatpush1.bf16.msra.mxu0 %v208
  %243 = vmatprep.subr.bf16.mxu0 0
  %244 = vmatpush1.bf16.msra.mxu0 %v209
  %245 = vmatprep.subr.bf16.mxu0 0
  %246 = vmatpush1.bf16.msra.mxu0 %v210
  %247 = vmatprep.subr.bf16.mxu0 0
  %248 = vmatpush1.bf16.msra.mxu0 %v211
  %249 = vmatprep.subr.bf16.mxu0 0
  %250 = vmatpush1.bf16.msra.mxu0 %v212
  %251 = vmatprep.subr.bf16.mxu0 0
  %252 = vmatpush1.bf16.msra.mxu0 %v213
  %253 = vmatprep.subr.bf16.mxu0 0
  %254 = vmatpush1.bf16.msra.mxu0 %v214
  %255 = vmatprep.subr.bf16.mxu0 0
  %256 = vmatpush1.bf16.msra.mxu0 %v215
  %257 = vmatprep.subr.bf16.mxu0 0
  %258 = vmatpush1.bf16.msra.mxu0 %v216
  %259 = vmatprep.subr.bf16.mxu0 0
  %260 = vmatpush1.bf16.msra.mxu0 %v217
  %261 = vmatprep.subr.bf16.mxu0 0
  %262 = vmatpush1.bf16.msra.mxu0 %v218
  %263 = vmatprep.subr.bf16.mxu0 0
  %264 = vmatpush1.bf16.msra.mxu0 %v219
  %265 = vmatprep.subr.bf16.mxu0 0
  %266 = vmatpush1.bf16.msra.mxu0 %v220
  %267 = vmatprep.subr.bf16.mxu0 0
  %268 = vmatpush1.bf16.msra.mxu0 %v221
  %269 = vmatprep.subr.bf16.mxu0 0
  %270 = vmatpush1.bf16.msra.mxu0 %v222
  %271 = vmatprep.mubr.bf16.mxu0 %v128
  %272 = vmatmul.mubr.bf16.gmra.mrb[0].mxu0 %v127
  %v273 = vpop.f32.mrb[0].mxu0
  %v274 = vadd.f32 %v66, %v273
  %v275 = vpop.f32.mrb[0].mxu0
  %v276 = vpop.f32.mrb[0].mxu0
  %v277 = vadd.f32 %v71, %v276
  %v278 = vpop.f32.mrb[0].mxu0
  %279 = vmatprep.mubr.bf16.mxu0 %v130
  %280 = vmatmul.mubr.bf16.gmra.mrb[0].mxu0 %v129
  %v281 = vpop.f32.mrb[0].mxu0
  %v282 = vadd.f32 %v76, %v281
  %v283 = vpop.f32.mrb[0].mxu0
  %v284 = vpop.f32.mrb[0].mxu0
  %v285 = vadd.f32 %v81, %v284
  %v286 = vpop.f32.mrb[0].mxu0
  %287 = vmatprep.mubr.bf16.mxu0 %v132
  %288 = vmatmul.mubr.bf16.gmra.mrb[0].mxu0 %v131
  %v289 = vpop.f32.mrb[0].mxu0
  %v290 = vadd.f32 %v86, %v289
  %v291 = vpop.f32.mrb[0].mxu0
  %v292 = vpop.f32.mrb[0].mxu0
  %v293 = vadd.f32 %v91, %v292
  %v294 = vpop.f32.mrb[0].mxu0
  %295 = vmatprep.mubr.bf16.mxu0 %v134
  %296 = vmatmul.mubr.bf16.gmra.mrb[0].mxu0 %v133
  %v297 = vpop.f32.mrb[0].mxu0
  %v298 = vadd.f32 %v96, %v297
  %v299 = vpop.f32.mrb[0].mxu0
  %v300 = vpop.f32.mrb[0].mxu0
  %v301 = vadd.f32 %v101, %v300
  %v302 = vpop.f32.mrb[0].mxu0
  %303 = vdwg.mxu0
  %v304 = vpack.c.bf16 %v277, %v274
  %v305 = vpack.c.bf16 %v285, %v282
  %v306 = vpack.c.bf16 %v293, %v290
  %v307 = vpack.c.bf16 %v301, %v298
  %v312 = vunpack.c.l.b16 %v304
  %v313 = vunpack.c.h.b16 %v304
  %v314 = vunpack.c.l.b16 %v305
  %v315 = vunpack.c.h.b16 %v305
  %v316 = vunpack.c.l.b16 %v306
  %v317 = vunpack.c.h.b16 %v306
  %v318 = vunpack.c.l.b16 %v307
  %v319 = vunpack.c.h.b16 %v307
  %v320 = vpack.c.b16 %v312, %v312
  %v321 = vpack.c.b16 %v313, %v313
  %v322 = vpack.c.b16 %v314, %v314
  %v323 = vpack.c.b16 %v315, %v315
  %v324 = vpack.c.b16 %v316, %v316
  %v325 = vpack.c.b16 %v317, %v317
  %v326 = vpack.c.b16 %v318, %v318
  %v327 = vpack.c.b16 %v319, %v319
  %336 = vst [vmem:[%s3] sm:$0xf] %v320
  %337 = vst [vmem:[%s3 + $0x4] sm:$0xf] %v321
  %338 = vst [vmem:[%s3 + $0x8] sm:$0xf] %v322
  %339 = vst [vmem:[%s3 + $0xc] sm:$0xf] %v323
  %340 = vst [vmem:[%s3 + $0x10] sm:$0xf] %v324
  %341 = vst [vmem:[%s3 + $0x14] sm:$0xf] %v325
  %342 = vst [vmem:[%s3 + $0x18] sm:$0xf] %v326
  %343 = vst [vmem:[%s3 + $0x1c] sm:$0xf] %v327
  // Predicated region
  $region14: #{cnn_backbone_forward.9} parent=0 // pred_check
    _
  $region15: #{cnn_backbone_forward.9} parent=0 // pred_check_branch
    %345 = sbr.rel (0) target = $region17
  $region16: #{cnn_backbone_forward.9} parent=0 // pred_region
    _
  $region17: #{cnn_backbone_forward.9} parent=0 // pred_fallthru
    _
  // Predicated region
  $region18: #{cnn_backbone_forward.9} parent=0 // pred_check
    _
  $region19: #{cnn_backbone_forward.9} parent=0 // pred_check_branch
    %347 = sbr.rel (0) target = $region21
  $region20: #{cnn_backbone_forward.9} parent=0 // pred_region
    _
  $region21: #{cnn_backbone_forward.9} parent=0 // pred_fallthru
    _

// kernel: cnn_backbone_forward.10
$region0: #{cnn_backbone_forward.10}
  #allocation0 [shape = 'u32[]', space=smem, size = 0x4, offset = 0x4, fixed_abs, tag = 'smem constant byte address 0x4 - core index']
  #allocation1 [shape = 'u32[144,128]{1,0:T(1,128)}', space=vmem, size = 0x12000, scoped, tag = 'internal scratch']
  %s0 = inlined_call_operand.vmem [shape: bf16[128,25], index: 0, kind: input, shape index: {}]
  %s1 = inlined_call_operand.vmem [shape: bf16[25,16], index: 1, kind: input, shape index: {}]
  %s2 = inlined_call_operand.vmem [shape: bf16[128,4], index: 2, kind: output, shape index: {}]
  %s3 = sld [smem:[#allocation0]]
  $region18: #{cnn_backbone_forward.10} parent=0
    _
  %s5 = ssub.s32 1, %s3
  %s6 = scalar_select 0, %s5, %s3
  // Predicated region
  $region2: #{cnn_backbone_forward.10} parent=0 // pred_check
    _
  $region3: #{cnn_backbone_forward.10} parent=0 // pred_check_branch
    %8 = sbr.rel (0) target = $region5
  $region4: #{cnn_backbone_forward.10} parent=0 // pred_region
    _
  $region5: #{cnn_backbone_forward.10} parent=0 // pred_fallthru
    _
  // Predicated region
  $region6: #{cnn_backbone_forward.10} parent=0 // pred_check
    _
  $region7: #{cnn_backbone_forward.10} parent=0 // pred_check_branch
    %10 = sbr.rel (0) target = $region9
  $region8: #{cnn_backbone_forward.10} parent=0 // pred_region
    _
  $region9: #{cnn_backbone_forward.10} parent=0 // pred_fallthru
    _
  %v12 = vld [vmem:[%s0] sm:$0xf]
  %v13 = vld [vmem:[%s0 + $0x4] sm:$0xf]
  %v14 = vld [vmem:[%s0 + $0x8] sm:$0xf]
  %v15 = vld [vmem:[%s0 + $0xc] sm:$0xf]
  %v16 = vld [vmem:[%s0 + $0x10] sm:$0xf]
  %v17 = vld [vmem:[%s0 + $0x14] sm:$0xf]
  %v18 = vld [vmem:[%s0 + $0x18] sm:$0xf]
  %v19 = vld [vmem:[%s0 + $0x1c] sm:$0xf]
  %v20 = vld [vmem:[%s0 + $0x20] sm:$0xf]
  %v21 = vld [vmem:[%s0 + $0x24] sm:$0xf]
  %v22 = vld [vmem:[%s0 + $0x28] sm:$0xf]
  %v23 = vld [vmem:[%s0 + $0x2c] sm:$0xf]
  %v24 = vld [vmem:[%s0 + $0x30] sm:$0xf]
  %v25 = vld [vmem:[%s0 + $0x34] sm:$0xf]
  %v26 = vld [vmem:[%s0 + $0x38] sm:$0xf]
  %v27 = vld [vmem:[%s0 + $0x3c] sm:$0xf]
  %v28 = vld [vmem:[%s1] sm:$0xf]
  %v29 = vld [vmem:[%s1 + $0x4] sm:$0xf]
  %v30 = vld [vmem:[%s1 + $0x8] sm:$0xf]
  %v31 = vld [vmem:[%s1 + $0xc] sm:$0x1]
  %v48 = vunpack.c.l.b16 %v12
  %v49 = vunpack.c.l.b16 %v13
  %v50 = vunpack.c.l.b16 %v14
  %v51 = vunpack.c.l.b16 %v15
  %v52 = vunpack.c.l.b16 %v16
  %v53 = vunpack.c.l.b16 %v17
  %v54 = vunpack.c.l.b16 %v18
  %v55 = vunpack.c.l.b16 %v19
  %v56 = vunpack.c.l.b16 %v20
  %v57 = vunpack.c.l.b16 %v21
  %v58 = vunpack.c.l.b16 %v22
  %v59 = vunpack.c.l.b16 %v23
  %v60 = vunpack.c.l.b16 %v24
  %v61 = vunpack.c.l.b16 %v25
  %v62 = vunpack.c.l.b16 %v26
  %v63 = vunpack.c.l.b16 %v27
  %v64 = vpack.c.b16 %v49, %v48
  %v65 = vpack.c.b16 %v51, %v50
  %v66 = vpack.c.b16 %v53, %v52
  %v67 = vpack.c.b16 %v55, %v54
  %v68 = vpack.c.b16 %v57, %v56
  %v69 = vpack.c.b16 %v59, %v58
  %v70 = vpack.c.b16 %v61, %v60
  %v71 = vpack.c.b16 %v63, %v62
  %v76 = vunpack.c.l.b16 %v28
  %v77 = vunpack.c.l.b16 %v29
  %v78 = vunpack.c.l.b16 %v30
  %v79 = vunpack.c.l.b16 %v31
  %v80 = vpack.c.b16 %v77, %v76
  %v81 = vpack.c.b16 %v79, %v78
  %vm83 = vcmask 203776
  %v85 = vsel %vm83, %v64, 0
  %v88 = vsel %vm83, %v65, 0
  %v91 = vsel %vm83, %v66, 0
  %v94 = vsel %vm83, %v67, 0
  %v97 = vsel %vm83, %v68, 0
  %v100 = vsel %vm83, %v69, 0
  %v103 = vsel %vm83, %v70, 0
  %v106 = vsel %vm83, %v71, 0
  %vm108 = vcmask 1043456
  %vm109 = vcmask 1044480
  %v110 = vsel %vm108, 4294967295, 65535
  %v111 = vsel %vm109, %v110, 0
  %v113 = vand.u32 %v81, %v111
  %115 = vmatprep.subr.bf16.mxu0 0
  %116 = vmatpush1.bf16.msra.mxu0 %v80
  %117 = vmatprep.subr.bf16.mxu0 0
  %118 = vmatpush1.bf16.msra.mxu0 %v113
  %119 = vmatprep.subr.bf16.mxu0 0
  %120 = vmatpush1.bf16.msra.mxu0 0
  %121 = vmatprep.subr.bf16.mxu0 0
  %122 = vmatpush1.bf16.msra.mxu0 0
  %123 = vmatprep.subr.bf16.mxu0 0
  %124 = vmatpush1.bf16.msra.mxu0 0
  %125 = vmatprep.subr.bf16.mxu0 0
  %126 = vmatpush1.bf16.msra.mxu0 0
  %127 = vmatprep.subr.bf16.mxu0 0
  %128 = vmatpush1.bf16.msra.mxu0 0
  %129 = vmatprep.subr.bf16.mxu0 0
  %130 = vmatpush1.bf16.msra.mxu0 0
  %131 = vmatprep.subr.bf16.mxu0 0
  %132 = vmatpush1.bf16.msra.mxu0 0
  %133 = vmatprep.subr.bf16.mxu0 0
  %134 = vmatpush1.bf16.msra.mxu0 0
  %135 = vmatprep.subr.bf16.mxu0 0
  %136 = vmatpush1.bf16.msra.mxu0 0
  %137 = vmatprep.subr.bf16.mxu0 0
  %138 = vmatpush1.bf16.msra.mxu0 0
  %139 = vmatprep.subr.bf16.mxu0 0
  %140 = vmatpush1.bf16.msra.mxu0 0
  %141 = vmatprep.subr.bf16.mxu0 0
  %142 = vmatpush1.bf16.msra.mxu0 0
  %143 = vmatprep.subr.bf16.mxu0 0
  %144 = vmatpush1.bf16.msra.mxu0 0
  %145 = vmatprep.subr.bf16.mxu0 0
  %146 = vmatpush1.bf16.msra.mxu0 0
  %147 = vmatprep.mubr.bf16.mxu0 0
  %148 = vmatmul.mubr.bf16.gmra.mrb[0].mxu0 %v85
  %v149 = vpop.f32.mrb[0].mxu0
  %v150 = vadd.f32 0.0, %v149
  %v151 = vpop.f32.mrb[0].mxu0
  %v152 = vpop.f32.mrb[0].mxu0
  %v153 = vadd.f32 0.0, %v152
  %v154 = vpop.f32.mrb[0].mxu0
  %155 = vmatprep.mubr.bf16.mxu0 0
  %156 = vmatmul.mubr.bf16.gmra.mrb[0].mxu0 %v88
  %v157 = vpop.f32.mrb[0].mxu0
  %v158 = vadd.f32 0.0, %v157
  %v159 = vpop.f32.mrb[0].mxu0
  %v160 = vpop.f32.mrb[0].mxu0
  %v161 = vadd.f32 0.0, %v160
  %v162 = vpop.f32.mrb[0].mxu0
  %163 = vmatprep.mubr.bf16.mxu0 0
  %164 = vmatmul.mubr.bf16.gmra.mrb[0].mxu0 %v91
  %v165 = vpop.f32.mrb[0].mxu0
  %v166 = vadd.f32 0.0, %v165
  %v167 = vpop.f32.mrb[0].mxu0
  %v168 = vpop.f32.mrb[0].mxu0
  %v169 = vadd.f32 0.0, %v168
  %v170 = vpop.f32.mrb[0].mxu0
  %171 = vmatprep.mubr.bf16.mxu0 0
  %172 = vmatmul.mubr.bf16.gmra.mrb[0].mxu0 %v94
  %v173 = vpop.f32.mrb[0].mxu0
  %v174 = vadd.f32 0.0, %v173
  %v175 = vpop.f32.mrb[0].mxu0
  %v176 = vpop.f32.mrb[0].mxu0
  %v177 = vadd.f32 0.0, %v176
  %v178 = vpop.f32.mrb[0].mxu0
  %179 = vmatprep.mubr.bf16.mxu0 0
  %180 = vmatmul.mubr.bf16.gmra.mrb[0].mxu0 %v97
  %v181 = vpop.f32.mrb[0].mxu0
  %v182 = vadd.f32 0.0, %v181
  %v183 = vpop.f32.mrb[0].mxu0
  %v184 = vpop.f32.mrb[0].mxu0
  %v185 = vadd.f32 0.0, %v184
  %v186 = vpop.f32.mrb[0].mxu0
  %187 = vmatprep.mubr.bf16.mxu0 0
  %188 = vmatmul.mubr.bf16.gmra.mrb[0].mxu0 %v100
  %v189 = vpop.f32.mrb[0].mxu0
  %v190 = vadd.f32 0.0, %v189
  %v191 = vpop.f32.mrb[0].mxu0
  %v192 = vpop.f32.mrb[0].mxu0
  %v193 = vadd.f32 0.0, %v192
  %v194 = vpop.f32.mrb[0].mxu0
  %195 = vmatprep.mubr.bf16.mxu0 0
  %196 = vmatmul.mubr.bf16.gmra.mrb[0].mxu0 %v103
  %v197 = vpop.f32.mrb[0].mxu0
  %v198 = vadd.f32 0.0, %v197
  %v199 = vpop.f32.mrb[0].mxu0
  %v200 = vpop.f32.mrb[0].mxu0
  %v201 = vadd.f32 0.0, %v200
  %v202 = vpop.f32.mrb[0].mxu0
  %203 = vmatprep.mubr.bf16.mxu0 0
  %204 = vmatmul.mubr.bf16.gmra.mrb[0].mxu0 %v106
  %v205 = vpop.f32.mrb[0].mxu0
  %v206 = vadd.f32 0.0, %v205
  %v207 = vpop.f32.mrb[0].mxu0
  %v208 = vpop.f32.mrb[0].mxu0
  %v209 = vadd.f32 0.0, %v208
  %v210 = vpop.f32.mrb[0].mxu0
  %211 = vdwg.mxu0
  %228 = vrot.lane.b32.xlu0 %v150, 124
  %v229 = vpop.permute.xlu0 %228
  %230 = vrot.lane.b32.xlu0 %v153, 124
  %v231 = vpop.permute.xlu0 %230
  %232 = vrot.lane.b32.xlu0 %v158, 124
  %v233 = vpop.permute.xlu0 %232
  %234 = vrot.lane.b32.xlu0 %v161, 124
  %v235 = vpop.permute.xlu0 %234
  %236 = vrot.lane.b32.xlu0 %v166, 124
  %v237 = vpop.permute.xlu0 %236
  %238 = vrot.lane.b32.xlu0 %v169, 124
  %v239 = vpop.permute.xlu0 %238
  %240 = vrot.lane.b32.xlu0 %v174, 124
  %v241 = vpop.permute.xlu0 %240
  %242 = vrot.lane.b32.xlu0 %v177, 124
  %v243 = vpop.permute.xlu0 %242
  %244 = vrot.lane.b32.xlu0 %v182, 124
  %v245 = vpop.permute.xlu0 %244
  %246 = vrot.lane.b32.xlu0 %v185, 124
  %v247 = vpop.permute.xlu0 %246
  %248 = vrot.lane.b32.xlu0 %v190, 124
  %v249 = vpop.permute.xlu0 %248
  %250 = vrot.lane.b32.xlu0 %v193, 124
  %v251 = vpop.permute.xlu0 %250
  %252 = vrot.lane.b32.xlu0 %v198, 124
  %v253 = vpop.permute.xlu0 %252
  %254 = vrot.lane.b32.xlu0 %v201, 124
  %v255 = vpop.permute.xlu0 %254
  %256 = vrot.lane.b32.xlu0 %v206, 124
  %v257 = vpop.permute.xlu0 %256
  %258 = vrot.lane.b32.xlu0 %v209, 124
  %v259 = vpop.permute.xlu0 %258
  %v276 = vmax.f32 %v150, %v229
  %v277 = vmax.f32 %v153, %v231
  %v278 = vmax.f32 %v158, %v233
  %v279 = vmax.f32 %v161, %v235
  %v280 = vmax.f32 %v166, %v237
  %v281 = vmax.f32 %v169, %v239
  %v282 = vmax.f32 %v174, %v241
  %v283 = vmax.f32 %v177, %v243
  %v284 = vmax.f32 %v182, %v245
  %v285 = vmax.f32 %v185, %v247
  %v286 = vmax.f32 %v190, %v249
  %v287 = vmax.f32 %v193, %v251
  %v288 = vmax.f32 %v198, %v253
  %v289 = vmax.f32 %v201, %v255
  %v290 = vmax.f32 %v206, %v257
  %v291 = vmax.f32 %v209, %v259
  %308 = vrot.lane.b32.xlu0 %v276, 120
  %v309 = vpop.permute.xlu0 %308
  %310 = vrot.lane.b32.xlu0 %v277, 120
  %v311 = vpop.permute.xlu0 %310
  %312 = vrot.lane.b32.xlu0 %v278, 120
  %v313 = vpop.permute.xlu0 %312
  %314 = vrot.lane.b32.xlu0 %v279, 120
  %v315 = vpop.permute.xlu0 %314
  %316 = vrot.lane.b32.xlu0 %v280, 120
  %v317 = vpop.permute.xlu0 %316
  %318 = vrot.lane.b32.xlu0 %v281, 120
  %v319 = vpop.permute.xlu0 %318
  %320 = vrot.lane.b32.xlu0 %v282, 120
  %v321 = vpop.permute.xlu0 %320
  %322 = vrot.lane.b32.xlu0 %v283, 120
  %v323 = vpop.permute.xlu0 %322
  %324 = vrot.lane.b32.xlu0 %v284, 120
  %v325 = vpop.permute.xlu0 %324
  %326 = vrot.lane.b32.xlu0 %v285, 120
  %v327 = vpop.permute.xlu0 %326
  %328 = vrot.lane.b32.xlu0 %v286, 120
  %v329 = vpop.permute.xlu0 %328
  %330 = vrot.lane.b32.xlu0 %v287, 120
  %v331 = vpop.permute.xlu0 %330
  %332 = vrot.lane.b32.xlu0 %v288, 120
  %v333 = vpop.permute.xlu0 %332
  %334 = vrot.lane.b32.xlu0 %v289, 120
  %v335 = vpop.permute.xlu0 %334
  %336 = vrot.lane.b32.xlu0 %v290, 120
  %v337 = vpop.permute.xlu0 %336
  %338 = vrot.lane.b32.xlu0 %v291, 120
  %v339 = vpop.permute.xlu0 %338
  %v356 = vmax.f32 %v276, %v309
  %v357 = vmax.f32 %v277, %v311
  %v358 = vmax.f32 %v278, %v313
  %v359 = vmax.f32 %v279, %v315
  %v360 = vmax.f32 %v280, %v317
  %v361 = vmax.f32 %v281, %v319
  %v362 = vmax.f32 %v282, %v321
  %v363 = vmax.f32 %v283, %v323
  %v364 = vmax.f32 %v284, %v325
  %v365 = vmax.f32 %v285, %v327
  %v366 = vmax.f32 %v286, %v329
  %v367 = vmax.f32 %v287, %v331
  %v368 = vmax.f32 %v288, %v333
  %v369 = vmax.f32 %v289, %v335
  %v370 = vmax.f32 %v290, %v337
  %v371 = vmax.f32 %v291, %v339
  %v372 = vpack.c.bf16 %v357, %v356
  %v373 = vpack.c.bf16 %v359, %v358
  %v374 = vpack.c.bf16 %v361, %v360
  %v375 = vpack.c.bf16 %v363, %v362
  %v376 = vpack.c.bf16 %v365, %v364
  %v377 = vpack.c.bf16 %v367, %v366
  %v378 = vpack.c.bf16 %v369, %v368
  %v379 = vpack.c.bf16 %v371, %v370
  %v388 = vunpack.c.l.b16 %v372
  %v389 = vunpack.c.h.b16 %v372
  %v390 = vunpack.c.l.b16 %v373
  %v391 = vunpack.c.h.b16 %v373
  %v392 = vunpack.c.l.b16 %v374
  %v393 = vunpack.c.h.b16 %v374
  %v394 = vunpack.c.l.b16 %v375
  %v395 = vunpack.c.h.b16 %v375
  %v396 = vunpack.c.l.b16 %v376
  %v397 = vunpack.c.h.b16 %v376
  %v398 = vunpack.c.l.b16 %v377
  %v399 = vunpack.c.h.b16 %v377
  %v400 = vunpack.c.l.b16 %v378
  %v401 = vunpack.c.h.b16 %v378
  %v402 = vunpack.c.l.b16 %v379
  %v403 = vunpack.c.h.b16 %v379
  %v404 = vpack.c.b16 %v388, %v388
  %v405 = vpack.c.b16 %v389, %v389
  %v406 = vpack.c.b16 %v390, %v390
  %v407 = vpack.c.b16 %v391, %v391
  %v408 = vpack.c.b16 %v392, %v392
  %v409 = vpack.c.b16 %v393, %v393
  %v410 = vpack.c.b16 %v394, %v394
  %v411 = vpack.c.b16 %v395, %v395
  %v412 = vpack.c.b16 %v396, %v396
  %v413 = vpack.c.b16 %v397, %v397
  %v414 = vpack.c.b16 %v398, %v398
  %v415 = vpack.c.b16 %v399, %v399
  %v416 = vpack.c.b16 %v400, %v400
  %v417 = vpack.c.b16 %v401, %v401
  %v418 = vpack.c.b16 %v402, %v402
  %v419 = vpack.c.b16 %v403, %v403
  %vm436 = vcmask 27648
  %437 = vst.msk [vmem:[%s2] sm:$0xf] %vm436, %v404
  %438 = vst.msk [vmem:[%s2 + $0x4] sm:$0xf] %vm436, %v405
  %439 = vst.msk [vmem:[%s2 + $0x8] sm:$0xf] %vm436, %v406
  %440 = vst.msk [vmem:[%s2 + $0xc] sm:$0xf] %vm436, %v407
  %441 = vst.msk [vmem:[%s2 + $0x10] sm:$0xf] %vm436, %v408
  %442 = vst.msk [vmem:[%s2 + $0x14] sm:$0xf] %vm436, %v409
  %443 = vst.msk [vmem:[%s2 + $0x18] sm:$0xf] %vm436, %v410
  %444 = vst.msk [vmem:[%s2 + $0x1c] sm:$0xf] %vm436, %v411
  %445 = vst.msk [vmem:[%s2 + $0x20] sm:$0xf] %vm436, %v412
  %446 = vst.msk [vmem:[%s2 + $0x24] sm:$0xf] %vm436, %v413
  %447 = vst.msk [vmem:[%s2 + $0x28] sm:$0xf] %vm436, %v414
  %448 = vst.msk [vmem:[%s2 + $0x2c] sm:$0xf] %vm436, %v415
  %449 = vst.msk [vmem:[%s2 + $0x30] sm:$0xf] %vm436, %v416
  %450 = vst.msk [vmem:[%s2 + $0x34] sm:$0xf] %vm436, %v417
  %451 = vst.msk [vmem:[%s2 + $0x38] sm:$0xf] %vm436, %v418
  %452 = vst.msk [vmem:[%s2 + $0x3c] sm:$0xf] %vm436, %v419
  // Predicated region
  $region10: #{cnn_backbone_forward.10} parent=0 // pred_check
    _
  $region11: #{cnn_backbone_forward.10} parent=0 // pred_check_branch
    %454 = sbr.rel (0) target = $region13
  $region12: #{cnn_backbone_forward.10} parent=0 // pred_region
    _
  $region13: #{cnn_backbone_forward.10} parent=0 // pred_fallthru
    _
  // Predicated region
  $region14: #{cnn_backbone_forward.10} parent=0 // pred_check
    _
  $region15: #{cnn_backbone_forward.10} parent=0 // pred_check_branch
    %456 = sbr.rel (0) target = $region17
  $region16: #{cnn_backbone_forward.10} parent=0 // pred_region
    _
  $region17: #{cnn_backbone_forward.10} parent=0 // pred_fallthru
    _

// kernel: cnn_backbone_forward.11
$region0: #{cnn_backbone_forward.11}
  #allocation0 [shape = 'u32[]', space=smem, size = 0x4, offset = 0x4, fixed_abs, tag = 'smem constant byte address 0x4 - core index']
  #allocation1 [shape = 'u32[144,128]{1,0:T(1,128)}', space=vmem, size = 0x12000, scoped, tag = 'internal scratch']
  %s0 = inlined_call_operand.vmem [shape: bf16[2,256], index: 0, kind: input, shape index: {}]
  %s1 = inlined_call_operand.vmem [shape: bf16[256,256], index: 1, kind: input, shape index: {}]
  %s2 = inlined_call_operand.vmem [shape: f32[1,256], index: 2, kind: input, shape index: {}]
  %s3 = inlined_call_operand.hbm [shape: f32[2,256], index: 3, kind: output, shape index: {}]
  %s4 = sld [smem:[#allocation0]]
  $region22: #{cnn_backbone_forward.11} parent=0
    _
  %s6 = ssub.s32 1, %s4
  %s7 = scalar_select 0, %s6, %s4
  $region1: #{cnn_backbone_forward.11} parent=0
    #allocation2 [shape = 'u8[16384]{0}', space=vmem, size = 0x4000, scoped, tag = 'output window, operand 0, single buffered']
    #allocation3 [shape = 's32[1]{0}', space=sflag, size = 0x4, scoped, tag = 'scoped memory for cnn_backbone_forward.11']
    %8 = vsyncpa [#allocation3], 0
    // Predicated region
    $region2: #{cnn_backbone_forward.11} parent=1 // pred_check
      _
    $region3: #{cnn_backbone_forward.11} parent=1 // pred_check_branch
      %10 = sbr.rel (0) target = $region5
    $region4: #{cnn_backbone_forward.11} parent=1 // pred_region
      _
    $region5: #{cnn_backbone_forward.11} parent=1 // pred_fallthru
      _
    // Predicated region
    $region6: #{cnn_backbone_forward.11} parent=1 // pred_check
      _
    $region7: #{cnn_backbone_forward.11} parent=1 // pred_check_branch
      %12 = sbr.rel (0) target = $region9
    $region8: #{cnn_backbone_forward.11} parent=1 // pred_region
      _
    $region9: #{cnn_backbone_forward.11} parent=1 // pred_fallthru
      _
    // Predicated region
    $region10: #{cnn_backbone_forward.11} parent=1 // pred_check
      _
    $region11: #{cnn_backbone_forward.11} parent=1 // pred_check_branch
      %14 = sbr.rel (0) target = $region13
    $region12: #{cnn_backbone_forward.11} parent=1 // pred_region
      _
    $region13: #{cnn_backbone_forward.11} parent=1 // pred_fallthru
      _
    %v15 = vld [vmem:[%s0] sm:$0x3]
    %v16 = vld [vmem:[%s0 + $0x2] sm:$0x3]
    %v17 = vld [vmem:[%s0 + $0x4] sm:$0x3]
    %v18 = vld [vmem:[%s0 + $0x6] sm:$0x3]
    %v19 = vld [vmem:[%s0 + $0x8] sm:$0x3]
    %v20 = vld [vmem:[%s0 + $0xa] sm:$0x3]
    %v21 = vld [vmem:[%s0 + $0xc] sm:$0x3]
    %v22 = vld [vmem:[%s0 + $0xe] sm:$0x3]
    %v23 = vld [vmem:[%s1] sm:$0xff]
    %v24 = vld [vmem:[%s1 + $0x8] sm:$0xff]
    %v25 = vld [vmem:[%s1 + $0x10] sm:$0xff]
    %v26 = vld [vmem:[%s1 + $0x18] sm:$0xff]
    %v27 = vld [vmem:[%s1 + $0x20] sm:$0xff]
    %v28 = vld [vmem:[%s1 + $0x28] sm:$0xff]
    %v29 = vld [vmem:[%s1 + $0x30] sm:$0xff]
    %v30 = vld [vmem:[%s1 + $0x38] sm:$0xff]
    %v31 = vld [vmem:[%s1 + $0x40] sm:$0xff]
    %v32 = vld [vmem:[%s1 + $0x48] sm:$0xff]
    %v33 = vld [vmem:[%s1 + $0x50] sm:$0xff]
    %v34 = vld [vmem:[%s1 + $0x58] sm:$0xff]
    %v35 = vld [vmem:[%s1 + $0x60] sm:$0xff]
    %v36 = vld [vmem:[%s1 + $0x68] sm:$0xff]
    %v37 = vld [vmem:[%s1 + $0x70] sm:$0xff]
    %v38 = vld [vmem:[%s1 + $0x78] sm:$0xff]
    %v39 = vld [vmem:[%s1 + $0x80] sm:$0xff]
    %v40 = vld [vmem:[%s1 + $0x88] sm:$0xff]
    %v41 = vld [vmem:[%s1 + $0x90] sm:$0xff]
    %v42 = vld [vmem:[%s1 + $0x98] sm:$0xff]
    %v43 = vld [vmem:[%s1 + $0xa0] sm:$0xff]
    %v44 = vld [vmem:[%s1 + $0xa8] sm:$0xff]
    %v45 = vld [vmem:[%s1 + $0xb0] sm:$0xff]
    %v46 = vld [vmem:[%s1 + $0xb8] sm:$0xff]
    %v47 = vld [vmem:[%s1 + $0xc0] sm:$0xff]
    %v48 = vld [vmem:[%s1 + $0xc8] sm:$0xff]
    %v49 = vld [vmem:[%s1 + $0xd0] sm:$0xff]
    %v50 = vld [vmem:[%s1 + $0xd8] sm:$0xff]
    %v51 = vld [vmem:[%s1 + $0xe0] sm:$0xff]
    %v52 = vld [vmem:[%s1 + $0xe8] sm:$0xff]
    %v53 = vld [vmem:[%s1 + $0xf0] sm:$0xff]
    %v54 = vld [vmem:[%s1 + $0xf8] sm:$0xff]
    %v55 = vld [vmem:[%s2] sm:$0x3]
    %v57 = vlaneseq
    %v58 = vshrl.u32 %v57, 7
    %v59 = vsub.s32 0, %v58
    %v60 = vrot.slane %v55, %v59
    %v61 = vlaneseq
    %v62 = vshrl.u32 %v61, 7
    %v63 = vsub.s32 1, %v62
    %v64 = vrot.slane %v55, %v63
    %v75 = vcombine.low %v15, %v16
    %v76 = vcombine.low %v17, %v18
    %v77 = vcombine.low %v19, %v20
    %v78 = vcombine.low %v21, %v22
    %v80 = vunpack.c.l.s4 1966171168
    %v81 = vunpack.c.0.s8 %v80
    %v82 = vlaneseq
    %v83 = vshrl.u32 %v82, 7
    %v84 = vsub.s32 %v81, %v83
    %v85 = vrot.slane %v75, %v84
    %v87 = vunpack.c.l.s4 1966171168
    %v88 = vunpack.c.0.s8 %v87
    %v89 = vlaneseq
    %v90 = vshrl.u32 %v89, 7
    %v91 = vsub.s32 %v88, %v90
    %v92 = vrot.slane %v76, %v91
    %v94 = vunpack.c.l.s4 1966171168
    %v95 = vunpack.c.0.s8 %v94
    %v96 = vlaneseq
    %v97 = vshrl.u32 %v96, 7
    %v98 = vsub.s32 %v95, %v97
    %v99 = vrot.slane %v77, %v98
    %v101 = vunpack.c.l.s4 1966171168
    %v102 = vunpack.c.0.s8 %v101
    %v103 = vlaneseq
    %v104 = vshrl.u32 %v103, 7
    %v105 = vsub.s32 %v102, %v104
    %v106 = vrot.slane %v78, %v105
    %v107 = vcombine.low %v85, %v92
    %v108 = vcombine.high %v85, %v92
    %v109 = vcombine.low %v99, %v106
    %v110 = vcombine.high %v99, %v106
    %v112 = vunpack.c.l.s4 1966171168
    %v113 = vunpack.c.0.s8 %v112
    %v114 = vlaneseq
    %v115 = vshrl.u32 %v114, 7
    %v116 = vsub.s32 %v113, %v115
    %v117 = vrot.slane %v107, %v116
    %v119 = vunpack.c.l.s4 1966171168
    %v120 = vunpack.c.0.s8 %v119
    %v121 = vlaneseq
    %v122 = vshrl.u32 %v121, 7
    %v123 = vsub.s32 %v120, %v122
    %v124 = vrot.slane %v108, %v123
    %v126 = vunpack.c.l.s4 1966171168
    %v127 = vunpack.c.0.s8 %v126
    %v128 = vlaneseq
    %v129 = vshrl.u32 %v128, 7
    %v130 = vsub.s32 %v127, %v129
    %v131 = vrot.slane %v109, %v130
    %v133 = vunpack.c.l.s4 1966171168
    %v134 = vunpack.c.0.s8 %v133
    %v135 = vlaneseq
    %v136 = vshrl.u32 %v135, 7
    %v137 = vsub.s32 %v134, %v136
    %v138 = vrot.slane %v110, %v137
    %v139 = vcombine.low %v117, %v131
    %v140 = vcombine.low %v124, %v138
    %v175 = vunpack.c.l.b16 %v23
    %v176 = vunpack.c.h.b16 %v23
    %v177 = vunpack.c.l.b16 %v24
    %v178 = vunpack.c.h.b16 %v24
    %v179 = vunpack.c.l.b16 %v25
    %v180 = vunpack.c.h.b16 %v25
    %v181 = vunpack.c.l.b16 %v26
    %v182 = vunpack.c.h.b16 %v26
    %v183 = vunpack.c.l.b16 %v27
    %v184 = vunpack.c.h.b16 %v27
    %v185 = vunpack.c.l.b16 %v28
    %v186 = vunpack.c.h.b16 %v28
    %v187 = vunpack.c.l.b16 %v29
    %v188 = vunpack.c.h.b16 %v29
    %v189 = vunpack.c.l.b16 %v30
    %v190 = vunpack.c.h.b16 %v30
    %v191 = vunpack.c.l.b16 %v31
    %v192 = vunpack.c.h.b16 %v31
    %v193 = vunpack.c.l.b16 %v32
    %v194 = vunpack.c.h.b16 %v32
    %v195 = vunpack.c.l.b16 %v33
    %v196 = vunpack.c.h.b16 %v33
    %v197 = vunpack.c.l.b16 %v34
    %v198 = vunpack.c.h.b16 %v34
    %v199 = vunpack.c.l.b16 %v35
    %v200 = vunpack.c.h.b16 %v35
    %v201 = vunpack.c.l.b16 %v36
    %v202 = vunpack.c.h.b16 %v36
    %v203 = vunpack.c.l.b16 %v37
    %v204 = vunpack.c.h.b16 %v37
    %v205 = vunpack.c.l.b16 %v38
    %v206 = vunpack.c.h.b16 %v38
    %v207 = vunpack.c.l.b16 %v39
    %v208 = vunpack.c.h.b16 %v39
    %v209 = vunpack.c.l.b16 %v40
    %v210 = vunpack.c.h.b16 %v40
    %v211 = vunpack.c.l.b16 %v41
    %v212 = vunpack.c.h.b16 %v41
    %v213 = vunpack.c.l.b16 %v42
    %v214 = vunpack.c.h.b16 %v42
    %v215 = vunpack.c.l.b16 %v43
    %v216 = vunpack.c.h.b16 %v43
    %v217 = vunpack.c.l.b16 %v44
    %v218 = vunpack.c.h.b16 %v44
    %v219 = vunpack.c.l.b16 %v45
    %v220 = vunpack.c.h.b16 %v45
    %v221 = vunpack.c.l.b16 %v46
    %v222 = vunpack.c.h.b16 %v46
    %v223 = vunpack.c.l.b16 %v47
    %v224 = vunpack.c.h.b16 %v47
    %v225 = vunpack.c.l.b16 %v48
    %v226 = vunpack.c.h.b16 %v48
    %v227 = vunpack.c.l.b16 %v49
    %v228 = vunpack.c.h.b16 %v49
    %v229 = vunpack.c.l.b16 %v50
    %v230 = vunpack.c.h.b16 %v50
    %v231 = vunpack.c.l.b16 %v51
    %v232 = vunpack.c.h.b16 %v51
    %v233 = vunpack.c.l.b16 %v52
    %v234 = vunpack.c.h.b16 %v52
    %v235 = vunpack.c.l.b16 %v53
    %v236 = vunpack.c.h.b16 %v53
    %v237 = vunpack.c.l.b16 %v54
    %v238 = vunpack.c.h.b16 %v54
    %v239 = vpack.c.b16 %v177, %v175
    %v240 = vpack.c.b16 %v178, %v176
    %v241 = vpack.c.b16 %v181, %v179
    %v242 = vpack.c.b16 %v182, %v180
    %v243 = vpack.c.b16 %v185, %v183
    %v244 = vpack.c.b16 %v186, %v184
    %v245 = vpack.c.b16 %v189, %v187
    %v246 = vpack.c.b16 %v190, %v188
    %v247 = vpack.c.b16 %v193, %v191
    %v248 = vpack.c.b16 %v194, %v192
    %v249 = vpack.c.b16 %v197, %v195
    %v250 = vpack.c.b16 %v198, %v196
    %v251 = vpack.c.b16 %v201, %v199
    %v252 = vpack.c.b16 %v202, %v200
    %v253 = vpack.c.b16 %v205, %v203
    %v254 = vpack.c.b16 %v206, %v204
    %v255 = vpack.c.b16 %v209, %v207
    %v256 = vpack.c.b16 %v210, %v208
    %v257 = vpack.c.b16 %v213, %v211
    %v258 = vpack.c.b16 %v214, %v212
    %v259 = vpack.c.b16 %v217, %v215
    %v260 = vpack.c.b16 %v218, %v216
    %v261 = vpack.c.b16 %v221, %v219
    %v262 = vpack.c.b16 %v222, %v220
    %v263 = vpack.c.b16 %v225, %v223
    %v264 = vpack.c.b16 %v226, %v224
    %v265 = vpack.c.b16 %v229, %v227
    %v266 = vpack.c.b16 %v230, %v228
    %v267 = vpack.c.b16 %v233, %v231
    %v268 = vpack.c.b16 %v234, %v232
    %v269 = vpack.c.b16 %v237, %v235
    %v270 = vpack.c.b16 %v238, %v236
    %303 = vmatprep.subr.bf16.mxu0 %v240
    %304 = vmatpush1.bf16.msra.mxu0 %v239
    %305 = vmatprep.subr.bf16.mxu0 %v242
    %306 = vmatpush1.bf16.msra.mxu0 %v241
    %307 = vmatprep.subr.bf16.mxu0 %v244
    %308 = vmatpush1.bf16.msra.mxu0 %v243
    %309 = vmatprep.subr.bf16.mxu0 %v246
    %310 = vmatpush1.bf16.msra.mxu0 %v245
    %311 = vmatprep.subr.bf16.mxu0 %v248
    %312 = vmatpush1.bf16.msra.mxu0 %v247
    %313 = vmatprep.subr.bf16.mxu0 %v250
    %314 = vmatpush1.bf16.msra.mxu0 %v249
    %315 = vmatprep.subr.bf16.mxu0 %v252
    %316 = vmatpush1.bf16.msra.mxu0 %v251
    %317 = vmatprep.subr.bf16.mxu0 %v254
    %318 = vmatpush1.bf16.msra.mxu0 %v253
    %319 = vmatprep.subr.bf16.mxu0 %v256
    %320 = vmatpush1.bf16.msra.mxu0 %v255
    %321 = vmatprep.subr.bf16.mxu0 %v258
    %322 = vmatpush1.bf16.msra.mxu0 %v257
    %323 = vmatprep.subr.bf16.mxu0 %v260
    %324 = vmatpush1.bf16.msra.mxu0 %v259
    %325 = vmatprep.subr.bf16.mxu0 %v262
    %326 = vmatpush1.bf16.msra.mxu0 %v261
    %327 = vmatprep.subr.bf16.mxu0 %v264
    %328 = vmatpush1.bf16.msra.mxu0 %v263
    %329 = vmatprep.subr.bf16.mxu0 %v266
    %330 = vmatpush1.bf16.msra.mxu0 %v265
    %331 = vmatprep.subr.bf16.mxu0 %v268
    %332 = vmatpush1.bf16.msra.mxu0 %v267
    %333 = vmatprep.subr.bf16.mxu0 %v270
    %334 = vmatpush1.bf16.msra.mxu0 %v269
    %335 = vmatprep.mubr.bf16.mxu0 %v140
    %336 = vmatmul.mubr.bf16.gmra.mrb[0].mxu0 %v139
    %v337 = vpop.f32.mrb[0].mxu0
    %v338 = vadd.f32 %v60, %v337
    %v339 = vpop.f32.mrb[0].mxu0
    %v340 = vadd.f32 %v64, %v339
    %v341 = vpop.f32.mrb[0].mxu0
    %v342 = vadd.f32 %v60, %v341
    %v343 = vpop.f32.mrb[0].mxu0
    %v344 = vadd.f32 %v64, %v343
    %345 = vdwg.mxu0
    %vm346 = vcmp.gt.f32.partialorder %v338, 0.0
    %vm347 = vcmp.gt.f32.partialorder %v340, 0.0
    %vm348 = vcmp.gt.f32.partialorder %v342, 0.0
    %vm349 = vcmp.gt.f32.partialorder %v344, 0.0
    %v350 = vmul.f32 %v338, 0.01
    %v351 = vmul.f32 %v340, 0.01
    %v352 = vmul.f32 %v342, 0.01
    %v353 = vmul.f32 %v344, 0.01
    %v354 = vsel %vm346, %v338, %v350
    %v355 = vsel %vm347, %v340, %v351
    %v356 = vsel %vm348, %v342, %v352
    %v357 = vsel %vm349, %v344, %v353
    %v362 = vcombine.low %v354, %v355
    %v363 = vcombine.high %v354, %v355
    %v365 = vunpack.c.l.s4 1983009808
    %v366 = vunpack.c.0.s8 %v365
    %v367 = vlaneseq
    %v368 = vshrl.u32 %v367, 7
    %v369 = vsub.s32 %v366, %v368
    %v370 = vrot.slane %v362, %v369
    %v372 = vunpack.c.l.s4 1983009808
    %v373 = vunpack.c.0.s8 %v372
    %v374 = vlaneseq
    %v375 = vshrl.u32 %v374, 7
    %v376 = vsub.s32 %v373, %v375
    %v377 = vrot.slane %v363, %v376
    %v378 = vcombine.high %v370, %v370
    %v379 = vcombine.high %v377, %v377
    %v380 = vcombine.low %v356, %v357
    %v381 = vcombine.high %v356, %v357
    %v383 = vunpack.c.l.s4 1983009808
    %v384 = vunpack.c.0.s8 %v383
    %v385 = vlaneseq
    %v386 = vshrl.u32 %v385, 7
    %v387 = vsub.s32 %v384, %v386
    %v388 = vrot.slane %v380, %v387
    %v390 = vunpack.c.l.s4 1983009808
    %v391 = vunpack.c.0.s8 %v390
    %v392 = vlaneseq
    %v393 = vshrl.u32 %v392, 7
    %v394 = vsub.s32 %v391, %v393
    %v395 = vrot.slane %v381, %v394
    %v396 = vcombine.high %v388, %v388
    %v397 = vcombine.high %v395, %v395
    %406 = vst [vmem:[#allocation2] sm:$0xf] %v370
    %407 = vst [vmem:[#allocation2 + $0x4] sm:$0xf] %v378
    %408 = vst [vmem:[#allocation2 + $0x8] sm:$0xf] %v377
    %409 = vst [vmem:[#allocation2 + $0xc] sm:$0xf] %v379
    %410 = vst [vmem:[#allocation2 + $0x10] sm:$0xf] %v388
    %411 = vst [vmem:[#allocation2 + $0x14] sm:$0xf] %v396
    %412 = vst [vmem:[#allocation2 + $0x18] sm:$0xf] %v395
    %413 = vst [vmem:[#allocation2 + $0x1c] sm:$0xf] %v397
    // Predicated region
    $region14: #{cnn_backbone_forward.11} parent=1 // pred_check
      _
    $region15: #{cnn_backbone_forward.11} parent=1 // pred_check_branch
      %415 = sbr.rel (0) target = $region17
    $region16: #{cnn_backbone_forward.11} parent=1 // pred_region
      %s417 = ssub.s32 512, 64
      %418 = vsyncadd [#allocation3], %s417
      %s419 = sshll.u32 [#allocation2], 4
      %s420 = int_to_ptr.vmem [resolvable:$true] %s419
      %425 = dma.vmem_to_hbm [thread:$0]  %s420, 64, %s3, [#allocation3], 64, 64, 4
    $region17: #{cnn_backbone_forward.11} parent=1 // pred_fallthru
      _
    // Predicated region
    $region18: #{cnn_backbone_forward.11} parent=1 // pred_check
      _
    $region19: #{cnn_backbone_forward.11} parent=1 // pred_check_branch
      %427 = sbr.rel (0) target = $region21
    $region20: #{cnn_backbone_forward.11} parent=1 // pred_region
      %428 = dma.done [#allocation3], 512
    $region21: #{cnn_backbone_forward.11} parent=1 // pred_fallthru
      _
    %429 = vsyncpa [#allocation3], 1

</llo_original>
